<compile_context>
chip_gen: v6e
topology: v6e:2x2x1
jax: 0.10.0
libtpu: 0.0.40
codegen_flags: <defaults>
</compile_context>

<pallas_src>
import jax
import jax.numpy as jnp
from jax import lax
from jax.experimental import pallas as pl
from jax.experimental.pallas import tpu as pltpu

EPS = 1e-5            # PyTorch BatchNorm default
NEG_SLOPE = 0.01      # LeakyReLU negative slope
VMEM_LIMIT = 32 * 1024 * 1024   # explicit scoped-VMEM budget (safe on v5e/v6e/v7x)
MAX_TILE_S = 2048               # lane-dense spatial tile cap (multiple of 128)


def _leaky(y):
    return jnp.where(y > 0, y, NEG_SLOPE * y)


# ---------------------------------------------------------------------------
# K1: depthwise 3x3x3 conv (stride 1, pad 1) + BN1 partial statistics.
# One grid step = one (batch, channel) volume. The halo'd padded volume is DMA'd
# into VMEM once by the BlockSpec and the 27 taps are shifted VPU FMAs (no MXU,
# no materialized im2col). Conv bias is omitted: it cancels in the BN that follows.
# ---------------------------------------------------------------------------
def _dwconv_kernel(w_ref, xpad_ref, conv_ref, stats_ref):
    c = pl.program_id(1)                      # grid = (N, Cin)
    D, H, W = conv_ref.shape
    acc = jnp.zeros((D, H, W), jnp.float32)
    for kd in range(3):
        for kh in range(3):
            for kw in range(3):
                tap = kd * 9 + kh * 3 + kw
                acc = acc + w_ref[c, tap] * xpad_ref[kd:kd + D, kh:kh + H, kw:kw + W]
    conv_ref[...] = acc
    s = jnp.sum(acc)
    sq = jnp.sum(acc * acc)
    stats_ref[...] = jnp.concatenate(
        [jnp.full((1, 128), s, jnp.float32),
         jnp.full((1, 128), sq, jnp.float32)], axis=0)


# ---------------------------------------------------------------------------
# K2: BN1 + LeakyReLU (-> para_map), pointwise 1x1x1 conv + bias (-> share_map),
#     plus per-tile BN2 partial statistics.  Lane-dense (C, TILE_S) tiles.
# ---------------------------------------------------------------------------
def _pwise_kernel(conv1_ref, scale1_ref, shift1_ref, w2_ref, b2_ref,
                  para_ref, share_ref, sum2_ref, sq2_ref):
    y = conv1_ref[...] * scale1_ref[...] + shift1_ref[...]        # fused BN1
    para = _leaky(y)
    para_ref[...] = para
    share = jnp.dot(w2_ref[...], para, preferred_element_type=jnp.float32) + b2_ref[...]
    share_ref[...] = share
    sum2_ref[...] = jnp.broadcast_to(jnp.sum(share, axis=1, keepdims=True), sum2_ref.shape)
    sq2_ref[...] = jnp.broadcast_to(jnp.sum(share * share, axis=1, keepdims=True), sq2_ref.shape)


# ---------------------------------------------------------------------------
# K3: BN2 + LeakyReLU (-> out).
# ---------------------------------------------------------------------------
def _bn_act_kernel(share_ref, scale2_ref, shift2_ref, out_ref):
    out_ref[...] = _leaky(share_ref[...] * scale2_ref[...] + shift2_ref[...])


# ---------------------------------------------------------------------------
# Plain-JAX glue: trilinear upsample (align_corners=True) as 3 per-axis matmuls.
# TODO(synk): fuse the upsample + halo pad into K1's input path (manual DMA of a
#             halo'd tile from pl.ANY) to save one HBM round-trip of `up`.
# ---------------------------------------------------------------------------
def _interp_matrix(s_in, s_out):
    if s_in == 1:
        return jnp.ones((s_out, 1), jnp.float32)
    pos = jnp.arange(s_out, dtype=jnp.float32) * ((s_in - 1) / (s_out - 1))
    i0 = jnp.clip(jnp.floor(pos), 0, s_in - 2).astype(jnp.int32)
    frac = pos - i0.astype(jnp.float32)
    rows = jnp.arange(s_out)
    a = jnp.zeros((s_out, s_in), jnp.float32)
    a = a.at[rows, i0].set(1.0 - frac)
    a = a.at[rows, i0 + 1].add(frac)
    return a


def _trilinear_upsample(x, scale):
    _, _, d, h, w = x.shape
    ad = _interp_matrix(d, d * scale)
    ah = _interp_matrix(h, h * scale)
    aw = _interp_matrix(w, w * scale)
    return jnp.einsum('ncdhw,Dd,Hh,Ww->ncDHW', x, ad, ah, aw)


def _pick_tile(s, cap=MAX_TILE_S):
    # largest multiple of 128 that divides S (keeps BN stats exact: no ragged tile),
    # capped so double-buffered f32 tiles fit comfortably in VMEM on every TPU gen.
    for t in range(min(cap, s) // 128 * 128, 0, -128):
        if s % t == 0:
            return t
    return s      # full extent in one (full-dim) block


# ---------------------------------------------------------------------------
# Forward wrapper (matches UnetUpsample.forward semantics, training-mode BN).
# ---------------------------------------------------------------------------
def unet_upsample(x, w_dw, b_dw, gamma1, beta1, w_pw, b_pw, gamma2, beta2, *, up_stride=2):
    del b_dw   # exact no-op: per-channel constant cancels in training-mode BN1 (perf review)

    N, Cin, D, H, W = x.shape
    Cout = w_pw.shape[0]
    Du, Hu, Wu = D * up_stride, H * up_stride, W * up_stride
    S = Du * Hu * Wu
    f32 = jnp.float32

    # ---- glue: trilinear upsample + halo pad (NCDHW throughout, no transposes) ----
    up = _trilinear_upsample(x.astype(f32), up_stride)
    xpad = jnp.pad(up, ((0, 0), (0, 0), (1, 1), (1, 1), (1, 1)))

    # ---- K1: depthwise conv + BN1 partial stats ----
    w_dw2 = w_dw.reshape(Cin, 27).astype(f32)
    conv1, stats1 = pl.pallas_call(
        _dwconv_kernel,
        grid=(N, Cin),
        in_specs=[
            pl.BlockSpec(memory_space=pltpu.MemorySpace.SMEM),                 # (Cin, 27) weights
            pl.BlockSpec((None, None, Du + 2, Hu + 2, Wu + 2),
                         lambda n, c: (n, c, 0, 0, 0)),
        ],
        out_specs=[
            pl.BlockSpec((None, None, Du, Hu, Wu), lambda n, c: (n, c, 0, 0, 0)),
            pl.BlockSpec((None, None, 2, 128), lambda n, c: (n, c, 0, 0)),
        ],
        out_shape=[
            jax.ShapeDtypeStruct((N, Cin, Du, Hu, Wu), f32),
            jax.ShapeDtypeStruct((N, Cin, 2, 128), f32),
        ],
        compiler_params=pltpu.CompilerParams(
            dimension_semantics=("parallel", "parallel"),
            vmem_limit_bytes=VMEM_LIMIT),
    )(w_dw2, xpad)
    # TODO(synk): for very large volumes, additionally halo-tile the D axis of K1
    #             (manual DMA from memory_space=pl.ANY) to bound the per-block VMEM.

    # ---- glue: finalize BN1 (Cin scalars) ----
    cnt = float(N * S)
    sum1 = stats1[:, :, 0, 0].sum(axis=0)
    sq1 = stats1[:, :, 1, 0].sum(axis=0)
    mean1 = sum1 / cnt
    var1 = jnp.maximum(sq1 / cnt - mean1 * mean1, 0.0)            # biased variance
    inv1 = gamma1.astype(f32) * lax.rsqrt(var1 + EPS)
    scale1 = inv1.reshape(Cin, 1)
    shift1 = (beta1.astype(f32) - mean1 * inv1).reshape(Cin, 1)

    # ---- K2: BN1+LeakyReLU -> para ; pointwise conv -> share ; BN2 partial stats ----
    conv1_flat = conv1.reshape(N, Cin, S)        # free: collapses contiguous dims
    TILE_S = _pick_tile(S)
    T = S // TILE_S
    w_pw2 = w_pw.reshape(Cout, Cin).astype(f32)
    b_pw2 = b_pw.reshape(Cout, 1).astype(f32)

    para_flat, share_flat, sum2p, sq2p = pl.pallas_call(
        _pwise_kernel,
        grid=(N, T),
        in_specs=[
            pl.BlockSpec((None, Cin, TILE_S), lambda n, t: (n, 0, t)),
            pl.BlockSpec((Cin, 1), lambda n, t: (0, 0)),
            pl.BlockSpec((Cin, 1), lambda n, t: (0, 0)),
            pl.BlockSpec((Cout, Cin), lambda n, t: (0, 0)),
            pl.BlockSpec((Cout, 1), lambda n, t: (0, 0)),
        ],
        out_specs=[
            pl.BlockSpec((None, Cin, TILE_S), lambda n, t: (n, 0, t)),
            pl.BlockSpec((None, Cout, TILE_S), lambda n, t: (n, 0, t)),
            pl.BlockSpec((None, None, Cout, 128), lambda n, t: (n, t, 0, 0)),
            pl.BlockSpec((None, None, Cout, 128), lambda n, t: (n, t, 0, 0)),
        ],
        out_shape=[
            jax.ShapeDtypeStruct((N, Cin, S), f32),
            jax.ShapeDtypeStruct((N, Cout, S), f32),
            jax.ShapeDtypeStruct((N, T, Cout, 128), f32),
            jax.ShapeDtypeStruct((N, T, Cout, 128), f32),
        ],
        compiler_params=pltpu.CompilerParams(
            dimension_semantics=("parallel", "parallel"),
            vmem_limit_bytes=VMEM_LIMIT),
    )(conv1_flat, scale1, shift1, w_pw2, b_pw2)

    # ---- glue: finalize BN2 (Cout scalars) ----
    sum2 = sum2p[:, :, :, 0].sum(axis=(0, 1))
    sq2 = sq2p[:, :, :, 0].sum(axis=(0, 1))
    mean2 = sum2 / cnt
    var2 = jnp.maximum(sq2 / cnt - mean2 * mean2, 0.0)
    inv2 = gamma2.astype(f32) * lax.rsqrt(var2 + EPS)
    scale2 = inv2.reshape(Cout, 1)
    shift2 = (beta2.astype(f32) - mean2 * inv2).reshape(Cout, 1)

    # ---- K3: BN2 + LeakyReLU -> out ----
    out_flat = pl.pallas_call(
        _bn_act_kernel,
        grid=(N, T),
        in_specs=[
            pl.BlockSpec((None, Cout, TILE_S), lambda n, t: (n, 0, t)),
            pl.BlockSpec((Cout, 1), lambda n, t: (0, 0)),
            pl.BlockSpec((Cout, 1), lambda n, t: (0, 0)),
        ],
        out_specs=pl.BlockSpec((None, Cout, TILE_S), lambda n, t: (n, 0, t)),
        out_shape=jax.ShapeDtypeStruct((N, Cout, S), f32),
        compiler_params=pltpu.CompilerParams(
            dimension_semantics=("parallel", "parallel"),
            vmem_limit_bytes=VMEM_LIMIT),
    )(share_flat, scale2, shift2)

    # free reshapes back to NCDHW (no transposes anywhere)
    out = out_flat.reshape(N, Cout, Du, Hu, Wu)
    share_map = share_flat.reshape(N, Cout, Du, Hu, Wu)
    para_map = para_flat.reshape(N, Cin, Du, Hu, Wu)
    return out, share_map, para_map


# ---------------------------------------------------------------------------
# Pure-JAX reference of the PyTorch forward (includes the conv biases, centered BN).
# ---------------------------------------------------------------------------
def _batchnorm_ref(x, gamma, beta):
    mean = x.mean(axis=(0, 2, 3, 4), keepdims=True)
    var = ((x - mean) ** 2).mean(axis=(0, 2, 3, 4), keepdims=True)
    return (x - mean) * lax.rsqrt(var + EPS) * gamma.reshape(1, -1, 1, 1, 1) \
        + beta.reshape(1, -1, 1, 1, 1)


def reference(x, w_dw, b_dw, gamma1, beta1, w_pw, b_pw, gamma2, beta2, up_stride=2):
    Cin = x.shape[1]
    Cout = w_pw.shape[0]
    up = _trilinear_upsample(x.astype(jnp.float32), up_stride)
    conv1 = lax.conv_general_dilated(
        up, w_dw, window_strides=(1, 1, 1),
        padding=((1, 1), (1, 1), (1, 1)),
        dimension_numbers=("NCDHW", "OIDHW", "NCDHW"),
        feature_group_count=Cin) + b_dw.reshape(1, -1, 1, 1, 1)
    para = _leaky(_batchnorm_ref(conv1, gamma1, beta1))
    share = jnp.einsum('ncdhw,oc->nodhw', para, w_pw.reshape(Cout, Cin)) \
        + b_pw.reshape(1, -1, 1, 1, 1)
    out = _leaky(_batchnorm_ref(share, gamma2, beta2))
    return out, share, para


if __name__ == "__main__":
    key = jax.random.PRNGKey(0)
    ks = jax.random.split(key, 9)
    N, Cin, Cout, S0 = 2, 4, 8, 8       # input 8^3 -> upsampled 16^3

    x = jax.random.normal(ks[0], (N, Cin, S0, S0, S0), dtype=jnp.float32)
    w_dw = 0.3 * jax.random.normal(ks[1], (Cin, 1, 3, 3, 3), dtype=jnp.float32)
    b_dw = 0.1 * jax.random.normal(ks[2], (Cin,), dtype=jnp.float32)
    gamma1 = 1.0 + 0.1 * jax.random.normal(ks[3], (Cin,), dtype=jnp.float32)
    beta1 = 0.1 * jax.random.normal(ks[4], (Cin,), dtype=jnp.float32)
    w_pw = 0.3 * jax.random.normal(ks[5], (Cout, Cin, 1, 1, 1), dtype=jnp.float32)
    b_pw = 0.1 * jax.random.normal(ks[6], (Cout,), dtype=jnp.float32)
    gamma2 = 1.0 + 0.1 * jax.random.normal(ks[7], (Cout,), dtype=jnp.float32)
    beta2 = 0.1 * jax.random.normal(ks[8], (Cout,), dtype=jnp.float32)

    fwd = jax.jit(unet_upsample)
    out, share_map, para_map = jax.block_until_ready(
        fwd(x, w_dw, b_dw, gamma1, beta1, w_pw, b_pw, gamma2, beta2))

    r_out, r_share, r_para = jax.block_until_ready(
        reference(x, w_dw, b_dw, gamma1, beta1, w_pw, b_pw, gamma2, beta2))

    Su = S0 * 2
    assert out.shape == (N, Cout, Su, Su, Su), out.shape
    assert share_map.shape == (N, Cout, Su, Su, Su), share_map.shape
    assert para_map.shape == (N, Cin, Su, Su, Su), para_map.shape
    for got, ref, name in ((out, r_out, "out"),
                           (share_map, r_share, "share_map"),
                           (para_map, r_para, "para_map")):
        err = float(jnp.abs(got - ref).max())
        assert jnp.allclose(got, ref, rtol=2e-3, atol=2e-3), (name, err)

    print("KERNEL_OK")
</pallas_src>

<mosaic_0001>
module attributes {stable_mosaic.version = 11 : i64} {
  func.func private @main(%arg0: i32) attributes {dimension_semantics = [#tpu.dimension_semantics<core_parallel>], iteration_bounds = array<i64: 2>, tpu.core_type = #tpu.core_type<sc_scalar_subcore>, window_params = []} {
    return
  }
}

module attributes {stable_mosaic.version = 11 : i64} {
  func.func private @main(%arg0: i32) attributes {dimension_semantics = [#tpu.dimension_semantics<core_parallel>], iteration_bounds = array<i64: 2>, tpu.core_type = #tpu.core_type<sc_scalar_subcore>, window_params = []} {
    return
  }
}

module attributes {stable_mosaic.version = 11 : i64} {
  func.func @_dwconv_kernel(%arg0: i32, %arg1: i32, %arg2: memref<4x27xf32, #tpu.memory_space<smem>>, %arg3: memref<1x1x18x18x18xf32, #tpu.memory_space<vmem>>, %arg4: memref<1x1x16x16x16xf32, #tpu.memory_space<vmem>>, %arg5: memref<1x1x2x128xf32, #tpu.memory_space<vmem>>) attributes {dimension_semantics = [#tpu.dimension_semantics<parallel>, #tpu.dimension_semantics<parallel>], iteration_bounds = array<i64: 2, 4>, scalar_prefetch = 0 : i64, scratch_operands = 0 : i64, tpu.core_type = #tpu.core_type<tc>, window_params = [{transform_indices = @transform_0, window_bounds = array<i64: 4, 27>}, {transform_indices = @transform_1, window_bounds = array<i64: 1, 1, 18, 18, 18>}, {transform_indices = @transform_2, window_bounds = array<i64: 1, 1, 16, 16, 16>}, {transform_indices = @transform_3, window_bounds = array<i64: 1, 1, 2, 128>}]} {
    %cst = arith.constant 0.000000e+00 : f32
    %0 = vector.broadcast %cst : f32 to vector<16x16x16xf32>
    %1 = arith.index_cast %arg1 : i32 to index
    %c0 = arith.constant 0 : index
    %2 = memref.load %arg2[%1, %c0] : memref<4x27xf32, #tpu.memory_space<smem>>
    %c0_0 = arith.constant 0 : index
    %c0_1 = arith.constant 0 : index
    %c0_2 = arith.constant 0 : index
    %c0_3 = arith.constant 0 : index
    %c0_4 = arith.constant 0 : index
    %3 = vector.load %arg3[%c0_0, %c0_1, %c0_2, %c0_3, %c0_4] : memref<1x1x18x18x18xf32, #tpu.memory_space<vmem>>, vector<1x1x16x16x16xf32>
    %4 = vector.shape_cast %3 : vector<1x1x16x16x16xf32> to vector<16x16x16xf32>
    %5 = vector.broadcast %2 : f32 to vector<16x16x16xf32>
    %6 = arith.mulf %5, %4 : vector<16x16x16xf32>
    %7 = arith.addf %0, %6 : vector<16x16x16xf32>
    %8 = arith.index_cast %arg1 : i32 to index
    %c1 = arith.constant 1 : index
    %9 = memref.load %arg2[%8, %c1] : memref<4x27xf32, #tpu.memory_space<smem>>
    %c0_5 = arith.constant 0 : index
    %c0_6 = arith.constant 0 : index
    %c0_7 = arith.constant 0 : index
    %c0_8 = arith.constant 0 : index
    %c1_9 = arith.constant 1 : index
    %10 = vector.load %arg3[%c0_5, %c0_6, %c0_7, %c0_8, %c1_9] : memref<1x1x18x18x18xf32, #tpu.memory_space<vmem>>, vector<1x1x16x16x16xf32>
    %11 = vector.shape_cast %10 : vector<1x1x16x16x16xf32> to vector<16x16x16xf32>
    %12 = vector.broadcast %9 : f32 to vector<16x16x16xf32>
    %13 = arith.mulf %12, %11 : vector<16x16x16xf32>
    %14 = arith.addf %7, %13 : vector<16x16x16xf32>
    %15 = arith.index_cast %arg1 : i32 to index
    %c2 = arith.constant 2 : index
    %16 = memref.load %arg2[%15, %c2] : memref<4x27xf32, #tpu.memory_space<smem>>
    %c0_10 = arith.constant 0 : index
    %c0_11 = arith.constant 0 : index
    %c0_12 = arith.constant 0 : index
    %c0_13 = arith.constant 0 : index
    %c2_14 = arith.constant 2 : index
    %17 = vector.load %arg3[%c0_10, %c0_11, %c0_12, %c0_13, %c2_14] : memref<1x1x18x18x18xf32, #tpu.memory_space<vmem>>, vector<1x1x16x16x16xf32>
    %18 = vector.shape_cast %17 : vector<1x1x16x16x16xf32> to vector<16x16x16xf32>
    %19 = vector.broadcast %16 : f32 to vector<16x16x16xf32>
    %20 = arith.mulf %19, %18 : vector<16x16x16xf32>
    %21 = arith.addf %14, %20 : vector<16x16x16xf32>
    %22 = arith.index_cast %arg1 : i32 to index
    %c3 = arith.constant 3 : index
    %23 = memref.load %arg2[%22, %c3] : memref<4x27xf32, #tpu.memory_space<smem>>
    %c0_15 = arith.constant 0 : index
    %c0_16 = arith.constant 0 : index
    %c0_17 = arith.constant 0 : index
    %c1_18 = arith.constant 1 : index
    %c0_19 = arith.constant 0 : index
    %24 = vector.load %arg3[%c0_15, %c0_16, %c0_17, %c1_18, %c0_19] : memref<1x1x18x18x18xf32, #tpu.memory_space<vmem>>, vector<1x1x16x16x16xf32>
    %25 = vector.shape_cast %24 : vector<1x1x16x16x16xf32> to vector<16x16x16xf32>
    %26 = vector.broadcast %23 : f32 to vector<16x16x16xf32>
    %27 = arith.mulf %26, %25 : vector<16x16x16xf32>
    %28 = arith.addf %21, %27 : vector<16x16x16xf32>
    %29 = arith.index_cast %arg1 : i32 to index
    %c4 = arith.constant 4 : index
    %30 = memref.load %arg2[%29, %c4] : memref<4x27xf32, #tpu.memory_space<smem>>
    %c0_20 = arith.constant 0 : index
    %c0_21 = arith.constant 0 : index
    %c0_22 = arith.constant 0 : index
    %c1_23 = arith.constant 1 : index
    %c1_24 = arith.constant 1 : index
    %31 = vector.load %arg3[%c0_20, %c0_21, %c0_22, %c1_23, %c1_24] : memref<1x1x18x18x18xf32, #tpu.memory_space<vmem>>, vector<1x1x16x16x16xf32>
    %32 = vector.shape_cast %31 : vector<1x1x16x16x16xf32> to vector<16x16x16xf32>
    %33 = vector.broadcast %30 : f32 to vector<16x16x16xf32>
    %34 = arith.mulf %33, %32 : vector<16x16x16xf32>
    %35 = arith.addf %28, %34 : vector<16x16x16xf32>
    %36 = arith.index_cast %arg1 : i32 to index
    %c5 = arith.constant 5 : index
    %37 = memref.load %arg2[%36, %c5] : memref<4x27xf32, #tpu.memory_space<smem>>
    %c0_25 = arith.constant 0 : index
    %c0_26 = arith.constant 0 : index
    %c0_27 = arith.constant 0 : index
    %c1_28 = arith.constant 1 : index
    %c2_29 = arith.constant 2 : index
    %38 = vector.load %arg3[%c0_25, %c0_26, %c0_27, %c1_28, %c2_29] : memref<1x1x18x18x18xf32, #tpu.memory_space<vmem>>, vector<1x1x16x16x16xf32>
    %39 = vector.shape_cast %38 : vector<1x1x16x16x16xf32> to vector<16x16x16xf32>
    %40 = vector.broadcast %37 : f32 to vector<16x16x16xf32>
    %41 = arith.mulf %40, %39 : vector<16x16x16xf32>
    %42 = arith.addf %35, %41 : vector<16x16x16xf32>
    %43 = arith.index_cast %arg1 : i32 to index
    %c6 = arith.constant 6 : index
    %44 = memref.load %arg2[%43, %c6] : memref<4x27xf32, #tpu.memory_space<smem>>
    %c0_30 = arith.constant 0 : index
    %c0_31 = arith.constant 0 : index
    %c0_32 = arith.constant 0 : index
    %c2_33 = arith.constant 2 : index
    %c0_34 = arith.constant 0 : index
    %45 = vector.load %arg3[%c0_30, %c0_31, %c0_32, %c2_33, %c0_34] : memref<1x1x18x18x18xf32, #tpu.memory_space<vmem>>, vector<1x1x16x16x16xf32>
    %46 = vector.shape_cast %45 : vector<1x1x16x16x16xf32> to vector<16x16x16xf32>
    %47 = vector.broadcast %44 : f32 to vector<16x16x16xf32>
    %48 = arith.mulf %47, %46 : vector<16x16x16xf32>
    %49 = arith.addf %42, %48 : vector<16x16x16xf32>
    %50 = arith.index_cast %arg1 : i32 to index
    %c7 = arith.constant 7 : index
    %51 = memref.load %arg2[%50, %c7] : memref<4x27xf32, #tpu.memory_space<smem>>
    %c0_35 = arith.constant 0 : index
    %c0_36 = arith.constant 0 : index
    %c0_37 = arith.constant 0 : index
    %c2_38 = arith.constant 2 : index
    %c1_39 = arith.constant 1 : index
    %52 = vector.load %arg3[%c0_35, %c0_36, %c0_37, %c2_38, %c1_39] : memref<1x1x18x18x18xf32, #tpu.memory_space<vmem>>, vector<1x1x16x16x16xf32>
    %53 = vector.shape_cast %52 : vector<1x1x16x16x16xf32> to vector<16x16x16xf32>
    %54 = vector.broadcast %51 : f32 to vector<16x16x16xf32>
    %55 = arith.mulf %54, %53 : vector<16x16x16xf32>
    %56 = arith.addf %49, %55 : vector<16x16x16xf32>
    %57 = arith.index_cast %arg1 : i32 to index
    %c8 = arith.constant 8 : index
    %58 = memref.load %arg2[%57, %c8] : memref<4x27xf32, #tpu.memory_space<smem>>
    %c0_40 = arith.constant 0 : index
    %c0_41 = arith.constant 0 : index
    %c0_42 = arith.constant 0 : index
    %c2_43 = arith.constant 2 : index
    %c2_44 = arith.constant 2 : index
    %59 = vector.load %arg3[%c0_40, %c0_41, %c0_42, %c2_43, %c2_44] : memref<1x1x18x18x18xf32, #tpu.memory_space<vmem>>, vector<1x1x16x16x16xf32>
    %60 = vector.shape_cast %59 : vector<1x1x16x16x16xf32> to vector<16x16x16xf32>
    %61 = vector.broadcast %58 : f32 to vector<16x16x16xf32>
    %62 = arith.mulf %61, %60 : vector<16x16x16xf32>
    %63 = arith.addf %56, %62 : vector<16x16x16xf32>
    %64 = arith.index_cast %arg1 : i32 to index
    %c9 = arith.constant 9 : index
    %65 = memref.load %arg2[%64, %c9] : memref<4x27xf32, #tpu.memory_space<smem>>
    %c0_45 = arith.constant 0 : index
    %c0_46 = arith.constant 0 : index
    %c1_47 = arith.constant 1 : index
    %c0_48 = arith.constant 0 : index
    %c0_49 = arith.constant 0 : index
    %66 = vector.load %arg3[%c0_45, %c0_46, %c1_47, %c0_48, %c0_49] : memref<1x1x18x18x18xf32, #tpu.memory_space<vmem>>, vector<1x1x16x16x16xf32>
    %67 = vector.shape_cast %66 : vector<1x1x16x16x16xf32> to vector<16x16x16xf32>
    %68 = vector.broadcast %65 : f32 to vector<16x16x16xf32>
    %69 = arith.mulf %68, %67 : vector<16x16x16xf32>
    %70 = arith.addf %63, %69 : vector<16x16x16xf32>
    %71 = arith.index_cast %arg1 : i32 to index
    %c10 = arith.constant 10 : index
    %72 = memref.load %arg2[%71, %c10] : memref<4x27xf32, #tpu.memory_space<smem>>
    %c0_50 = arith.constant 0 : index
    %c0_51 = arith.constant 0 : index
    %c1_52 = arith.constant 1 : index
    %c0_53 = arith.constant 0 : index
    %c1_54 = arith.constant 1 : index
    %73 = vector.load %arg3[%c0_50, %c0_51, %c1_52, %c0_53, %c1_54] : memref<1x1x18x18x18xf32, #tpu.memory_space<vmem>>, vector<1x1x16x16x16xf32>
    %74 = vector.shape_cast %73 : vector<1x1x16x16x16xf32> to vector<16x16x16xf32>
    %75 = vector.broadcast %72 : f32 to vector<16x16x16xf32>
    %76 = arith.mulf %75, %74 : vector<16x16x16xf32>
    %77 = arith.addf %70, %76 : vector<16x16x16xf32>
    %78 = arith.index_cast %arg1 : i32 to index
    %c11 = arith.constant 11 : index
    %79 = memref.load %arg2[%78, %c11] : memref<4x27xf32, #tpu.memory_space<smem>>
    %c0_55 = arith.constant 0 : index
    %c0_56 = arith.constant 0 : index
    %c1_57 = arith.constant 1 : index
    %c0_58 = arith.constant 0 : index
    %c2_59 = arith.constant 2 : index
    %80 = vector.load %arg3[%c0_55, %c0_56, %c1_57, %c0_58, %c2_59] : memref<1x1x18x18x18xf32, #tpu.memory_space<vmem>>, vector<1x1x16x16x16xf32>
    %81 = vector.shape_cast %80 : vector<1x1x16x16x16xf32> to vector<16x16x16xf32>
    %82 = vector.broadcast %79 : f32 to vector<16x16x16xf32>
    %83 = arith.mulf %82, %81 : vector<16x16x16xf32>
    %84 = arith.addf %77, %83 : vector<16x16x16xf32>
    %85 = arith.index_cast %arg1 : i32 to index
    %c12 = arith.constant 12 : index
    %86 = memref.load %arg2[%85, %c12] : memref<4x27xf32, #tpu.memory_space<smem>>
    %c0_60 = arith.constant 0 : index
    %c0_61 = arith.constant 0 : index
    %c1_62 = arith.constant 1 : index
    %c1_63 = arith.constant 1 : index
    %c0_64 = arith.constant 0 : index
    %87 = vector.load %arg3[%c0_60, %c0_61, %c1_62, %c1_63, %c0_64] : memref<1x1x18x18x18xf32, #tpu.memory_space<vmem>>, vector<1x1x16x16x16xf32>
    %88 = vector.shape_cast %87 : vector<1x1x16x16x16xf32> to vector<16x16x16xf32>
    %89 = vector.broadcast %86 : f32 to vector<16x16x16xf32>
    %90 = arith.mulf %89, %88 : vector<16x16x16xf32>
    %91 = arith.addf %84, %90 : vector<16x16x16xf32>
    %92 = arith.index_cast %arg1 : i32 to index
    %c13 = arith.constant 13 : index
    %93 = memref.load %arg2[%92, %c13] : memref<4x27xf32, #tpu.memory_space<smem>>
    %c0_65 = arith.constant 0 : index
    %c0_66 = arith.constant 0 : index
    %c1_67 = arith.constant 1 : index
    %c1_68 = arith.constant 1 : index
    %c1_69 = arith.constant 1 : index
    %94 = vector.load %arg3[%c0_65, %c0_66, %c1_67, %c1_68, %c1_69] : memref<1x1x18x18x18xf32, #tpu.memory_space<vmem>>, vector<1x1x16x16x16xf32>
    %95 = vector.shape_cast %94 : vector<1x1x16x16x16xf32> to vector<16x16x16xf32>
    %96 = vector.broadcast %93 : f32 to vector<16x16x16xf32>
    %97 = arith.mulf %96, %95 : vector<16x16x16xf32>
    %98 = arith.addf %91, %97 : vector<16x16x16xf32>
    %99 = arith.index_cast %arg1 : i32 to index
    %c14 = arith.constant 14 : index
    %100 = memref.load %arg2[%99, %c14] : memref<4x27xf32, #tpu.memory_space<smem>>
    %c0_70 = arith.constant 0 : index
    %c0_71 = arith.constant 0 : index
    %c1_72 = arith.constant 1 : index
    %c1_73 = arith.constant 1 : index
    %c2_74 = arith.constant 2 : index
    %101 = vector.load %arg3[%c0_70, %c0_71, %c1_72, %c1_73, %c2_74] : memref<1x1x18x18x18xf32, #tpu.memory_space<vmem>>, vector<1x1x16x16x16xf32>
    %102 = vector.shape_cast %101 : vector<1x1x16x16x16xf32> to vector<16x16x16xf32>
    %103 = vector.broadcast %100 : f32 to vector<16x16x16xf32>
    %104 = arith.mulf %103, %102 : vector<16x16x16xf32>
    %105 = arith.addf %98, %104 : vector<16x16x16xf32>
    %106 = arith.index_cast %arg1 : i32 to index
    %c15 = arith.constant 15 : index
    %107 = memref.load %arg2[%106, %c15] : memref<4x27xf32, #tpu.memory_space<smem>>
    %c0_75 = arith.constant 0 : index
    %c0_76 = arith.constant 0 : index
    %c1_77 = arith.constant 1 : index
    %c2_78 = arith.constant 2 : index
    %c0_79 = arith.constant 0 : index
    %108 = vector.load %arg3[%c0_75, %c0_76, %c1_77, %c2_78, %c0_79] : memref<1x1x18x18x18xf32, #tpu.memory_space<vmem>>, vector<1x1x16x16x16xf32>
    %109 = vector.shape_cast %108 : vector<1x1x16x16x16xf32> to vector<16x16x16xf32>
    %110 = vector.broadcast %107 : f32 to vector<16x16x16xf32>
    %111 = arith.mulf %110, %109 : vector<16x16x16xf32>
    %112 = arith.addf %105, %111 : vector<16x16x16xf32>
    %113 = arith.index_cast %arg1 : i32 to index
    %c16 = arith.constant 16 : index
    %114 = memref.load %arg2[%113, %c16] : memref<4x27xf32, #tpu.memory_space<smem>>
    %c0_80 = arith.constant 0 : index
    %c0_81 = arith.constant 0 : index
    %c1_82 = arith.constant 1 : index
    %c2_83 = arith.constant 2 : index
    %c1_84 = arith.constant 1 : index
    %115 = vector.load %arg3[%c0_80, %c0_81, %c1_82, %c2_83, %c1_84] : memref<1x1x18x18x18xf32, #tpu.memory_space<vmem>>, vector<1x1x16x16x16xf32>
    %116 = vector.shape_cast %115 : vector<1x1x16x16x16xf32> to vector<16x16x16xf32>
    %117 = vector.broadcast %114 : f32 to vector<16x16x16xf32>
    %118 = arith.mulf %117, %116 : vector<16x16x16xf32>
    %119 = arith.addf %112, %118 : vector<16x16x16xf32>
    %120 = arith.index_cast %arg1 : i32 to index
    %c17 = arith.constant 17 : index
    %121 = memref.load %arg2[%120, %c17] : memref<4x27xf32, #tpu.memory_space<smem>>
    %c0_85 = arith.constant 0 : index
    %c0_86 = arith.constant 0 : index
    %c1_87 = arith.constant 1 : index
    %c2_88 = arith.constant 2 : index
    %c2_89 = arith.constant 2 : index
    %122 = vector.load %arg3[%c0_85, %c0_86, %c1_87, %c2_88, %c2_89] : memref<1x1x18x18x18xf32, #tpu.memory_space<vmem>>, vector<1x1x16x16x16xf32>
    %123 = vector.shape_cast %122 : vector<1x1x16x16x16xf32> to vector<16x16x16xf32>
    %124 = vector.broadcast %121 : f32 to vector<16x16x16xf32>
    %125 = arith.mulf %124, %123 : vector<16x16x16xf32>
    %126 = arith.addf %119, %125 : vector<16x16x16xf32>
    %127 = arith.index_cast %arg1 : i32 to index
    %c18 = arith.constant 18 : index
    %128 = memref.load %arg2[%127, %c18] : memref<4x27xf32, #tpu.memory_space<smem>>
    %c0_90 = arith.constant 0 : index
    %c0_91 = arith.constant 0 : index
    %c2_92 = arith.constant 2 : index
    %c0_93 = arith.constant 0 : index
    %c0_94 = arith.constant 0 : index
    %129 = vector.load %arg3[%c0_90, %c0_91, %c2_92, %c0_93, %c0_94] : memref<1x1x18x18x18xf32, #tpu.memory_space<vmem>>, vector<1x1x16x16x16xf32>
    %130 = vector.shape_cast %129 : vector<1x1x16x16x16xf32> to vector<16x16x16xf32>
    %131 = vector.broadcast %128 : f32 to vector<16x16x16xf32>
    %132 = arith.mulf %131, %130 : vector<16x16x16xf32>
    %133 = arith.addf %126, %132 : vector<16x16x16xf32>
    %134 = arith.index_cast %arg1 : i32 to index
    %c19 = arith.constant 19 : index
    %135 = memref.load %arg2[%134, %c19] : memref<4x27xf32, #tpu.memory_space<smem>>
    %c0_95 = arith.constant 0 : index
    %c0_96 = arith.constant 0 : index
    %c2_97 = arith.constant 2 : index
    %c0_98 = arith.constant 0 : index
    %c1_99 = arith.constant 1 : index
    %136 = vector.load %arg3[%c0_95, %c0_96, %c2_97, %c0_98, %c1_99] : memref<1x1x18x18x18xf32, #tpu.memory_space<vmem>>, vector<1x1x16x16x16xf32>
    %137 = vector.shape_cast %136 : vector<1x1x16x16x16xf32> to vector<16x16x16xf32>
    %138 = vector.broadcast %135 : f32 to vector<16x16x16xf32>
    %139 = arith.mulf %138, %137 : vector<16x16x16xf32>
    %140 = arith.addf %133, %139 : vector<16x16x16xf32>
    %141 = arith.index_cast %arg1 : i32 to index
    %c20 = arith.constant 20 : index
    %142 = memref.load %arg2[%141, %c20] : memref<4x27xf32, #tpu.memory_space<smem>>
    %c0_100 = arith.constant 0 : index
    %c0_101 = arith.constant 0 : index
    %c2_102 = arith.constant 2 : index
    %c0_103 = arith.constant 0 : index
    %c2_104 = arith.constant 2 : index
    %143 = vector.load %arg3[%c0_100, %c0_101, %c2_102, %c0_103, %c2_104] : memref<1x1x18x18x18xf32, #tpu.memory_space<vmem>>, vector<1x1x16x16x16xf32>
    %144 = vector.shape_cast %143 : vector<1x1x16x16x16xf32> to vector<16x16x16xf32>
    %145 = vector.broadcast %142 : f32 to vector<16x16x16xf32>
    %146 = arith.mulf %145, %144 : vector<16x16x16xf32>
    %147 = arith.addf %140, %146 : vector<16x16x16xf32>
    %148 = arith.index_cast %arg1 : i32 to index
    %c21 = arith.constant 21 : index
    %149 = memref.load %arg2[%148, %c21] : memref<4x27xf32, #tpu.memory_space<smem>>
    %c0_105 = arith.constant 0 : index
    %c0_106 = arith.constant 0 : index
    %c2_107 = arith.constant 2 : index
    %c1_108 = arith.constant 1 : index
    %c0_109 = arith.constant 0 : index
    %150 = vector.load %arg3[%c0_105, %c0_106, %c2_107, %c1_108, %c0_109] : memref<1x1x18x18x18xf32, #tpu.memory_space<vmem>>, vector<1x1x16x16x16xf32>
    %151 = vector.shape_cast %150 : vector<1x1x16x16x16xf32> to vector<16x16x16xf32>
    %152 = vector.broadcast %149 : f32 to vector<16x16x16xf32>
    %153 = arith.mulf %152, %151 : vector<16x16x16xf32>
    %154 = arith.addf %147, %153 : vector<16x16x16xf32>
    %155 = arith.index_cast %arg1 : i32 to index
    %c22 = arith.constant 22 : index
    %156 = memref.load %arg2[%155, %c22] : memref<4x27xf32, #tpu.memory_space<smem>>
    %c0_110 = arith.constant 0 : index
    %c0_111 = arith.constant 0 : index
    %c2_112 = arith.constant 2 : index
    %c1_113 = arith.constant 1 : index
    %c1_114 = arith.constant 1 : index
    %157 = vector.load %arg3[%c0_110, %c0_111, %c2_112, %c1_113, %c1_114] : memref<1x1x18x18x18xf32, #tpu.memory_space<vmem>>, vector<1x1x16x16x16xf32>
    %158 = vector.shape_cast %157 : vector<1x1x16x16x16xf32> to vector<16x16x16xf32>
    %159 = vector.broadcast %156 : f32 to vector<16x16x16xf32>
    %160 = arith.mulf %159, %158 : vector<16x16x16xf32>
    %161 = arith.addf %154, %160 : vector<16x16x16xf32>
    %162 = arith.index_cast %arg1 : i32 to index
    %c23 = arith.constant 23 : index
    %163 = memref.load %arg2[%162, %c23] : memref<4x27xf32, #tpu.memory_space<smem>>
    %c0_115 = arith.constant 0 : index
    %c0_116 = arith.constant 0 : index
    %c2_117 = arith.constant 2 : index
    %c1_118 = arith.constant 1 : index
    %c2_119 = arith.constant 2 : index
    %164 = vector.load %arg3[%c0_115, %c0_116, %c2_117, %c1_118, %c2_119] : memref<1x1x18x18x18xf32, #tpu.memory_space<vmem>>, vector<1x1x16x16x16xf32>
    %165 = vector.shape_cast %164 : vector<1x1x16x16x16xf32> to vector<16x16x16xf32>
    %166 = vector.broadcast %163 : f32 to vector<16x16x16xf32>
    %167 = arith.mulf %166, %165 : vector<16x16x16xf32>
    %168 = arith.addf %161, %167 : vector<16x16x16xf32>
    %169 = arith.index_cast %arg1 : i32 to index
    %c24 = arith.constant 24 : index
    %170 = memref.load %arg2[%169, %c24] : memref<4x27xf32, #tpu.memory_space<smem>>
    %c0_120 = arith.constant 0 : index
    %c0_121 = arith.constant 0 : index
    %c2_122 = arith.constant 2 : index
    %c2_123 = arith.constant 2 : index
    %c0_124 = arith.constant 0 : index
    %171 = vector.load %arg3[%c0_120, %c0_121, %c2_122, %c2_123, %c0_124] : memref<1x1x18x18x18xf32, #tpu.memory_space<vmem>>, vector<1x1x16x16x16xf32>
    %172 = vector.shape_cast %171 : vector<1x1x16x16x16xf32> to vector<16x16x16xf32>
    %173 = vector.broadcast %170 : f32 to vector<16x16x16xf32>
    %174 = arith.mulf %173, %172 : vector<16x16x16xf32>
    %175 = arith.addf %168, %174 : vector<16x16x16xf32>
    %176 = arith.index_cast %arg1 : i32 to index
    %c25 = arith.constant 25 : index
    %177 = memref.load %arg2[%176, %c25] : memref<4x27xf32, #tpu.memory_space<smem>>
    %c0_125 = arith.constant 0 : index
    %c0_126 = arith.constant 0 : index
    %c2_127 = arith.constant 2 : index
    %c2_128 = arith.constant 2 : index
    %c1_129 = arith.constant 1 : index
    %178 = vector.load %arg3[%c0_125, %c0_126, %c2_127, %c2_128, %c1_129] : memref<1x1x18x18x18xf32, #tpu.memory_space<vmem>>, vector<1x1x16x16x16xf32>
    %179 = vector.shape_cast %178 : vector<1x1x16x16x16xf32> to vector<16x16x16xf32>
    %180 = vector.broadcast %177 : f32 to vector<16x16x16xf32>
    %181 = arith.mulf %180, %179 : vector<16x16x16xf32>
    %182 = arith.addf %175, %181 : vector<16x16x16xf32>
    %183 = arith.index_cast %arg1 : i32 to index
    %c26 = arith.constant 26 : index
    %184 = memref.load %arg2[%183, %c26] : memref<4x27xf32, #tpu.memory_space<smem>>
    %c0_130 = arith.constant 0 : index
    %c0_131 = arith.constant 0 : index
    %c2_132 = arith.constant 2 : index
    %c2_133 = arith.constant 2 : index
    %c2_134 = arith.constant 2 : index
    %185 = vector.load %arg3[%c0_130, %c0_131, %c2_132, %c2_133, %c2_134] : memref<1x1x18x18x18xf32, #tpu.memory_space<vmem>>, vector<1x1x16x16x16xf32>
    %186 = vector.shape_cast %185 : vector<1x1x16x16x16xf32> to vector<16x16x16xf32>
    %187 = vector.broadcast %184 : f32 to vector<16x16x16xf32>
    %188 = arith.mulf %187, %186 : vector<16x16x16xf32>
    %189 = arith.addf %182, %188 : vector<16x16x16xf32>
    %c0_135 = arith.constant 0 : index
    %c0_136 = arith.constant 0 : index
    %c0_137 = arith.constant 0 : index
    %c0_138 = arith.constant 0 : index
    %c0_139 = arith.constant 0 : index
    %190 = vector.load %arg4[%c0_135, %c0_136, %c0_137, %c0_138, %c0_139] : memref<1x1x16x16x16xf32, #tpu.memory_space<vmem>>, vector<1x1x16x16x16xf32>
    %191 = vector.shape_cast %190 : vector<1x1x16x16x16xf32> to vector<16x16x16xf32>
    %192 = vector.shape_cast %189 : vector<16x16x16xf32> to vector<1x1x16x16x16xf32>
    tpu.vector_store %arg4[%c0_135, %c0_136, %c0_137, %c0_138, %c0_139], %192 {strides = array<i32>} : memref<1x1x16x16x16xf32, #tpu.memory_space<vmem>>, vector<1x1x16x16x16xf32>,
    %193 = vector.shape_cast %189 : vector<16x16x16xf32> to vector<1x16x16x16xf32>
    %cst_140 = arith.constant dense<0.000000e+00> : vector<1xf32>
    %194 = vector.multi_reduction <add>, %193, %cst_140 [1, 2, 3] : vector<1x16x16x16xf32> to vector<1xf32>
    %195 = vector.shape_cast %194 : vector<1xf32> to vector<1x1x1x1xf32>
    %196 = vector.extract %195[0, 0, 0, 0] : f32 from vector<1x1x1x1xf32>
    %197 = arith.mulf %189, %189 : vector<16x16x16xf32>
    %198 = vector.shape_cast %197 : vector<16x16x16xf32> to vector<1x16x16x16xf32>
    %cst_141 = arith.constant dense<0.000000e+00> : vector<1xf32>
    %199 = vector.multi_reduction <add>, %198, %cst_141 [1, 2, 3] : vector<1x16x16x16xf32> to vector<1xf32>
    %200 = vector.shape_cast %199 : vector<1xf32> to vector<1x1x1x1xf32>
    %201 = vector.extract %200[0, 0, 0, 0] : f32 from vector<1x1x1x1xf32>
    %202 = vector.broadcast %196 : f32 to vector<1x128xf32>
    %203 = vector.broadcast %201 : f32 to vector<1x128xf32>
    %204 = tpu.concatenate %202, %203 in 0 : vector<1x128xf32>, vector<1x128xf32> -> vector<2x128xf32>
    %c0_142 = arith.constant 0 : index
    %c0_143 = arith.constant 0 : index
    %c0_144 = arith.constant 0 : index
    %c0_145 = arith.constant 0 : index
    %205 = vector.load %arg5[%c0_142, %c0_143, %c0_144, %c0_145] : memref<1x1x2x128xf32, #tpu.memory_space<vmem>>, vector<1x1x2x128xf32>
    %206 = vector.shape_cast %205 : vector<1x1x2x128xf32> to vector<2x128xf32>
    %207 = vector.shape_cast %204 : vector<2x128xf32> to vector<1x1x2x128xf32>
    tpu.vector_store %arg5[%c0_142, %c0_143, %c0_144, %c0_145], %207 {strides = array<i32>} : memref<1x1x2x128xf32, #tpu.memory_space<vmem>>, vector<1x1x2x128xf32>,
    return
  }
  func.func @transform_0(%arg0: i32, %arg1: i32) -> (i32, i32) {
    %c0_i32 = arith.constant 0 : i32
    %c0_i32_0 = arith.constant 0 : i32
    %c0_i32_1 = arith.constant 0 : i32
    return %c0_i32, %c0_i32_0 : i32, i32
  }
  func.func @transform_1(%arg0: i32, %arg1: i32) -> (i32, i32, i32, i32, i32) {
    %c0_i32 = arith.constant 0 : i32
    %c0_i32_0 = arith.constant 0 : i32
    %c0_i32_1 = arith.constant 0 : i32
    %c0_i32_2 = arith.constant 0 : i32
    return %arg0, %arg1, %c0_i32, %c0_i32_0, %c0_i32_1 : i32, i32, i32, i32, i32
  }
  func.func @transform_2(%arg0: i32, %arg1: i32) -> (i32, i32, i32, i32, i32) {
    %c0_i32 = arith.constant 0 : i32
    %c0_i32_0 = arith.constant 0 : i32
    %c0_i32_1 = arith.constant 0 : i32
    %c0_i32_2 = arith.constant 0 : i32
    return %arg0, %arg1, %c0_i32, %c0_i32_0, %c0_i32_1 : i32, i32, i32, i32, i32
  }
  func.func @transform_3(%arg0: i32, %arg1: i32) -> (i32, i32, i32, i32) {
    %c0_i32 = arith.constant 0 : i32
    %c0_i32_0 = arith.constant 0 : i32
    %c0_i32_1 = arith.constant 0 : i32
    return %arg0, %arg1, %c0_i32, %c0_i32_0 : i32, i32, i32, i32
  }
}

module attributes {stable_mosaic.version = 11 : i64} {
  func.func @_pwise_kernel(%arg0: i32, %arg1: i32, %arg2: memref<1x4x2048xf32, #tpu.memory_space<vmem>>, %arg3: memref<4x1xf32, #tpu.memory_space<vmem>>, %arg4: memref<4x1xf32, #tpu.memory_space<vmem>>, %arg5: memref<8x4xf32, #tpu.memory_space<vmem>>, %arg6: memref<8x1xf32, #tpu.memory_space<vmem>>, %arg7: memref<1x4x2048xf32, #tpu.memory_space<vmem>>, %arg8: memref<1x8x2048xf32, #tpu.memory_space<vmem>>, %arg9: memref<1x1x8x128xf32, #tpu.memory_space<vmem>>, %arg10: memref<1x1x8x128xf32, #tpu.memory_space<vmem>>) attributes {dimension_semantics = [#tpu.dimension_semantics<parallel>, #tpu.dimension_semantics<parallel>], iteration_bounds = array<i64: 2, 2>, scalar_prefetch = 0 : i64, scratch_operands = 0 : i64, tpu.core_type = #tpu.core_type<tc>, window_params = [{transform_indices = @transform_0, window_bounds = array<i64: 1, 4, 2048>}, {pipeline_mode = #tpu.pipeline_mode<synchronous>, transform_indices = @transform_1, window_bounds = array<i64: 4, 1>}, {pipeline_mode = #tpu.pipeline_mode<synchronous>, transform_indices = @transform_2, window_bounds = array<i64: 4, 1>}, {pipeline_mode = #tpu.pipeline_mode<synchronous>, transform_indices = @transform_3, window_bounds = array<i64: 8, 4>}, {pipeline_mode = #tpu.pipeline_mode<synchronous>, transform_indices = @transform_4, window_bounds = array<i64: 8, 1>}, {transform_indices = @transform_5, window_bounds = array<i64: 1, 4, 2048>}, {transform_indices = @transform_6, window_bounds = array<i64: 1, 8, 2048>}, {transform_indices = @transform_7, window_bounds = array<i64: 1, 1, 8, 128>}, {transform_indices = @transform_8, window_bounds = array<i64: 1, 1, 8, 128>}]} {
    %c0 = arith.constant 0 : index
    %c0_0 = arith.constant 0 : index
    %c0_1 = arith.constant 0 : index
    %0 = vector.load %arg2[%c0, %c0_0, %c0_1] : memref<1x4x2048xf32, #tpu.memory_space<vmem>>, vector<1x4x2048xf32>
    %1 = vector.shape_cast %0 : vector<1x4x2048xf32> to vector<4x2048xf32>
    %c0_2 = arith.constant 0 : index
    %c0_3 = arith.constant 0 : index
    %2 = vector.load %arg3[%c0_2, %c0_3] : memref<4x1xf32, #tpu.memory_space<vmem>>, vector<4x1xf32>
    %3 = vector.broadcast %2 : vector<4x1xf32> to vector<4x2048xf32>
    %4 = arith.mulf %1, %3 : vector<4x2048xf32>
    %c0_4 = arith.constant 0 : index
    %c0_5 = arith.constant 0 : index
    %5 = vector.load %arg4[%c0_4, %c0_5] : memref<4x1xf32, #tpu.memory_space<vmem>>, vector<4x1xf32>
    %6 = vector.broadcast %5 : vector<4x1xf32> to vector<4x2048xf32>
    %7 = arith.addf %4, %6 : vector<4x2048xf32>
    %cst = arith.constant 0.000000e+00 : f32
    %8 = vector.broadcast %cst : f32 to vector<4x2048xf32>
    %9 = arith.cmpf ogt, %7, %8 : vector<4x2048xf32>
    %cst_6 = arith.constant 0.00999999977 : f32
    %10 = vector.broadcast %cst_6 : f32 to vector<4x2048xf32>
    %11 = arith.mulf %10, %7 : vector<4x2048xf32>
    %12 = arith.select %9, %7, %11 : vector<4x2048xi1>, vector<4x2048xf32>
    %c0_7 = arith.constant 0 : index
    %c0_8 = arith.constant 0 : index
    %c0_9 = arith.constant 0 : index
    %13 = vector.load %arg7[%c0_7, %c0_8, %c0_9] : memref<1x4x2048xf32, #tpu.memory_space<vmem>>, vector<1x4x2048xf32>
    %14 = vector.shape_cast %13 : vector<1x4x2048xf32> to vector<4x2048xf32>
    %15 = vector.shape_cast %12 : vector<4x2048xf32> to vector<1x4x2048xf32>
    tpu.vector_store %arg7[%c0_7, %c0_8, %c0_9], %15 {strides = array<i32>} : memref<1x4x2048xf32, #tpu.memory_space<vmem>>, vector<1x4x2048xf32>,
    %c0_10 = arith.constant 0 : index
    %c0_11 = arith.constant 0 : index
    %16 = vector.load %arg5[%c0_10, %c0_11] : memref<8x4xf32, #tpu.memory_space<vmem>>, vector<8x4xf32>
    %cst_12 = arith.constant dense<0.000000e+00> : vector<8x2048xf32>
    %17 = tpu.matmul %16, %12, %cst_12 {dimension_numbers = #tpu.dot_dimension_numbers<[1], [0], [0], [1], [0, 0, 1, 1], [], []>} : vector<8x4xf32>, vector<4x2048xf32>, vector<8x2048xf32> -> vector<8x2048xf32>
    %c0_13 = arith.constant 0 : index
    %c0_14 = arith.constant 0 : index
    %18 = vector.load %arg6[%c0_13, %c0_14] : memref<8x1xf32, #tpu.memory_space<vmem>>, vector<8x1xf32>
    %19 = vector.broadcast %18 : vector<8x1xf32> to vector<8x2048xf32>
    %20 = arith.addf %17, %19 : vector<8x2048xf32>
    %c0_15 = arith.constant 0 : index
    %c0_16 = arith.constant 0 : index
    %c0_17 = arith.constant 0 : index
    %21 = vector.load %arg8[%c0_15, %c0_16, %c0_17] : memref<1x8x2048xf32, #tpu.memory_space<vmem>>, vector<1x8x2048xf32>
    %22 = vector.shape_cast %21 : vector<1x8x2048xf32> to vector<8x2048xf32>
    %23 = vector.shape_cast %20 : vector<8x2048xf32> to vector<1x8x2048xf32>
    tpu.vector_store %arg8[%c0_15, %c0_16, %c0_17], %23 {strides = array<i32>} : memref<1x8x2048xf32, #tpu.memory_space<vmem>>, vector<1x8x2048xf32>,
    %cst_18 = arith.constant dense<0.000000e+00> : vector<8xf32>
    %24 = vector.multi_reduction <add>, %20, %cst_18 [1] : vector<8x2048xf32> to vector<8xf32>
    %25 = vector.shape_cast %24 : vector<8xf32> to vector<8x1xf32>
    %26 = vector.shape_cast %25 : vector<8x1xf32> to vector<8x1xf32>
    %27 = vector.broadcast %26 : vector<8x1xf32> to vector<8x128xf32>
    %c0_19 = arith.constant 0 : index
    %c0_20 = arith.constant 0 : index
    %c0_21 = arith.constant 0 : index
    %c0_22 = arith.constant 0 : index
    %28 = vector.load %arg9[%c0_19, %c0_20, %c0_21, %c0_22] : memref<1x1x8x128xf32, #tpu.memory_space<vmem>>, vector<1x1x8x128xf32>
    %29 = vector.shape_cast %28 : vector<1x1x8x128xf32> to vector<8x128xf32>
    %30 = vector.shape_cast %27 : vector<8x128xf32> to vector<1x1x8x128xf32>
    tpu.vector_store %arg9[%c0_19, %c0_20, %c0_21, %c0_22], %30 {strides = array<i32>} : memref<1x1x8x128xf32, #tpu.memory_space<vmem>>, vector<1x1x8x128xf32>,
    %31 = arith.mulf %20, %20 : vector<8x2048xf32>
    %cst_23 = arith.constant dense<0.000000e+00> : vector<8xf32>
    %32 = vector.multi_reduction <add>, %31, %cst_23 [1] : vector<8x2048xf32> to vector<8xf32>
    %33 = vector.shape_cast %32 : vector<8xf32> to vector<8x1xf32>
    %34 = vector.shape_cast %33 : vector<8x1xf32> to vector<8x1xf32>
    %35 = vector.broadcast %34 : vector<8x1xf32> to vector<8x128xf32>
    %c0_24 = arith.constant 0 : index
    %c0_25 = arith.constant 0 : index
    %c0_26 = arith.constant 0 : index
    %c0_27 = arith.constant 0 : index
    %36 = vector.load %arg10[%c0_24, %c0_25, %c0_26, %c0_27] : memref<1x1x8x128xf32, #tpu.memory_space<vmem>>, vector<1x1x8x128xf32>
    %37 = vector.shape_cast %36 : vector<1x1x8x128xf32> to vector<8x128xf32>
    %38 = vector.shape_cast %35 : vector<8x128xf32> to vector<1x1x8x128xf32>
    tpu.vector_store %arg10[%c0_24, %c0_25, %c0_26, %c0_27], %38 {strides = array<i32>} : memref<1x1x8x128xf32, #tpu.memory_space<vmem>>, vector<1x1x8x128xf32>,
    return
  }
  func.func @transform_0(%arg0: i32, %arg1: i32) -> (i32, i32, i32) {
    %c0_i32 = arith.constant 0 : i32
    %c0_i32_0 = arith.constant 0 : i32
    return %arg0, %c0_i32, %arg1 : i32, i32, i32
  }
  func.func @transform_1(%arg0: i32, %arg1: i32) -> (i32, i32) {
    %c0_i32 = arith.constant 0 : i32
    %c0_i32_0 = arith.constant 0 : i32
    %c0_i32_1 = arith.constant 0 : i32
    return %c0_i32, %c0_i32_0 : i32, i32
  }
  func.func @transform_2(%arg0: i32, %arg1: i32) -> (i32, i32) {
    %c0_i32 = arith.constant 0 : i32
    %c0_i32_0 = arith.constant 0 : i32
    %c0_i32_1 = arith.constant 0 : i32
    return %c0_i32, %c0_i32_0 : i32, i32
  }
  func.func @transform_3(%arg0: i32, %arg1: i32) -> (i32, i32) {
    %c0_i32 = arith.constant 0 : i32
    %c0_i32_0 = arith.constant 0 : i32
    %c0_i32_1 = arith.constant 0 : i32
    return %c0_i32, %c0_i32_0 : i32, i32
  }
  func.func @transform_4(%arg0: i32, %arg1: i32) -> (i32, i32) {
    %c0_i32 = arith.constant 0 : i32
    %c0_i32_0 = arith.constant 0 : i32
    %c0_i32_1 = arith.constant 0 : i32
    return %c0_i32, %c0_i32_0 : i32, i32
  }
  func.func @transform_5(%arg0: i32, %arg1: i32) -> (i32, i32, i32) {
    %c0_i32 = arith.constant 0 : i32
    %c0_i32_0 = arith.constant 0 : i32
    return %arg0, %c0_i32, %arg1 : i32, i32, i32
  }
  func.func @transform_6(%arg0: i32, %arg1: i32) -> (i32, i32, i32) {
    %c0_i32 = arith.constant 0 : i32
    %c0_i32_0 = arith.constant 0 : i32
    return %arg0, %c0_i32, %arg1 : i32, i32, i32
  }
  func.func @transform_7(%arg0: i32, %arg1: i32) -> (i32, i32, i32, i32) {
    %c0_i32 = arith.constant 0 : i32
    %c0_i32_0 = arith.constant 0 : i32
    %c0_i32_1 = arith.constant 0 : i32
    return %arg0, %arg1, %c0_i32, %c0_i32_0 : i32, i32, i32, i32
  }
  func.func @transform_8(%arg0: i32, %arg1: i32) -> (i32, i32, i32, i32) {
    %c0_i32 = arith.constant 0 : i32
    %c0_i32_0 = arith.constant 0 : i32
    %c0_i32_1 = arith.constant 0 : i32
    return %arg0, %arg1, %c0_i32, %c0_i32_0 : i32, i32, i32, i32
  }
}

module attributes {stable_mosaic.version = 11 : i64} {
  func.func @_bn_act_kernel(%arg0: i32, %arg1: i32, %arg2: memref<1x8x2048xf32, #tpu.memory_space<vmem>>, %arg3: memref<8x1xf32, #tpu.memory_space<vmem>>, %arg4: memref<8x1xf32, #tpu.memory_space<vmem>>, %arg5: memref<1x8x2048xf32, #tpu.memory_space<vmem>>) attributes {dimension_semantics = [#tpu.dimension_semantics<parallel>, #tpu.dimension_semantics<parallel>], iteration_bounds = array<i64: 2, 2>, scalar_prefetch = 0 : i64, scratch_operands = 0 : i64, tpu.core_type = #tpu.core_type<tc>, window_params = [{transform_indices = @transform_0, window_bounds = array<i64: 1, 8, 2048>}, {pipeline_mode = #tpu.pipeline_mode<synchronous>, transform_indices = @transform_1, window_bounds = array<i64: 8, 1>}, {pipeline_mode = #tpu.pipeline_mode<synchronous>, transform_indices = @transform_2, window_bounds = array<i64: 8, 1>}, {transform_indices = @transform_3, window_bounds = array<i64: 1, 8, 2048>}]} {
    %c0 = arith.constant 0 : index
    %c0_0 = arith.constant 0 : index
    %c0_1 = arith.constant 0 : index
    %0 = vector.load %arg2[%c0, %c0_0, %c0_1] : memref<1x8x2048xf32, #tpu.memory_space<vmem>>, vector<1x8x2048xf32>
    %1 = vector.shape_cast %0 : vector<1x8x2048xf32> to vector<8x2048xf32>
    %c0_2 = arith.constant 0 : index
    %c0_3 = arith.constant 0 : index
    %2 = vector.load %arg3[%c0_2, %c0_3] : memref<8x1xf32, #tpu.memory_space<vmem>>, vector<8x1xf32>
    %3 = vector.broadcast %2 : vector<8x1xf32> to vector<8x2048xf32>
    %4 = arith.mulf %1, %3 : vector<8x2048xf32>
    %c0_4 = arith.constant 0 : index
    %c0_5 = arith.constant 0 : index
    %5 = vector.load %arg4[%c0_4, %c0_5] : memref<8x1xf32, #tpu.memory_space<vmem>>, vector<8x1xf32>
    %6 = vector.broadcast %5 : vector<8x1xf32> to vector<8x2048xf32>
    %7 = arith.addf %4, %6 : vector<8x2048xf32>
    %cst = arith.constant 0.000000e+00 : f32
    %8 = vector.broadcast %cst : f32 to vector<8x2048xf32>
    %9 = arith.cmpf ogt, %7, %8 : vector<8x2048xf32>
    %cst_6 = arith.constant 0.00999999977 : f32
    %10 = vector.broadcast %cst_6 : f32 to vector<8x2048xf32>
    %11 = arith.mulf %10, %7 : vector<8x2048xf32>
    %12 = arith.select %9, %7, %11 : vector<8x2048xi1>, vector<8x2048xf32>
    %c0_7 = arith.constant 0 : index
    %c0_8 = arith.constant 0 : index
    %c0_9 = arith.constant 0 : index
    %13 = vector.load %arg5[%c0_7, %c0_8, %c0_9] : memref<1x8x2048xf32, #tpu.memory_space<vmem>>, vector<1x8x2048xf32>
    %14 = vector.shape_cast %13 : vector<1x8x2048xf32> to vector<8x2048xf32>
    %15 = vector.shape_cast %12 : vector<8x2048xf32> to vector<1x8x2048xf32>
    tpu.vector_store %arg5[%c0_7, %c0_8, %c0_9], %15 {strides = array<i32>} : memref<1x8x2048xf32, #tpu.memory_space<vmem>>, vector<1x8x2048xf32>,
    return
  }
  func.func @transform_0(%arg0: i32, %arg1: i32) -> (i32, i32, i32) {
    %c0_i32 = arith.constant 0 : i32
    %c0_i32_0 = arith.constant 0 : i32
    return %arg0, %c0_i32, %arg1 : i32, i32, i32
  }
  func.func @transform_1(%arg0: i32, %arg1: i32) -> (i32, i32) {
    %c0_i32 = arith.constant 0 : i32
    %c0_i32_0 = arith.constant 0 : i32
    %c0_i32_1 = arith.constant 0 : i32
    return %c0_i32, %c0_i32_0 : i32, i32
  }
  func.func @transform_2(%arg0: i32, %arg1: i32) -> (i32, i32) {
    %c0_i32 = arith.constant 0 : i32
    %c0_i32_0 = arith.constant 0 : i32
    %c0_i32_1 = arith.constant 0 : i32
    return %c0_i32, %c0_i32_0 : i32, i32
  }
  func.func @transform_3(%arg0: i32, %arg1: i32) -> (i32, i32, i32) {
    %c0_i32 = arith.constant 0 : i32
    %c0_i32_0 = arith.constant 0 : i32
    return %arg0, %c0_i32, %arg1 : i32, i32, i32
  }
}

</mosaic_0001>

<llo_original>
// kernel: unet_upsample.4
$region0: #{unet_upsample.4}
  #allocation0 [shape = 'u32[]', space=smem, size = 0x4, offset = 0x4, fixed_abs, tag = 'smem constant byte address 0x4 - core index']
  #allocation1 [shape = 'u32[144,128]{1,0:T(1,128)}', space=vmem, size = 0x12000, scoped, tag = 'internal scratch']
  %s0 = inlined_call_operand.vmem [shape: f32[2,4,4096], index: 0, kind: input, shape index: {}]
  %s1 = inlined_call_operand.vmem [shape: f32[4,1], index: 1, kind: input, shape index: {}]
  %s2 = inlined_call_operand.vmem [shape: f32[4,1], index: 2, kind: input, shape index: {}]
  %s3 = inlined_call_operand.vmem [shape: f32[8,4], index: 3, kind: input, shape index: {}]
  %s4 = inlined_call_operand.vmem [shape: f32[8,1], index: 4, kind: input, shape index: {}]
  %s5 = inlined_call_operand.vmem [shape: f32[2,4,4096], index: 5, kind: output, shape index: {0}]
  %s6 = inlined_call_operand.vmem [shape: f32[2,8,4096], index: 6, kind: output, shape index: {1}]
  %s7 = inlined_call_operand.vmem [shape: f32[2,2,8,128], index: 7, kind: output, shape index: {2}]
  %s8 = inlined_call_operand.vmem [shape: f32[2,2,8,128], index: 8, kind: output, shape index: {3}]
  %9 = xla_tuple %s5, %s6, %s7, %s8
  %s10 = sld [smem:[#allocation0]]
  $region77: #{unet_upsample.4} parent=0
    _
  %s12 = ssub.s32 1, %s10
  %s13 = scalar_select 0, %s12, %s10
  loop: start=0, step=1, limit=6
  $region2: #{unet_upsample.4} parent=0 // loop_pre_header
    _
  $region3: #{unet_upsample.4} parent=0 // loop_header
    %s15 = sphi 0, %s19
    %p16 = scmp.ge.s32.totalorder %s15, 6
    %s22 = sphi 0, %s34
    %s23 = sphi 0, %s30
    %s24 = sphi 0, %s22
    %s25 = sphi 0, %s23
    %s26 = sphi 0, %s24
    %s27 = sphi 0, %s25
    %s39 = sphi 0, %s41
    %s42 = sphi 0, %s39
    %s43 = sphi 0, %s42
    %s59 = sphi 0, %s43
    %s63 = sphi 0, %s63
    %s65 = sphi 0, %s63
    %s66 = sphi 0, %s65
    %s80 = sphi 0, %s66
    %s84 = sphi 0, %s84
    %s86 = sphi 0, %s84
    %s87 = sphi 0, %s86
    %s101 = sphi 0, %s87
    %s105 = sphi 0, %s105
    %s107 = sphi 0, %s105
    %s108 = sphi 0, %s107
    %s122 = sphi 0, %s108
    %s126 = sphi 0, %s126
    %s128 = sphi 0, %s126
    %s129 = sphi 0, %s128
    %s143 = sphi 0, %s129
    %s151 = sphi 0, %s153
    %s154 = sphi 0, %s151
    %s155 = sphi 0, %s154
    %s171 = sphi 0, %s155
    %s179 = sphi 0, %s181
    %s182 = sphi 0, %s179
    %s183 = sphi 0, %s182
    %s199 = sphi 0, %s183
    %s207 = sphi 0, %s209
    %s210 = sphi 0, %s207
    %s211 = sphi 0, %s210
    %s227 = sphi 0, %s211
    %s235 = sphi 0, %s237
    %s238 = sphi 0, %s235
    %s239 = sphi 0, %s238
    %s255 = sphi 0, %s239
  $region4: #{unet_upsample.4} parent=0 // loop_header_branch
    %18 = sbr.rel (%p16) target = $region8
  $region5: #{unet_upsample.4} parent=0 // loop_body
    %s20 = ssub.s32 %s15, 1
    %s21 = ssub.s32 %s15, 2
    %s28 = sadd.s32 1, %s23
    %p29 = scmp.ge.s32.totalorder %s28, 2
    %s30 = scalar_select %p29, 0, %s28
    %s31 = sadd.s32 1, %s22
    %s32 = scalar_select %p29, %s31, %s22
    %p33 = scmp.ge.s32.totalorder %s32, 2
    %s34 = scalar_select %p33, 0, %s32
    %s35 = ssub.s32 %s22, %s34
    %s36 = ssub.s32 %s23, %s30
    %s37 = sor.u32 %s35, %s36
    %p38 = scmp.eq.s32.totalorder %s37, 0
    %s40 = sadd.s32 %s39, 1
    %s41 = scalar_select %p38, %s39, %s40
    %p44 = pneg %p38
    %p45 = scmp.eq.s32.totalorder %s15, 3
    %p46 = por %p44, %p45
    %p47 = scmp.ne.s32.totalorder %s39, %s42
    %p48 = scmp.eq.s32.totalorder %s15, 0
    %p49 = por %p47, %p48
    %p50 = scmp.ne.s32.totalorder %s39, %s42
    %p51 = scmp.eq.s32.totalorder %s20, 3
    %p52 = por %p50, %p51
    %p53 = scmp.ne.s32.totalorder %s42, %s43
    %p54 = scmp.eq.s32.totalorder %s20, 0
    %p55 = por %p53, %p54
    %p56 = scmp.ne.s32.totalorder %s42, %s43
    %p57 = scmp.eq.s32.totalorder %s21, 3
    %p58 = por %p56, %p57
    %p60 = scmp.ne.s32.totalorder %s43, %s59
    %p61 = scmp.eq.s32.totalorder %s21, 0
    %p62 = por %p60, %p61
    %s64 = sadd.s32 %s63, 1
    %p67 = scmp.eq.s32.totalorder %s15, 3
    %p68 = scmp.ne.s32.totalorder %s63, %s65
    %p69 = scmp.eq.s32.totalorder %s15, 0
    %p70 = por %p68, %p69
    %p71 = scmp.ne.s32.totalorder %s63, %s65
    %p72 = scmp.eq.s32.totalorder %s20, 3
    %p73 = por %p71, %p72
    %p74 = scmp.ne.s32.totalorder %s65, %s66
    %p75 = scmp.eq.s32.totalorder %s20, 0
    %p76 = por %p74, %p75
    %p77 = scmp.ne.s32.totalorder %s65, %s66
    %p78 = scmp.eq.s32.totalorder %s21, 3
    %p79 = por %p77, %p78
    %p81 = scmp.ne.s32.totalorder %s66, %s80
    %p82 = scmp.eq.s32.totalorder %s21, 0
    %p83 = por %p81, %p82
    %s85 = sadd.s32 %s84, 1
    %p88 = scmp.eq.s32.totalorder %s15, 3
    %p89 = scmp.ne.s32.totalorder %s84, %s86
    %p90 = scmp.eq.s32.totalorder %s15, 0
    %p91 = por %p89, %p90
    %p92 = scmp.ne.s32.totalorder %s84, %s86
    %p93 = scmp.eq.s32.totalorder %s20, 3
    %p94 = por %p92, %p93
    %p95 = scmp.ne.s32.totalorder %s86, %s87
    %p96 = scmp.eq.s32.totalorder %s20, 0
    %p97 = por %p95, %p96
    %p98 = scmp.ne.s32.totalorder %s86, %s87
    %p99 = scmp.eq.s32.totalorder %s21, 3
    %p100 = por %p98, %p99
    %p102 = scmp.ne.s32.totalorder %s87, %s101
    %p103 = scmp.eq.s32.totalorder %s21, 0
    %p104 = por %p102, %p103
    %s106 = sadd.s32 %s105, 1
    %p109 = scmp.eq.s32.totalorder %s15, 3
    %p110 = scmp.ne.s32.totalorder %s105, %s107
    %p111 = scmp.eq.s32.totalorder %s15, 0
    %p112 = por %p110, %p111
    %p113 = scmp.ne.s32.totalorder %s105, %s107
    %p114 = scmp.eq.s32.totalorder %s20, 3
    %p115 = por %p113, %p114
    %p116 = scmp.ne.s32.totalorder %s107, %s108
    %p117 = scmp.eq.s32.totalorder %s20, 0
    %p118 = por %p116, %p117
    %p119 = scmp.ne.s32.totalorder %s107, %s108
    %p120 = scmp.eq.s32.totalorder %s21, 3
    %p121 = por %p119, %p120
    %p123 = scmp.ne.s32.totalorder %s108, %s122
    %p124 = scmp.eq.s32.totalorder %s21, 0
    %p125 = por %p123, %p124
    %s127 = sadd.s32 %s126, 1
    %p130 = scmp.eq.s32.totalorder %s15, 3
    %p131 = scmp.ne.s32.totalorder %s126, %s128
    %p132 = scmp.eq.s32.totalorder %s15, 0
    %p133 = por %p131, %p132
    %p134 = scmp.ne.s32.totalorder %s126, %s128
    %p135 = scmp.eq.s32.totalorder %s20, 3
    %p136 = por %p134, %p135
    %p137 = scmp.ne.s32.totalorder %s128, %s129
    %p138 = scmp.eq.s32.totalorder %s20, 0
    %p139 = por %p137, %p138
    %p140 = scmp.ne.s32.totalorder %s128, %s129
    %p141 = scmp.eq.s32.totalorder %s21, 3
    %p142 = por %p140, %p141
    %p144 = scmp.ne.s32.totalorder %s129, %s143
    %p145 = scmp.eq.s32.totalorder %s21, 0
    %p146 = por %p144, %p145
    %s147 = ssub.s32 %s22, %s34
    %s148 = ssub.s32 %s23, %s30
    %s149 = sor.u32 %s147, %s148
    %p150 = scmp.eq.s32.totalorder %s149, 0
    %s152 = sadd.s32 %s151, 1
    %s153 = scalar_select %p150, %s151, %s152
    %p156 = pneg %p150
    %p157 = scmp.eq.s32.totalorder %s15, 3
    %p158 = por %p156, %p157
    %p159 = scmp.ne.s32.totalorder %s151, %s154
    %p160 = scmp.eq.s32.totalorder %s15, 0
    %p161 = por %p159, %p160
    %p162 = scmp.ne.s32.totalorder %s151, %s154
    %p163 = scmp.eq.s32.totalorder %s20, 3
    %p164 = por %p162, %p163
    %p165 = scmp.ne.s32.totalorder %s154, %s155
    %p166 = scmp.eq.s32.totalorder %s20, 0
    %p167 = por %p165, %p166
    %p168 = scmp.ne.s32.totalorder %s154, %s155
    %p169 = scmp.eq.s32.totalorder %s21, 3
    %p170 = por %p168, %p169
    %p172 = scmp.ne.s32.totalorder %s155, %s171
    %p173 = scmp.eq.s32.totalorder %s21, 0
    %p174 = por %p172, %p173
    %s175 = ssub.s32 %s22, %s34
    %s176 = ssub.s32 %s23, %s30
    %s177 = sor.u32 %s175, %s176
    %p178 = scmp.eq.s32.totalorder %s177, 0
    %s180 = sadd.s32 %s179, 1
    %s181 = scalar_select %p178, %s179, %s180
    %p184 = pneg %p178
    %p185 = scmp.eq.s32.totalorder %s15, 3
    %p186 = por %p184, %p185
    %p187 = scmp.ne.s32.totalorder %s179, %s182
    %p188 = scmp.eq.s32.totalorder %s15, 0
    %p189 = por %p187, %p188
    %p190 = scmp.ne.s32.totalorder %s179, %s182
    %p191 = scmp.eq.s32.totalorder %s20, 3
    %p192 = por %p190, %p191
    %p193 = scmp.ne.s32.totalorder %s182, %s183
    %p194 = scmp.eq.s32.totalorder %s20, 0
    %p195 = por %p193, %p194
    %p196 = scmp.ne.s32.totalorder %s182, %s183
    %p197 = scmp.eq.s32.totalorder %s21, 3
    %p198 = por %p196, %p197
    %p200 = scmp.ne.s32.totalorder %s183, %s199
    %p201 = scmp.eq.s32.totalorder %s21, 0
    %p202 = por %p200, %p201
    %s203 = ssub.s32 %s22, %s34
    %s204 = ssub.s32 %s23, %s30
    %s205 = sor.u32 %s203, %s204
    %p206 = scmp.eq.s32.totalorder %s205, 0
    %s208 = sadd.s32 %s207, 1
    %s209 = scalar_select %p206, %s207, %s208
    %p212 = pneg %p206
    %p213 = scmp.eq.s32.totalorder %s15, 3
    %p214 = por %p212, %p213
    %p215 = scmp.ne.s32.totalorder %s207, %s210
    %p216 = scmp.eq.s32.totalorder %s15, 0
    %p217 = por %p215, %p216
    %p218 = scmp.ne.s32.totalorder %s207, %s210
    %p219 = scmp.eq.s32.totalorder %s20, 3
    %p220 = por %p218, %p219
    %p221 = scmp.ne.s32.totalorder %s210, %s211
    %p222 = scmp.eq.s32.totalorder %s20, 0
    %p223 = por %p221, %p222
    %p224 = scmp.ne.s32.totalorder %s210, %s211
    %p225 = scmp.eq.s32.totalorder %s21, 3
    %p226 = por %p224, %p225
    %p228 = scmp.ne.s32.totalorder %s211, %s227
    %p229 = scmp.eq.s32.totalorder %s21, 0
    %p230 = por %p228, %p229
    %s231 = ssub.s32 %s22, %s34
    %s232 = ssub.s32 %s23, %s30
    %s233 = sor.u32 %s231, %s232
    %p234 = scmp.eq.s32.totalorder %s233, 0
    %s236 = sadd.s32 %s235, 1
    %s237 = scalar_select %p234, %s235, %s236
    %p240 = pneg %p234
    %p241 = scmp.eq.s32.totalorder %s15, 3
    %p242 = por %p240, %p241
    %p243 = scmp.ne.s32.totalorder %s235, %s238
    %p244 = scmp.eq.s32.totalorder %s15, 0
    %p245 = por %p243, %p244
    %p246 = scmp.ne.s32.totalorder %s235, %s238
    %p247 = scmp.eq.s32.totalorder %s20, 3
    %p248 = por %p246, %p247
    %p249 = scmp.ne.s32.totalorder %s238, %s239
    %p250 = scmp.eq.s32.totalorder %s20, 0
    %p251 = por %p249, %p250
    %p252 = scmp.ne.s32.totalorder %s238, %s239
    %p253 = scmp.eq.s32.totalorder %s21, 3
    %p254 = por %p252, %p253
    %p256 = scmp.ne.s32.totalorder %s239, %s255
    %p257 = scmp.eq.s32.totalorder %s21, 0
    %p258 = por %p256, %p257
    %p259 = scmp.le.s32.totalorder 1, %s15
    %p260 = scmp.lt.s32.totalorder %s15, 5
    %p261 = pnand %p259, %p260
    %p262 = pneg %p261
    // Predicated region
    $region9: #{unet_upsample.4} parent=5 // pred_check
      _
    $region10: #{unet_upsample.4} parent=5 // pred_check_branch
      %264 = sbr.rel (%p261) target = $region12
    $region11: #{unet_upsample.4} parent=5 // pred_region
      %s265 = ssub.s32 %s15, 1
      // Predicated region
      $region13: #{unet_upsample.4} parent=11 // pred_check
        %p266 = pneg %p76
      $region14: #{unet_upsample.4} parent=11 // pred_check_branch
        %268 = sbr.rel (%p266) target = $region16
      $region15: #{unet_upsample.4} parent=11 // pred_region
        _
      $region16: #{unet_upsample.4} parent=11 // pred_fallthru
        _
      // Predicated region
      $region17: #{unet_upsample.4} parent=11 // pred_check
        %p269 = pneg %p97
      $region18: #{unet_upsample.4} parent=11 // pred_check_branch
        %271 = sbr.rel (%p269) target = $region20
      $region19: #{unet_upsample.4} parent=11 // pred_region
        _
      $region20: #{unet_upsample.4} parent=11 // pred_fallthru
        _
      // Predicated region
      $region21: #{unet_upsample.4} parent=11 // pred_check
        %p272 = pneg %p118
      $region22: #{unet_upsample.4} parent=11 // pred_check_branch
        %274 = sbr.rel (%p272) target = $region24
      $region23: #{unet_upsample.4} parent=11 // pred_region
        _
      $region24: #{unet_upsample.4} parent=11 // pred_fallthru
        _
      // Predicated region
      $region25: #{unet_upsample.4} parent=11 // pred_check
        %p275 = pneg %p139
      $region26: #{unet_upsample.4} parent=11 // pred_check_branch
        %277 = sbr.rel (%p275) target = $region28
      $region27: #{unet_upsample.4} parent=11 // pred_region
        _
      $region28: #{unet_upsample.4} parent=11 // pred_fallthru
        _
    $region12: #{unet_upsample.4} parent=5 // pred_fallthru
      _
    %p278 = scmp.lt.s32.totalorder %s15, 4
    // Predicated region
    $region29: #{unet_upsample.4} parent=5 // pred_check
      %p279 = pneg %p278
    $region30: #{unet_upsample.4} parent=5 // pred_check_branch
      %281 = sbr.rel (%p279) target = $region32
    $region31: #{unet_upsample.4} parent=5 // pred_region
      // Predicated region
      $region33: #{unet_upsample.4} parent=31 // pred_check
        %p282 = pneg %p49
      $region34: #{unet_upsample.4} parent=31 // pred_check_branch
        %284 = sbr.rel (%p282) target = $region36
      $region35: #{unet_upsample.4} parent=31 // pred_region
        %s285 = smul.u32 16, %s23
        %p286 = scmp.lt.s32.totalorder %s22, 1
        %s287 = scalar_select %p286, %s22, 1
        %p288 = scmp.lt.s32.totalorder %s285, 31
        %s289 = scalar_select %p288, %s285, 31
        %s290 = smul.addr %s287, 32
        %s291 = sadd.s32 %s289, %s290
        %s292 = smul.addr %s291, 4
        %s293 = scalar_lea.vmem %s0, %s292
        %s294 = smul.u32 16, %s23
      $region36: #{unet_upsample.4} parent=31 // pred_fallthru
        _
    $region32: #{unet_upsample.4} parent=5 // pred_fallthru
      _
    %p295 = scmp.le.s32.totalorder 1, %s15
    %p296 = scmp.lt.s32.totalorder %s15, 5
    %p297 = pnand %p295, %p296
    %p298 = pneg %p297
    // Predicated region
    $region37: #{unet_upsample.4} parent=5 // pred_check
      _
    $region38: #{unet_upsample.4} parent=5 // pred_check_branch
      %300 = sbr.rel (%p297) target = $region40
    $region39: #{unet_upsample.4} parent=5 // pred_region
      %s301 = ssub.s32 %s15, 1
      %s302 = smul.u32 16, %s25
      %p303 = scmp.lt.s32.totalorder %s24, 1
      %s304 = scalar_select %p303, %s24, 1
      %p305 = scmp.lt.s32.totalorder %s302, 31
      %s306 = scalar_select %p305, %s302, 31
      %s307 = smul.addr %s304, 32
      %s308 = sadd.s32 %s306, %s307
      %s309 = smul.addr %s308, 4
      %s310 = scalar_lea.vmem %s0, %s309
      %p311 = pneg %p55
      %p312 = pneg %p52
      %p313 = pneg %p76
      %p314 = pneg %p73
      %p315 = pneg %p97
      %p316 = pneg %p94
      %p317 = pneg %p118
      %p318 = pneg %p115
      %p319 = pneg %p139
      %p320 = pneg %p136
      %p321 = pneg %p167
      %p322 = pneg %p164
      %s323 = smul.u32 16, %s25
      %p324 = scmp.lt.s32.totalorder %s24, 1
      %s325 = scalar_select %p324, %s24, 1
      %p326 = scmp.lt.s32.totalorder %s323, 31
      %s327 = scalar_select %p326, %s323, 31
      %s328 = smul.addr %s325, 32
      %s329 = sadd.s32 %s327, %s328
      %s330 = smul.addr %s329, 4
      %s331 = scalar_lea.vmem %s5, %s330
      %p332 = pneg %p195
      %p333 = pneg %p192
      %s334 = smul.u32 16, %s25
      %p335 = scmp.lt.s32.totalorder %s24, 1
      %s336 = scalar_select %p335, %s24, 1
      %p337 = scmp.lt.s32.totalorder %s334, 31
      %s338 = scalar_select %p337, %s334, 31
      %s339 = smul.addr %s336, 32
      %s340 = sadd.s32 %s338, %s339
      %s341 = smul.addr %s340, 8
      %s342 = scalar_lea.vmem %s6, %s341
      %p343 = pneg %p223
      %p344 = pneg %p220
      %p345 = scmp.lt.s32.totalorder %s24, 1
      %s346 = scalar_select %p345, %s24, 1
      %p347 = scmp.lt.s32.totalorder %s25, 1
      %s348 = scalar_select %p347, %s25, 1
      %s349 = smul.addr %s346, 2
      %s350 = sadd.s32 %s348, %s349
      %s351 = smul.addr %s350, 8
      %s352 = scalar_lea.vmem %s7, %s351
      %p353 = pneg %p251
      %p354 = pneg %p248
      %p355 = scmp.lt.s32.totalorder %s24, 1
      %s356 = scalar_select %p355, %s24, 1
      %p357 = scmp.lt.s32.totalorder %s25, 1
      %s358 = scalar_select %p357, %s25, 1
      %s359 = smul.addr %s356, 2
      %s360 = sadd.s32 %s358, %s359
      %s361 = smul.addr %s360, 8
      %s362 = scalar_lea.vmem %s8, %s361
      %s363 = smul.u32 16, %s25
      %p364 = scmp.lt.s32.totalorder %s24, 1
      %s365 = scalar_select %p364, %s24, 1
      %p366 = scmp.lt.s32.totalorder %s363, 31
      %s367 = scalar_select %p366, %s363, 31
      %s368 = smul.addr %s365, 32
      %s369 = sadd.s32 %s367, %s368
      %s370 = smul.addr %s369, 4
      %s371 = scalar_lea.vmem %s0, %s370
      %s372 = smul.u32 16, %s25
      %s373 = smul.u32 16, %s25
      %p374 = scmp.lt.s32.totalorder %s24, 1
      %s375 = scalar_select %p374, %s24, 1
      %p376 = scmp.lt.s32.totalorder %s373, 31
      %s377 = scalar_select %p376, %s373, 31
      %s378 = smul.addr %s375, 32
      %s379 = sadd.s32 %s377, %s378
      %s380 = smul.addr %s379, 4
      %s381 = scalar_lea.vmem %s5, %s380
      %s382 = smul.u32 16, %s25
      %s383 = smul.u32 16, %s25
      %p384 = scmp.lt.s32.totalorder %s24, 1
      %s385 = scalar_select %p384, %s24, 1
      %p386 = scmp.lt.s32.totalorder %s383, 31
      %s387 = scalar_select %p386, %s383, 31
      %s388 = smul.addr %s385, 32
      %s389 = sadd.s32 %s387, %s388
      %s390 = smul.addr %s389, 8
      %s391 = scalar_lea.vmem %s6, %s390
      %s392 = smul.u32 16, %s25
      %p393 = scmp.lt.s32.totalorder %s24, 1
      %s394 = scalar_select %p393, %s24, 1
      %p395 = scmp.lt.s32.totalorder %s25, 1
      %s396 = scalar_select %p395, %s25, 1
      %s397 = smul.addr %s394, 2
      %s398 = sadd.s32 %s396, %s397
      %s399 = smul.addr %s398, 8
      %s400 = scalar_lea.vmem %s7, %s399
      %p401 = scmp.lt.s32.totalorder %s24, 1
      %s402 = scalar_select %p401, %s24, 1
      %p403 = scmp.lt.s32.totalorder %s25, 1
      %s404 = scalar_select %p403, %s25, 1
      %s405 = smul.addr %s402, 2
      %s406 = sadd.s32 %s404, %s405
      %s407 = smul.addr %s406, 8
      %s408 = scalar_lea.vmem %s8, %s407
      %v409 = vld [vmem:[%s371] sm:$0xff]
      %v410 = vld [vmem:[%s371 + $0x8] sm:$0xff]
      %v411 = vld [vmem:[%s371 + $0x10] sm:$0xff]
      %v412 = vld [vmem:[%s371 + $0x18] sm:$0xff]
      %v413 = vld [vmem:[%s371 + $0x20] sm:$0xff]
      %v414 = vld [vmem:[%s371 + $0x28] sm:$0xff]
      %v415 = vld [vmem:[%s371 + $0x30] sm:$0xff]
      %v416 = vld [vmem:[%s371 + $0x38] sm:$0xff]
      %v417 = vld [vmem:[%s1] sm:$0xf]
      %419 = vset.pattern.permute.xlu0 0
      %420 = vperm.xlu0 %419, %v417
      %v421 = vpop.permute.xlu0 %420
      %v423 = vunpack.c.l.s4 839922192
      %v424 = vunpack.c.0.s8 %v423
      %v425 = vlaneseq
      %v426 = vshrl.u32 %v425, 7
      %v427 = vsub.s32 %v424, %v426
      %v428 = vrot.slane %v421, %v427
      %v430 = vmul.f32 %v409, %v428
      %v431 = vmul.f32 %v410, %v428
      %v432 = vmul.f32 %v411, %v428
      %v433 = vmul.f32 %v412, %v428
      %v434 = vmul.f32 %v413, %v428
      %v435 = vmul.f32 %v414, %v428
      %v436 = vmul.f32 %v415, %v428
      %v437 = vmul.f32 %v416, %v428
      %v438 = vld [vmem:[%s2] sm:$0xf]
      %440 = vset.pattern.permute.xlu0 0
      %441 = vperm.xlu0 %440, %v438
      %v442 = vpop.permute.xlu0 %441
      %v444 = vunpack.c.l.s4 839922192
      %v445 = vunpack.c.0.s8 %v444
      %v446 = vlaneseq
      %v447 = vshrl.u32 %v446, 7
      %v448 = vsub.s32 %v445, %v447
      %v449 = vrot.slane %v442, %v448
      %v451 = vadd.f32 %v430, %v449
      %v452 = vadd.f32 %v431, %v449
      %v453 = vadd.f32 %v432, %v449
      %v454 = vadd.f32 %v433, %v449
      %v455 = vadd.f32 %v434, %v449
      %v456 = vadd.f32 %v435, %v449
      %v457 = vadd.f32 %v436, %v449
      %v458 = vadd.f32 %v437, %v449
      %vm459 = vcmp.gt.f32.partialorder %v451, 0.0
      %vm460 = vcmp.gt.f32.partialorder %v452, 0.0
      %vm461 = vcmp.gt.f32.partialorder %v453, 0.0
      %vm462 = vcmp.gt.f32.partialorder %v454, 0.0
      %vm463 = vcmp.gt.f32.partialorder %v455, 0.0
      %vm464 = vcmp.gt.f32.partialorder %v456, 0.0
      %vm465 = vcmp.gt.f32.partialorder %v457, 0.0
      %vm466 = vcmp.gt.f32.partialorder %v458, 0.0
      %v467 = vmul.f32 %v451, 0.01
      %v468 = vmul.f32 %v452, 0.01
      %v469 = vmul.f32 %v453, 0.01
      %v470 = vmul.f32 %v454, 0.01
      %v471 = vmul.f32 %v455, 0.01
      %v472 = vmul.f32 %v456, 0.01
      %v473 = vmul.f32 %v457, 0.01
      %v474 = vmul.f32 %v458, 0.01
      %v475 = vsel %vm459, %v451, %v467
      %v476 = vsel %vm460, %v452, %v468
      %v477 = vsel %vm461, %v453, %v469
      %v478 = vsel %vm462, %v454, %v470
      %v479 = vsel %vm463, %v455, %v471
      %v480 = vsel %vm464, %v456, %v472
      %v481 = vsel %vm465, %v457, %v473
      %v482 = vsel %vm466, %v458, %v474
      %483 = vst [vmem:[%s381] sm:$0xff] %v475
      %484 = vst [vmem:[%s381 + $0x8] sm:$0xff] %v476
      %485 = vst [vmem:[%s381 + $0x10] sm:$0xff] %v477
      %486 = vst [vmem:[%s381 + $0x18] sm:$0xff] %v478
      %487 = vst [vmem:[%s381 + $0x20] sm:$0xff] %v479
      %488 = vst [vmem:[%s381 + $0x28] sm:$0xff] %v480
      %489 = vst [vmem:[%s381 + $0x30] sm:$0xff] %v481
      %490 = vst [vmem:[%s381 + $0x38] sm:$0xff] %v482
      %v491 = vld [vmem:[%s3] sm:$0xff]
      %v492 = vld [vmem:[%s4] sm:$0xff]
      %494 = vset.pattern.permute.xlu0 0
      %495 = vperm.xlu0 %494, %v492
      %v496 = vpop.permute.xlu0 %495
      %v506 = vcombine.high %v475, %v475
      %v507 = vcombine.high %v476, %v476
      %v508 = vcombine.high %v477, %v477
      %v509 = vcombine.high %v478, %v478
      %v510 = vcombine.high %v479, %v479
      %v511 = vcombine.high %v480, %v480
      %v512 = vcombine.high %v481, %v481
      %v513 = vcombine.high %v482, %v482
      %vm514 = vcmask 31744
      %v516 = vsel %vm514, %v491, 0
      %vm518 = vcmask 1043456
      %v519 = vsel %vm518, %v475, 0
      %v521 = vsel %vm518, %v506, 0
      %v523 = vsel %vm518, %v476, 0
      %v525 = vsel %vm518, %v507, 0
      %v527 = vsel %vm518, %v477, 0
      %v529 = vsel %vm518, %v508, 0
      %v531 = vsel %vm518, %v478, 0
      %v533 = vsel %vm518, %v509, 0
      %v535 = vsel %vm518, %v479, 0
      %v537 = vsel %vm518, %v510, 0
      %v539 = vsel %vm518, %v480, 0
      %v541 = vsel %vm518, %v511, 0
      %v543 = vsel %vm518, %v481, 0
      %v545 = vsel %vm518, %v512, 0
      %v547 = vsel %vm518, %v482, 0
      %v549 = vsel %vm518, %v513, 0
      %551 = vmatprep.subr.mxu0 0.0
      %552 = vmatpush1.msra.mxu0 0.0
      %553 = vmatprep.subr.mxu0 0.0
      %554 = vmatpush1.msra.mxu0 0.0
      %555 = vmatprep.subr.mxu0 0.0
      %556 = vmatpush1.msra.mxu0 0.0
      %557 = vmatprep.subr.mxu0 0.0
      %558 = vmatpush1.msra.mxu0 0.0
      %559 = vmatprep.subr.mxu0 0.0
      %560 = vmatpush1.msra.mxu0 0.0
      %561 = vmatprep.subr.mxu0 0.0
      %562 = vmatpush1.msra.mxu0 0.0
      %563 = vmatprep.subr.mxu0 0.0
      %564 = vmatpush1.msra.mxu0 0.0
      %565 = vmatprep.subr.mxu0 0.0
      %566 = vmatpush1.msra.mxu0 0.0
      %567 = vmatprep.subr.mxu0 0.0
      %568 = vmatpush1.msra.mxu0 0.0
      %569 = vmatprep.subr.mxu0 0.0
      %570 = vmatpush1.msra.mxu0 0.0
      %571 = vmatprep.subr.mxu0 0.0
      %572 = vmatpush1.msra.mxu0 0.0
      %573 = vmatprep.subr.mxu0 0.0
      %574 = vmatpush1.msra.mxu0 0.0
      %575 = vmatprep.subr.mxu0 0.0
      %576 = vmatpush1.msra.mxu0 0.0
      %577 = vmatprep.subr.mxu0 0.0
      %578 = vmatpush1.msra.mxu0 0.0
      %579 = vmatprep.subr.mxu0 0.0
      %580 = vmatpush1.msra.mxu0 0.0
      %581 = vmatprep.subr.mxu0 %v521
      %582 = vmatpush1.msra.mxu0 %v519
      %583 = vmatprep.subr.mxu0 0.0
      %584 = vmatpush2.msra.mxu0 0.0
      %585 = vmatprep.subr.mxu0 0.0
      %586 = vmatpush2.msra.mxu0 0.0
      %587 = vmatprep.subr.mxu0 0.0
      %588 = vmatpush2.msra.mxu0 0.0
      %589 = vmatprep.subr.mxu0 0.0
      %590 = vmatpush2.msra.mxu0 0.0
      %591 = vmatprep.subr.mxu0 0.0
      %592 = vmatpush2.msra.mxu0 0.0
      %593 = vmatprep.subr.mxu0 0.0
      %594 = vmatpush2.msra.mxu0 0.0
      %595 = vmatprep.subr.mxu0 0.0
      %596 = vmatpush2.msra.mxu0 0.0
      %597 = vmatprep.subr.mxu0 0.0
      %598 = vmatpush2.msra.mxu0 0.0
      %599 = vmatprep.subr.mxu0 0.0
      %600 = vmatpush2.msra.mxu0 0.0
      %601 = vmatprep.subr.mxu0 0.0
      %602 = vmatpush2.msra.mxu0 0.0
      %603 = vmatprep.subr.mxu0 0.0
      %604 = vmatpush2.msra.mxu0 0.0
      %605 = vmatprep.subr.mxu0 0.0
      %606 = vmatpush2.msra.mxu0 0.0
      %607 = vmatprep.subr.mxu0 0.0
      %608 = vmatpush2.msra.mxu0 0.0
      %609 = vmatprep.subr.mxu0 0.0
      %610 = vmatpush2.msra.mxu0 0.0
      %611 = vmatprep.subr.mxu0 0.0
      %612 = vmatpush2.msra.mxu0 0.0
      %613 = vmatprep.subr.mxu0 0.0
      %614 = vmatpush2.msra.mxu0 0.0
      %615 = vmatprep.mubr.f32.mxu0 0.0
      %616 = vmatmul.mubr.f32.gmra.mxu0 %v516
      %v617 = vpop.f32.mrf.mxu0
      %v618 = vadd.f32 %v496, %v617
      %v619 = vpop.f32.mrf.mxu0
      %v620 = vadd.f32 %v496, %v619
      %621 = vdwg.mxu0
      %622 = vmatprep.subr.mxu0 0.0
      %623 = vmatpush1.msra.mxu0 0.0
      %624 = vmatprep.subr.mxu0 0.0
      %625 = vmatpush1.msra.mxu0 0.0
      %626 = vmatprep.subr.mxu0 0.0
      %627 = vmatpush1.msra.mxu0 0.0
      %628 = vmatprep.subr.mxu0 0.0
      %629 = vmatpush1.msra.mxu0 0.0
      %630 = vmatprep.subr.mxu0 0.0
      %631 = vmatpush1.msra.mxu0 0.0
      %632 = vmatprep.subr.mxu0 0.0
      %633 = vmatpush1.msra.mxu0 0.0
      %634 = vmatprep.subr.mxu0 0.0
      %635 = vmatpush1.msra.mxu0 0.0
      %636 = vmatprep.subr.mxu0 0.0
      %637 = vmatpush1.msra.mxu0 0.0
      %638 = vmatprep.subr.mxu0 0.0
      %639 = vmatpush1.msra.mxu0 0.0
      %640 = vmatprep.subr.mxu0 0.0
      %641 = vmatpush1.msra.mxu0 0.0
      %642 = vmatprep.subr.mxu0 0.0
      %643 = vmatpush1.msra.mxu0 0.0
      %644 = vmatprep.subr.mxu0 0.0
      %645 = vmatpush1.msra.mxu0 0.0
      %646 = vmatprep.subr.mxu0 0.0
      %647 = vmatpush1.msra.mxu0 0.0
      %648 = vmatprep.subr.mxu0 0.0
      %649 = vmatpush1.msra.mxu0 0.0
      %650 = vmatprep.subr.mxu0 0.0
      %651 = vmatpush1.msra.mxu0 0.0
      %652 = vmatprep.subr.mxu0 %v525
      %653 = vmatpush1.msra.mxu0 %v523
      %654 = vmatprep.subr.mxu0 0.0
      %655 = vmatpush2.msra.mxu0 0.0
      %656 = vmatprep.subr.mxu0 0.0
      %657 = vmatpush2.msra.mxu0 0.0
      %658 = vmatprep.subr.mxu0 0.0
      %659 = vmatpush2.msra.mxu0 0.0
      %660 = vmatprep.subr.mxu0 0.0
      %661 = vmatpush2.msra.mxu0 0.0
      %662 = vmatprep.subr.mxu0 0.0
      %663 = vmatpush2.msra.mxu0 0.0
      %664 = vmatprep.subr.mxu0 0.0
      %665 = vmatpush2.msra.mxu0 0.0
      %666 = vmatprep.subr.mxu0 0.0
      %667 = vmatpush2.msra.mxu0 0.0
      %668 = vmatprep.subr.mxu0 0.0
      %669 = vmatpush2.msra.mxu0 0.0
      %670 = vmatprep.subr.mxu0 0.0
      %671 = vmatpush2.msra.mxu0 0.0
      %672 = vmatprep.subr.mxu0 0.0
      %673 = vmatpush2.msra.mxu0 0.0
      %674 = vmatprep.subr.mxu0 0.0
      %675 = vmatpush2.msra.mxu0 0.0
      %676 = vmatprep.subr.mxu0 0.0
      %677 = vmatpush2.msra.mxu0 0.0
      %678 = vmatprep.subr.mxu0 0.0
      %679 = vmatpush2.msra.mxu0 0.0
      %680 = vmatprep.subr.mxu0 0.0
      %681 = vmatpush2.msra.mxu0 0.0
      %682 = vmatprep.subr.mxu0 0.0
      %683 = vmatpush2.msra.mxu0 0.0
      %684 = vmatprep.subr.mxu0 0.0
      %685 = vmatpush2.msra.mxu0 0.0
      %686 = vmatprep.mubr.f32.mxu0 0.0
      %687 = vmatmul.mubr.f32.gmra.mxu0 %v516
      %v688 = vpop.f32.mrf.mxu0
      %v689 = vadd.f32 %v496, %v688
      %v690 = vpop.f32.mrf.mxu0
      %v691 = vadd.f32 %v496, %v690
      %692 = vdwg.mxu0
      %693 = vmatprep.subr.mxu0 0.0
      %694 = vmatpush1.msra.mxu0 0.0
      %695 = vmatprep.subr.mxu0 0.0
      %696 = vmatpush1.msra.mxu0 0.0
      %697 = vmatprep.subr.mxu0 0.0
      %698 = vmatpush1.msra.mxu0 0.0
      %699 = vmatprep.subr.mxu0 0.0
      %700 = vmatpush1.msra.mxu0 0.0
      %701 = vmatprep.subr.mxu0 0.0
      %702 = vmatpush1.msra.mxu0 0.0
      %703 = vmatprep.subr.mxu0 0.0
      %704 = vmatpush1.msra.mxu0 0.0
      %705 = vmatprep.subr.mxu0 0.0
      %706 = vmatpush1.msra.mxu0 0.0
      %707 = vmatprep.subr.mxu0 0.0
      %708 = vmatpush1.msra.mxu0 0.0
      %709 = vmatprep.subr.mxu0 0.0
      %710 = vmatpush1.msra.mxu0 0.0
      %711 = vmatprep.subr.mxu0 0.0
      %712 = vmatpush1.msra.mxu0 0.0
      %713 = vmatprep.subr.mxu0 0.0
      %714 = vmatpush1.msra.mxu0 0.0
      %715 = vmatprep.subr.mxu0 0.0
      %716 = vmatpush1.msra.mxu0 0.0
      %717 = vmatprep.subr.mxu0 0.0
      %718 = vmatpush1.msra.mxu0 0.0
      %719 = vmatprep.subr.mxu0 0.0
      %720 = vmatpush1.msra.mxu0 0.0
      %721 = vmatprep.subr.mxu0 0.0
      %722 = vmatpush1.msra.mxu0 0.0
      %723 = vmatprep.subr.mxu0 %v529
      %724 = vmatpush1.msra.mxu0 %v527
      %725 = vmatprep.subr.mxu0 0.0
      %726 = vmatpush2.msra.mxu0 0.0
      %727 = vmatprep.subr.mxu0 0.0
      %728 = vmatpush2.msra.mxu0 0.0
      %729 = vmatprep.subr.mxu0 0.0
      %730 = vmatpush2.msra.mxu0 0.0
      %731 = vmatprep.subr.mxu0 0.0
      %732 = vmatpush2.msra.mxu0 0.0
      %733 = vmatprep.subr.mxu0 0.0
      %734 = vmatpush2.msra.mxu0 0.0
      %735 = vmatprep.subr.mxu0 0.0
      %736 = vmatpush2.msra.mxu0 0.0
      %737 = vmatprep.subr.mxu0 0.0
      %738 = vmatpush2.msra.mxu0 0.0
      %739 = vmatprep.subr.mxu0 0.0
      %740 = vmatpush2.msra.mxu0 0.0
      %741 = vmatprep.subr.mxu0 0.0
      %742 = vmatpush2.msra.mxu0 0.0
      %743 = vmatprep.subr.mxu0 0.0
      %744 = vmatpush2.msra.mxu0 0.0
      %745 = vmatprep.subr.mxu0 0.0
      %746 = vmatpush2.msra.mxu0 0.0
      %747 = vmatprep.subr.mxu0 0.0
      %748 = vmatpush2.msra.mxu0 0.0
      %749 = vmatprep.subr.mxu0 0.0
      %750 = vmatpush2.msra.mxu0 0.0
      %751 = vmatprep.subr.mxu0 0.0
      %752 = vmatpush2.msra.mxu0 0.0
      %753 = vmatprep.subr.mxu0 0.0
      %754 = vmatpush2.msra.mxu0 0.0
      %755 = vmatprep.subr.mxu0 0.0
      %756 = vmatpush2.msra.mxu0 0.0
      %757 = vmatprep.mubr.f32.mxu0 0.0
      %758 = vmatmul.mubr.f32.gmra.mxu0 %v516
      %v759 = vpop.f32.mrf.mxu0
      %v760 = vadd.f32 %v496, %v759
      %v761 = vpop.f32.mrf.mxu0
      %v762 = vadd.f32 %v496, %v761
      %763 = vdwg.mxu0
      %764 = vmatprep.subr.mxu0 0.0
      %765 = vmatpush1.msra.mxu0 0.0
      %766 = vmatprep.subr.mxu0 0.0
      %767 = vmatpush1.msra.mxu0 0.0
      %768 = vmatprep.subr.mxu0 0.0
      %769 = vmatpush1.msra.mxu0 0.0
      %770 = vmatprep.subr.mxu0 0.0
      %771 = vmatpush1.msra.mxu0 0.0
      %772 = vmatprep.subr.mxu0 0.0
      %773 = vmatpush1.msra.mxu0 0.0
      %774 = vmatprep.subr.mxu0 0.0
      %775 = vmatpush1.msra.mxu0 0.0
      %776 = vmatprep.subr.mxu0 0.0
      %777 = vmatpush1.msra.mxu0 0.0
      %778 = vmatprep.subr.mxu0 0.0
      %779 = vmatpush1.msra.mxu0 0.0
      %780 = vmatprep.subr.mxu0 0.0
      %781 = vmatpush1.msra.mxu0 0.0
      %782 = vmatprep.subr.mxu0 0.0
      %783 = vmatpush1.msra.mxu0 0.0
      %784 = vmatprep.subr.mxu0 0.0
      %785 = vmatpush1.msra.mxu0 0.0
      %786 = vmatprep.subr.mxu0 0.0
      %787 = vmatpush1.msra.mxu0 0.0
      %788 = vmatprep.subr.mxu0 0.0
      %789 = vmatpush1.msra.mxu0 0.0
      %790 = vmatprep.subr.mxu0 0.0
      %791 = vmatpush1.msra.mxu0 0.0
      %792 = vmatprep.subr.mxu0 0.0
      %793 = vmatpush1.msra.mxu0 0.0
      %794 = vmatprep.subr.mxu0 %v533
      %795 = vmatpush1.msra.mxu0 %v531
      %796 = vmatprep.subr.mxu0 0.0
      %797 = vmatpush2.msra.mxu0 0.0
      %798 = vmatprep.subr.mxu0 0.0
      %799 = vmatpush2.msra.mxu0 0.0
      %800 = vmatprep.subr.mxu0 0.0
      %801 = vmatpush2.msra.mxu0 0.0
      %802 = vmatprep.subr.mxu0 0.0
      %803 = vmatpush2.msra.mxu0 0.0
      %804 = vmatprep.subr.mxu0 0.0
      %805 = vmatpush2.msra.mxu0 0.0
      %806 = vmatprep.subr.mxu0 0.0
      %807 = vmatpush2.msra.mxu0 0.0
      %808 = vmatprep.subr.mxu0 0.0
      %809 = vmatpush2.msra.mxu0 0.0
      %810 = vmatprep.subr.mxu0 0.0
      %811 = vmatpush2.msra.mxu0 0.0
      %812 = vmatprep.subr.mxu0 0.0
      %813 = vmatpush2.msra.mxu0 0.0
      %814 = vmatprep.subr.mxu0 0.0
      %815 = vmatpush2.msra.mxu0 0.0
      %816 = vmatprep.subr.mxu0 0.0
      %817 = vmatpush2.msra.mxu0 0.0
      %818 = vmatprep.subr.mxu0 0.0
      %819 = vmatpush2.msra.mxu0 0.0
      %820 = vmatprep.subr.mxu0 0.0
      %821 = vmatpush2.msra.mxu0 0.0
      %822 = vmatprep.subr.mxu0 0.0
      %823 = vmatpush2.msra.mxu0 0.0
      %824 = vmatprep.subr.mxu0 0.0
      %825 = vmatpush2.msra.mxu0 0.0
      %826 = vmatprep.subr.mxu0 0.0
      %827 = vmatpush2.msra.mxu0 0.0
      %828 = vmatprep.mubr.f32.mxu0 0.0
      %829 = vmatmul.mubr.f32.gmra.mxu0 %v516
      %v830 = vpop.f32.mrf.mxu0
      %v831 = vadd.f32 %v496, %v830
      %v832 = vpop.f32.mrf.mxu0
      %v833 = vadd.f32 %v496, %v832
      %834 = vdwg.mxu0
      %835 = vmatprep.subr.mxu0 0.0
      %836 = vmatpush1.msra.mxu0 0.0
      %837 = vmatprep.subr.mxu0 0.0
      %838 = vmatpush1.msra.mxu0 0.0
      %839 = vmatprep.subr.mxu0 0.0
      %840 = vmatpush1.msra.mxu0 0.0
      %841 = vmatprep.subr.mxu0 0.0
      %842 = vmatpush1.msra.mxu0 0.0
      %843 = vmatprep.subr.mxu0 0.0
      %844 = vmatpush1.msra.mxu0 0.0
      %845 = vmatprep.subr.mxu0 0.0
      %846 = vmatpush1.msra.mxu0 0.0
      %847 = vmatprep.subr.mxu0 0.0
      %848 = vmatpush1.msra.mxu0 0.0
      %849 = vmatprep.subr.mxu0 0.0
      %850 = vmatpush1.msra.mxu0 0.0
      %851 = vmatprep.subr.mxu0 0.0
      %852 = vmatpush1.msra.mxu0 0.0
      %853 = vmatprep.subr.mxu0 0.0
      %854 = vmatpush1.msra.mxu0 0.0
      %855 = vmatprep.subr.mxu0 0.0
      %856 = vmatpush1.msra.mxu0 0.0
      %857 = vmatprep.subr.mxu0 0.0
      %858 = vmatpush1.msra.mxu0 0.0
      %859 = vmatprep.subr.mxu0 0.0
      %860 = vmatpush1.msra.mxu0 0.0
      %861 = vmatprep.subr.mxu0 0.0
      %862 = vmatpush1.msra.mxu0 0.0
      %863 = vmatprep.subr.mxu0 0.0
      %864 = vmatpush1.msra.mxu0 0.0
      %865 = vmatprep.subr.mxu0 %v537
      %866 = vmatpush1.msra.mxu0 %v535
      %867 = vmatprep.subr.mxu0 0.0
      %868 = vmatpush2.msra.mxu0 0.0
      %869 = vmatprep.subr.mxu0 0.0
      %870 = vmatpush2.msra.mxu0 0.0
      %871 = vmatprep.subr.mxu0 0.0
      %872 = vmatpush2.msra.mxu0 0.0
      %873 = vmatprep.subr.mxu0 0.0
      %874 = vmatpush2.msra.mxu0 0.0
      %875 = vmatprep.subr.mxu0 0.0
      %876 = vmatpush2.msra.mxu0 0.0
      %877 = vmatprep.subr.mxu0 0.0
      %878 = vmatpush2.msra.mxu0 0.0
      %879 = vmatprep.subr.mxu0 0.0
      %880 = vmatpush2.msra.mxu0 0.0
      %881 = vmatprep.subr.mxu0 0.0
      %882 = vmatpush2.msra.mxu0 0.0
      %883 = vmatprep.subr.mxu0 0.0
      %884 = vmatpush2.msra.mxu0 0.0
      %885 = vmatprep.subr.mxu0 0.0
      %886 = vmatpush2.msra.mxu0 0.0
      %887 = vmatprep.subr.mxu0 0.0
      %888 = vmatpush2.msra.mxu0 0.0
      %889 = vmatprep.subr.mxu0 0.0
      %890 = vmatpush2.msra.mxu0 0.0
      %891 = vmatprep.subr.mxu0 0.0
      %892 = vmatpush2.msra.mxu0 0.0
      %893 = vmatprep.subr.mxu0 0.0
      %894 = vmatpush2.msra.mxu0 0.0
      %895 = vmatprep.subr.mxu0 0.0
      %896 = vmatpush2.msra.mxu0 0.0
      %897 = vmatprep.subr.mxu0 0.0
      %898 = vmatpush2.msra.mxu0 0.0
      %899 = vmatprep.mubr.f32.mxu0 0.0
      %900 = vmatmul.mubr.f32.gmra.mxu0 %v516
      %v901 = vpop.f32.mrf.mxu0
      %v902 = vadd.f32 %v496, %v901
      %v903 = vpop.f32.mrf.mxu0
      %v904 = vadd.f32 %v496, %v903
      %905 = vdwg.mxu0
      %906 = vmatprep.subr.mxu0 0.0
      %907 = vmatpush1.msra.mxu0 0.0
      %908 = vmatprep.subr.mxu0 0.0
      %909 = vmatpush1.msra.mxu0 0.0
      %910 = vmatprep.subr.mxu0 0.0
      %911 = vmatpush1.msra.mxu0 0.0
      %912 = vmatprep.subr.mxu0 0.0
      %913 = vmatpush1.msra.mxu0 0.0
      %914 = vmatprep.subr.mxu0 0.0
      %915 = vmatpush1.msra.mxu0 0.0
      %916 = vmatprep.subr.mxu0 0.0
      %917 = vmatpush1.msra.mxu0 0.0
      %918 = vmatprep.subr.mxu0 0.0
      %919 = vmatpush1.msra.mxu0 0.0
      %920 = vmatprep.subr.mxu0 0.0
      %921 = vmatpush1.msra.mxu0 0.0
      %922 = vmatprep.subr.mxu0 0.0
      %923 = vmatpush1.msra.mxu0 0.0
      %924 = vmatprep.subr.mxu0 0.0
      %925 = vmatpush1.msra.mxu0 0.0
      %926 = vmatprep.subr.mxu0 0.0
      %927 = vmatpush1.msra.mxu0 0.0
      %928 = vmatprep.subr.mxu0 0.0
      %929 = vmatpush1.msra.mxu0 0.0
      %930 = vmatprep.subr.mxu0 0.0
      %931 = vmatpush1.msra.mxu0 0.0
      %932 = vmatprep.subr.mxu0 0.0
      %933 = vmatpush1.msra.mxu0 0.0
      %934 = vmatprep.subr.mxu0 0.0
      %935 = vmatpush1.msra.mxu0 0.0
      %936 = vmatprep.subr.mxu0 %v541
      %937 = vmatpush1.msra.mxu0 %v539
      %938 = vmatprep.subr.mxu0 0.0
      %939 = vmatpush2.msra.mxu0 0.0
      %940 = vmatprep.subr.mxu0 0.0
      %941 = vmatpush2.msra.mxu0 0.0
      %942 = vmatprep.subr.mxu0 0.0
      %943 = vmatpush2.msra.mxu0 0.0
      %944 = vmatprep.subr.mxu0 0.0
      %945 = vmatpush2.msra.mxu0 0.0
      %946 = vmatprep.subr.mxu0 0.0
      %947 = vmatpush2.msra.mxu0 0.0
      %948 = vmatprep.subr.mxu0 0.0
      %949 = vmatpush2.msra.mxu0 0.0
      %950 = vmatprep.subr.mxu0 0.0
      %951 = vmatpush2.msra.mxu0 0.0
      %952 = vmatprep.subr.mxu0 0.0
      %953 = vmatpush2.msra.mxu0 0.0
      %954 = vmatprep.subr.mxu0 0.0
      %955 = vmatpush2.msra.mxu0 0.0
      %956 = vmatprep.subr.mxu0 0.0
      %957 = vmatpush2.msra.mxu0 0.0
      %958 = vmatprep.subr.mxu0 0.0
      %959 = vmatpush2.msra.mxu0 0.0
      %960 = vmatprep.subr.mxu0 0.0
      %961 = vmatpush2.msra.mxu0 0.0
      %962 = vmatprep.subr.mxu0 0.0
      %963 = vmatpush2.msra.mxu0 0.0
      %964 = vmatprep.subr.mxu0 0.0
      %965 = vmatpush2.msra.mxu0 0.0
      %966 = vmatprep.subr.mxu0 0.0
      %967 = vmatpush2.msra.mxu0 0.0
      %968 = vmatprep.subr.mxu0 0.0
      %969 = vmatpush2.msra.mxu0 0.0
      %970 = vmatprep.mubr.f32.mxu0 0.0
      %971 = vmatmul.mubr.f32.gmra.mxu0 %v516
      %v972 = vpop.f32.mrf.mxu0
      %v973 = vadd.f32 %v496, %v972
      %v974 = vpop.f32.mrf.mxu0
      %v975 = vadd.f32 %v496, %v974
      %976 = vdwg.mxu0
      %977 = vmatprep.subr.mxu0 0.0
      %978 = vmatpush1.msra.mxu0 0.0
      %979 = vmatprep.subr.mxu0 0.0
      %980 = vmatpush1.msra.mxu0 0.0
      %981 = vmatprep.subr.mxu0 0.0
      %982 = vmatpush1.msra.mxu0 0.0
      %983 = vmatprep.subr.mxu0 0.0
      %984 = vmatpush1.msra.mxu0 0.0
      %985 = vmatprep.subr.mxu0 0.0
      %986 = vmatpush1.msra.mxu0 0.0
      %987 = vmatprep.subr.mxu0 0.0
      %988 = vmatpush1.msra.mxu0 0.0
      %989 = vmatprep.subr.mxu0 0.0
      %990 = vmatpush1.msra.mxu0 0.0
      %991 = vmatprep.subr.mxu0 0.0
      %992 = vmatpush1.msra.mxu0 0.0
      %993 = vmatprep.subr.mxu0 0.0
      %994 = vmatpush1.msra.mxu0 0.0
      %995 = vmatprep.subr.mxu0 0.0
      %996 = vmatpush1.msra.mxu0 0.0
      %997 = vmatprep.subr.mxu0 0.0
      %998 = vmatpush1.msra.mxu0 0.0
      %999 = vmatprep.subr.mxu0 0.0
      %1000 = vmatpush1.msra.mxu0 0.0
      %1001 = vmatprep.subr.mxu0 0.0
      %1002 = vmatpush1.msra.mxu0 0.0
      %1003 = vmatprep.subr.mxu0 0.0
      %1004 = vmatpush1.msra.mxu0 0.0
      %1005 = vmatprep.subr.mxu0 0.0
      %1006 = vmatpush1.msra.mxu0 0.0
      %1007 = vmatprep.subr.mxu0 %v545
      %1008 = vmatpush1.msra.mxu0 %v543
      %1009 = vmatprep.subr.mxu0 0.0
      %1010 = vmatpush2.msra.mxu0 0.0
      %1011 = vmatprep.subr.mxu0 0.0
      %1012 = vmatpush2.msra.mxu0 0.0
      %1013 = vmatprep.subr.mxu0 0.0
      %1014 = vmatpush2.msra.mxu0 0.0
      %1015 = vmatprep.subr.mxu0 0.0
      %1016 = vmatpush2.msra.mxu0 0.0
      %1017 = vmatprep.subr.mxu0 0.0
      %1018 = vmatpush2.msra.mxu0 0.0
      %1019 = vmatprep.subr.mxu0 0.0
      %1020 = vmatpush2.msra.mxu0 0.0
      %1021 = vmatprep.subr.mxu0 0.0
      %1022 = vmatpush2.msra.mxu0 0.0
      %1023 = vmatprep.subr.mxu0 0.0
      %1024 = vmatpush2.msra.mxu0 0.0
      %1025 = vmatprep.subr.mxu0 0.0
      %1026 = vmatpush2.msra.mxu0 0.0
      %1027 = vmatprep.subr.mxu0 0.0
      %1028 = vmatpush2.msra.mxu0 0.0
      %1029 = vmatprep.subr.mxu0 0.0
      %1030 = vmatpush2.msra.mxu0 0.0
      %1031 = vmatprep.subr.mxu0 0.0
      %1032 = vmatpush2.msra.mxu0 0.0
      %1033 = vmatprep.subr.mxu0 0.0
      %1034 = vmatpush2.msra.mxu0 0.0
      %1035 = vmatprep.subr.mxu0 0.0
      %1036 = vmatpush2.msra.mxu0 0.0
      %1037 = vmatprep.subr.mxu0 0.0
      %1038 = vmatpush2.msra.mxu0 0.0
      %1039 = vmatprep.subr.mxu0 0.0
      %1040 = vmatpush2.msra.mxu0 0.0
      %1041 = vmatprep.mubr.f32.mxu0 0.0
      %1042 = vmatmul.mubr.f32.gmra.mxu0 %v516
      %v1043 = vpop.f32.mrf.mxu0
      %v1044 = vadd.f32 %v496, %v1043
      %v1045 = vpop.f32.mrf.mxu0
      %v1046 = vadd.f32 %v496, %v1045
      %1047 = vdwg.mxu0
      %1048 = vmatprep.subr.mxu0 0.0
      %1049 = vmatpush1.msra.mxu0 0.0
      %1050 = vmatprep.subr.mxu0 0.0
      %1051 = vmatpush1.msra.mxu0 0.0
      %1052 = vmatprep.subr.mxu0 0.0
      %1053 = vmatpush1.msra.mxu0 0.0
      %1054 = vmatprep.subr.mxu0 0.0
      %1055 = vmatpush1.msra.mxu0 0.0
      %1056 = vmatprep.subr.mxu0 0.0
      %1057 = vmatpush1.msra.mxu0 0.0
      %1058 = vmatprep.subr.mxu0 0.0
      %1059 = vmatpush1.msra.mxu0 0.0
      %1060 = vmatprep.subr.mxu0 0.0
      %1061 = vmatpush1.msra.mxu0 0.0
      %1062 = vmatprep.subr.mxu0 0.0
      %1063 = vmatpush1.msra.mxu0 0.0
      %1064 = vmatprep.subr.mxu0 0.0
      %1065 = vmatpush1.msra.mxu0 0.0
      %1066 = vmatprep.subr.mxu0 0.0
      %1067 = vmatpush1.msra.mxu0 0.0
      %1068 = vmatprep.subr.mxu0 0.0
      %1069 = vmatpush1.msra.mxu0 0.0
      %1070 = vmatprep.subr.mxu0 0.0
      %1071 = vmatpush1.msra.mxu0 0.0
      %1072 = vmatprep.subr.mxu0 0.0
      %1073 = vmatpush1.msra.mxu0 0.0
      %1074 = vmatprep.subr.mxu0 0.0
      %1075 = vmatpush1.msra.mxu0 0.0
      %1076 = vmatprep.subr.mxu0 0.0
      %1077 = vmatpush1.msra.mxu0 0.0
      %1078 = vmatprep.subr.mxu0 %v549
      %1079 = vmatpush1.msra.mxu0 %v547
      %1080 = vmatprep.subr.mxu0 0.0
      %1081 = vmatpush2.msra.mxu0 0.0
      %1082 = vmatprep.subr.mxu0 0.0
      %1083 = vmatpush2.msra.mxu0 0.0
      %1084 = vmatprep.subr.mxu0 0.0
      %1085 = vmatpush2.msra.mxu0 0.0
      %1086 = vmatprep.subr.mxu0 0.0
      %1087 = vmatpush2.msra.mxu0 0.0
      %1088 = vmatprep.subr.mxu0 0.0
      %1089 = vmatpush2.msra.mxu0 0.0
      %1090 = vmatprep.subr.mxu0 0.0
      %1091 = vmatpush2.msra.mxu0 0.0
      %1092 = vmatprep.subr.mxu0 0.0
      %1093 = vmatpush2.msra.mxu0 0.0
      %1094 = vmatprep.subr.mxu0 0.0
      %1095 = vmatpush2.msra.mxu0 0.0
      %1096 = vmatprep.subr.mxu0 0.0
      %1097 = vmatpush2.msra.mxu0 0.0
      %1098 = vmatprep.subr.mxu0 0.0
      %1099 = vmatpush2.msra.mxu0 0.0
      %1100 = vmatprep.subr.mxu0 0.0
      %1101 = vmatpush2.msra.mxu0 0.0
      %1102 = vmatprep.subr.mxu0 0.0
      %1103 = vmatpush2.msra.mxu0 0.0
      %1104 = vmatprep.subr.mxu0 0.0
      %1105 = vmatpush2.msra.mxu0 0.0
      %1106 = vmatprep.subr.mxu0 0.0
      %1107 = vmatpush2.msra.mxu0 0.0
      %1108 = vmatprep.subr.mxu0 0.0
      %1109 = vmatpush2.msra.mxu0 0.0
      %1110 = vmatprep.subr.mxu0 0.0
      %1111 = vmatpush2.msra.mxu0 0.0
      %1112 = vmatprep.mubr.f32.mxu0 0.0
      %1113 = vmatmul.mubr.f32.gmra.mxu0 %v516
      %v1114 = vpop.f32.mrf.mxu0
      %v1115 = vadd.f32 %v496, %v1114
      %v1116 = vpop.f32.mrf.mxu0
      %v1117 = vadd.f32 %v496, %v1116
      %1118 = vdwg.mxu0
      %1119 = vst [vmem:[%s391] sm:$0xff] %v618
      %1120 = vst [vmem:[%s391 + $0x8] sm:$0xff] %v620
      %1121 = vst [vmem:[%s391 + $0x10] sm:$0xff] %v689
      %1122 = vst [vmem:[%s391 + $0x18] sm:$0xff] %v691
      %1123 = vst [vmem:[%s391 + $0x20] sm:$0xff] %v760
      %1124 = vst [vmem:[%s391 + $0x28] sm:$0xff] %v762
      %1125 = vst [vmem:[%s391 + $0x30] sm:$0xff] %v831
      %1126 = vst [vmem:[%s391 + $0x38] sm:$0xff] %v833
      %1127 = vst [vmem:[%s391 + $0x40] sm:$0xff] %v902
      %1128 = vst [vmem:[%s391 + $0x48] sm:$0xff] %v904
      %1129 = vst [vmem:[%s391 + $0x50] sm:$0xff] %v973
      %1130 = vst [vmem:[%s391 + $0x58] sm:$0xff] %v975
      %1131 = vst [vmem:[%s391 + $0x60] sm:$0xff] %v1044
      %1132 = vst [vmem:[%s391 + $0x68] sm:$0xff] %v1046
      %1133 = vst [vmem:[%s391 + $0x70] sm:$0xff] %v1115
      %1134 = vst [vmem:[%s391 + $0x78] sm:$0xff] %v1117
      %v1135 = vadd.f32 %v618, %v620
      %v1136 = vadd.f32 %v1135, %v689
      %v1137 = vadd.f32 %v1136, %v691
      %v1138 = vadd.f32 %v1137, %v760
      %v1139 = vadd.f32 %v1138, %v762
      %v1140 = vadd.f32 %v1139, %v831
      %v1141 = vadd.f32 %v1140, %v833
      %v1142 = vadd.f32 %v1141, %v902
      %v1143 = vadd.f32 %v1142, %v904
      %v1144 = vadd.f32 %v1143, %v973
      %v1145 = vadd.f32 %v1144, %v975
      %v1146 = vadd.f32 %v1145, %v1044
      %v1147 = vadd.f32 %v1146, %v1046
      %v1148 = vadd.f32 %v1147, %v1115
      %v1149 = vadd.f32 %v1148, %v1117
      %1150 = vadd.xlane.f32.xlu0 %v1149
      %v1151 = vpop.xlane.xlu0 %1150
      %1152 = vst [vmem:[%s400] sm:$0xff] %v1151
      %v1153 = vmul.f32 %v618, %v618
      %v1154 = vmul.f32 %v620, %v620
      %v1155 = vmul.f32 %v689, %v689
      %v1156 = vmul.f32 %v691, %v691
      %v1157 = vmul.f32 %v760, %v760
      %v1158 = vmul.f32 %v762, %v762
      %v1159 = vmul.f32 %v831, %v831
      %v1160 = vmul.f32 %v833, %v833
      %v1161 = vmul.f32 %v902, %v902
      %v1162 = vmul.f32 %v904, %v904
      %v1163 = vmul.f32 %v973, %v973
      %v1164 = vmul.f32 %v975, %v975
      %v1165 = vmul.f32 %v1044, %v1044
      %v1166 = vmul.f32 %v1046, %v1046
      %v1167 = vmul.f32 %v1115, %v1115
      %v1168 = vmul.f32 %v1117, %v1117
      %v1169 = vadd.f32 %v1153, %v1154
      %v1170 = vadd.f32 %v1169, %v1155
      %v1171 = vadd.f32 %v1170, %v1156
      %v1172 = vadd.f32 %v1171, %v1157
      %v1173 = vadd.f32 %v1172, %v1158
      %v1174 = vadd.f32 %v1173, %v1159
      %v1175 = vadd.f32 %v1174, %v1160
      %v1176 = vadd.f32 %v1175, %v1161
      %v1177 = vadd.f32 %v1176, %v1162
      %v1178 = vadd.f32 %v1177, %v1163
      %v1179 = vadd.f32 %v1178, %v1164
      %v1180 = vadd.f32 %v1179, %v1165
      %v1181 = vadd.f32 %v1180, %v1166
      %v1182 = vadd.f32 %v1181, %v1167
      %v1183 = vadd.f32 %v1182, %v1168
      %1184 = vadd.xlane.f32.xlu0 %v1183
      %v1185 = vpop.xlane.xlu0 %1184
      %1186 = vst [vmem:[%s408] sm:$0xff] %v1185
      %s1187 = smul.u32 16, %s25
      %p1188 = scmp.lt.s32.totalorder %s24, 1
      %s1189 = scalar_select %p1188, %s24, 1
      %p1190 = scmp.lt.s32.totalorder %s1187, 31
      %s1191 = scalar_select %p1190, %s1187, 31
      %s1192 = smul.addr %s1189, 32
      %s1193 = sadd.s32 %s1191, %s1192
      %s1194 = smul.addr %s1193, 4
      %s1195 = scalar_lea.vmem %s5, %s1194
      %s1196 = smul.u32 16, %s25
      %p1197 = scmp.lt.s32.totalorder %s24, 1
      %s1198 = scalar_select %p1197, %s24, 1
      %p1199 = scmp.lt.s32.totalorder %s1196, 31
      %s1200 = scalar_select %p1199, %s1196, 31
      %s1201 = smul.addr %s1198, 32
      %s1202 = sadd.s32 %s1200, %s1201
      %s1203 = smul.addr %s1202, 8
      %s1204 = scalar_lea.vmem %s6, %s1203
      %p1205 = scmp.lt.s32.totalorder %s24, 1
      %s1206 = scalar_select %p1205, %s24, 1
      %p1207 = scmp.lt.s32.totalorder %s25, 1
      %s1208 = scalar_select %p1207, %s25, 1
      %s1209 = smul.addr %s1206, 2
      %s1210 = sadd.s32 %s1208, %s1209
      %s1211 = smul.addr %s1210, 8
      %s1212 = scalar_lea.vmem %s7, %s1211
      %p1213 = scmp.lt.s32.totalorder %s24, 1
      %s1214 = scalar_select %p1213, %s24, 1
      %p1215 = scmp.lt.s32.totalorder %s25, 1
      %s1216 = scalar_select %p1215, %s25, 1
      %s1217 = smul.addr %s1214, 2
      %s1218 = sadd.s32 %s1216, %s1217
      %s1219 = smul.addr %s1218, 8
      %s1220 = scalar_lea.vmem %s8, %s1219
      // Predicated region
      $region41: #{unet_upsample.4} parent=39 // pred_check
        %p1221 = pneg %p164
      $region42: #{unet_upsample.4} parent=39 // pred_check_branch
        %1223 = sbr.rel (%p1221) target = $region44
      $region43: #{unet_upsample.4} parent=39 // pred_region
        %s1224 = smul.u32 16, %s25
      $region44: #{unet_upsample.4} parent=39 // pred_fallthru
        _
      // Predicated region
      $region45: #{unet_upsample.4} parent=39 // pred_check
        %p1225 = pneg %p192
      $region46: #{unet_upsample.4} parent=39 // pred_check_branch
        %1227 = sbr.rel (%p1225) target = $region48
      $region47: #{unet_upsample.4} parent=39 // pred_region
        %s1228 = smul.u32 16, %s25
      $region48: #{unet_upsample.4} parent=39 // pred_fallthru
        _
      // Predicated region
      $region49: #{unet_upsample.4} parent=39 // pred_check
        %p1229 = pneg %p220
      $region50: #{unet_upsample.4} parent=39 // pred_check_branch
        %1231 = sbr.rel (%p1229) target = $region52
      $region51: #{unet_upsample.4} parent=39 // pred_region
        _
      $region52: #{unet_upsample.4} parent=39 // pred_fallthru
        _
      // Predicated region
      $region53: #{unet_upsample.4} parent=39 // pred_check
        %p1232 = pneg %p248
      $region54: #{unet_upsample.4} parent=39 // pred_check_branch
        %1234 = sbr.rel (%p1232) target = $region56
      $region55: #{unet_upsample.4} parent=39 // pred_region
        _
      $region56: #{unet_upsample.4} parent=39 // pred_fallthru
        _
    $region40: #{unet_upsample.4} parent=5 // pred_fallthru
      _
    %p1235 = scmp.le.s32.totalorder 2, %s15
    // Predicated region
    $region57: #{unet_upsample.4} parent=5 // pred_check
      %p1236 = pneg %p1235
    $region58: #{unet_upsample.4} parent=5 // pred_check_branch
      %1238 = sbr.rel (%p1236) target = $region60
    $region59: #{unet_upsample.4} parent=5 // pred_region
      %s1239 = ssub.s32 %s15, 2
      // Predicated region
      $region61: #{unet_upsample.4} parent=59 // pred_check
        %p1240 = pneg %p170
      $region62: #{unet_upsample.4} parent=59 // pred_check_branch
        %1242 = sbr.rel (%p1240) target = $region64
      $region63: #{unet_upsample.4} parent=59 // pred_region
        %s1243 = smul.u32 16, %s27
        %p1244 = scmp.lt.s32.totalorder %s26, 1
        %s1245 = scalar_select %p1244, %s26, 1
        %p1246 = scmp.lt.s32.totalorder %s1243, 31
        %s1247 = scalar_select %p1246, %s1243, 31
        %s1248 = smul.addr %s1245, 32
        %s1249 = sadd.s32 %s1247, %s1248
        %s1250 = smul.addr %s1249, 4
        %s1251 = scalar_lea.vmem %s5, %s1250
      $region64: #{unet_upsample.4} parent=59 // pred_fallthru
        _
      // Predicated region
      $region65: #{unet_upsample.4} parent=59 // pred_check
        %p1252 = pneg %p198
      $region66: #{unet_upsample.4} parent=59 // pred_check_branch
        %1254 = sbr.rel (%p1252) target = $region68
      $region67: #{unet_upsample.4} parent=59 // pred_region
        %s1255 = smul.u32 16, %s27
        %p1256 = scmp.lt.s32.totalorder %s26, 1
        %s1257 = scalar_select %p1256, %s26, 1
        %p1258 = scmp.lt.s32.totalorder %s1255, 31
        %s1259 = scalar_select %p1258, %s1255, 31
        %s1260 = smul.addr %s1257, 32
        %s1261 = sadd.s32 %s1259, %s1260
        %s1262 = smul.addr %s1261, 8
        %s1263 = scalar_lea.vmem %s6, %s1262
      $region68: #{unet_upsample.4} parent=59 // pred_fallthru
        _
      // Predicated region
      $region69: #{unet_upsample.4} parent=59 // pred_check
        %p1264 = pneg %p226
      $region70: #{unet_upsample.4} parent=59 // pred_check_branch
        %1266 = sbr.rel (%p1264) target = $region72
      $region71: #{unet_upsample.4} parent=59 // pred_region
        %p1267 = scmp.lt.s32.totalorder %s26, 1
        %s1268 = scalar_select %p1267, %s26, 1
        %p1269 = scmp.lt.s32.totalorder %s27, 1
        %s1270 = scalar_select %p1269, %s27, 1
        %s1271 = smul.addr %s1268, 2
        %s1272 = sadd.s32 %s1270, %s1271
        %s1273 = smul.addr %s1272, 8
        %s1274 = scalar_lea.vmem %s7, %s1273
      $region72: #{unet_upsample.4} parent=59 // pred_fallthru
        _
      // Predicated region
      $region73: #{unet_upsample.4} parent=59 // pred_check
        %p1275 = pneg %p254
      $region74: #{unet_upsample.4} parent=59 // pred_check_branch
        %1277 = sbr.rel (%p1275) target = $region76
      $region75: #{unet_upsample.4} parent=59 // pred_region
        %p1278 = scmp.lt.s32.totalorder %s26, 1
        %s1279 = scalar_select %p1278, %s26, 1
        %p1280 = scmp.lt.s32.totalorder %s27, 1
        %s1281 = scalar_select %p1280, %s27, 1
        %s1282 = smul.addr %s1279, 2
        %s1283 = sadd.s32 %s1281, %s1282
        %s1284 = smul.addr %s1283, 8
        %s1285 = scalar_lea.vmem %s8, %s1284
      $region76: #{unet_upsample.4} parent=59 // pred_fallthru
        _
    $region60: #{unet_upsample.4} parent=5 // pred_fallthru
      _
  $region6: #{unet_upsample.4} parent=0 // loop_footer
    %s19 = sadd.s32 1, %s15
  $region7: #{unet_upsample.4} parent=0 // loop_footer_branch
    %14 = sbr.rel target = $region3
  $region8: #{unet_upsample.4} parent=0 // loop_exit
    _

// kernel: unet_upsample.5
$region0: #{unet_upsample.5}
  #allocation0 [shape = 'u32[]', space=smem, size = 0x4, offset = 0x4, fixed_abs, tag = 'smem constant byte address 0x4 - core index']
  #allocation1 [shape = 'u32[144,128]{1,0:T(1,128)}', space=vmem, size = 0x12000, scoped, tag = 'internal scratch']
  %s0 = inlined_call_operand.vmem [shape: f32[2,8,4096], index: 0, kind: input, shape index: {}]
  %s1 = inlined_call_operand.vmem [shape: f32[8,1], index: 1, kind: input, shape index: {}]
  %s2 = inlined_call_operand.vmem [shape: f32[8,1], index: 2, kind: input, shape index: {}]
  %s3 = inlined_call_operand.vmem [shape: f32[2,8,4096], index: 3, kind: output, shape index: {}]
  %s4 = sld [smem:[#allocation0]]
  $region45: #{unet_upsample.5} parent=0
    _
  %s6 = ssub.s32 1, %s4
  %s7 = scalar_select 0, %s6, %s4
  loop: start=0, step=1, limit=6
  $region2: #{unet_upsample.5} parent=0 // loop_pre_header
    _
  $region3: #{unet_upsample.5} parent=0 // loop_header
    %s9 = sphi 0, %s13
    %p10 = scmp.ge.s32.totalorder %s9, 6
    %s16 = sphi 0, %s28
    %s17 = sphi 0, %s24
    %s18 = sphi 0, %s16
    %s19 = sphi 0, %s17
    %s20 = sphi 0, %s18
    %s21 = sphi 0, %s19
    %s33 = sphi 0, %s35
    %s36 = sphi 0, %s33
    %s37 = sphi 0, %s36
    %s53 = sphi 0, %s37
    %s57 = sphi 0, %s57
    %s59 = sphi 0, %s57
    %s60 = sphi 0, %s59
    %s74 = sphi 0, %s60
    %s78 = sphi 0, %s78
    %s80 = sphi 0, %s78
    %s81 = sphi 0, %s80
    %s95 = sphi 0, %s81
    %s103 = sphi 0, %s105
    %s106 = sphi 0, %s103
    %s107 = sphi 0, %s106
    %s123 = sphi 0, %s107
  $region4: #{unet_upsample.5} parent=0 // loop_header_branch
    %12 = sbr.rel (%p10) target = $region8
  $region5: #{unet_upsample.5} parent=0 // loop_body
    %s14 = ssub.s32 %s9, 1
    %s15 = ssub.s32 %s9, 2
    %s22 = sadd.s32 1, %s17
    %p23 = scmp.ge.s32.totalorder %s22, 2
    %s24 = scalar_select %p23, 0, %s22
    %s25 = sadd.s32 1, %s16
    %s26 = scalar_select %p23, %s25, %s16
    %p27 = scmp.ge.s32.totalorder %s26, 2
    %s28 = scalar_select %p27, 0, %s26
    %s29 = ssub.s32 %s16, %s28
    %s30 = ssub.s32 %s17, %s24
    %s31 = sor.u32 %s29, %s30
    %p32 = scmp.eq.s32.totalorder %s31, 0
    %s34 = sadd.s32 %s33, 1
    %s35 = scalar_select %p32, %s33, %s34
    %p38 = pneg %p32
    %p39 = scmp.eq.s32.totalorder %s9, 3
    %p40 = por %p38, %p39
    %p41 = scmp.ne.s32.totalorder %s33, %s36
    %p42 = scmp.eq.s32.totalorder %s9, 0
    %p43 = por %p41, %p42
    %p44 = scmp.ne.s32.totalorder %s33, %s36
    %p45 = scmp.eq.s32.totalorder %s14, 3
    %p46 = por %p44, %p45
    %p47 = scmp.ne.s32.totalorder %s36, %s37
    %p48 = scmp.eq.s32.totalorder %s14, 0
    %p49 = por %p47, %p48
    %p50 = scmp.ne.s32.totalorder %s36, %s37
    %p51 = scmp.eq.s32.totalorder %s15, 3
    %p52 = por %p50, %p51
    %p54 = scmp.ne.s32.totalorder %s37, %s53
    %p55 = scmp.eq.s32.totalorder %s15, 0
    %p56 = por %p54, %p55
    %s58 = sadd.s32 %s57, 1
    %p61 = scmp.eq.s32.totalorder %s9, 3
    %p62 = scmp.ne.s32.totalorder %s57, %s59
    %p63 = scmp.eq.s32.totalorder %s9, 0
    %p64 = por %p62, %p63
    %p65 = scmp.ne.s32.totalorder %s57, %s59
    %p66 = scmp.eq.s32.totalorder %s14, 3
    %p67 = por %p65, %p66
    %p68 = scmp.ne.s32.totalorder %s59, %s60
    %p69 = scmp.eq.s32.totalorder %s14, 0
    %p70 = por %p68, %p69
    %p71 = scmp.ne.s32.totalorder %s59, %s60
    %p72 = scmp.eq.s32.totalorder %s15, 3
    %p73 = por %p71, %p72
    %p75 = scmp.ne.s32.totalorder %s60, %s74
    %p76 = scmp.eq.s32.totalorder %s15, 0
    %p77 = por %p75, %p76
    %s79 = sadd.s32 %s78, 1
    %p82 = scmp.eq.s32.totalorder %s9, 3
    %p83 = scmp.ne.s32.totalorder %s78, %s80
    %p84 = scmp.eq.s32.totalorder %s9, 0
    %p85 = por %p83, %p84
    %p86 = scmp.ne.s32.totalorder %s78, %s80
    %p87 = scmp.eq.s32.totalorder %s14, 3
    %p88 = por %p86, %p87
    %p89 = scmp.ne.s32.totalorder %s80, %s81
    %p90 = scmp.eq.s32.totalorder %s14, 0
    %p91 = por %p89, %p90
    %p92 = scmp.ne.s32.totalorder %s80, %s81
    %p93 = scmp.eq.s32.totalorder %s15, 3
    %p94 = por %p92, %p93
    %p96 = scmp.ne.s32.totalorder %s81, %s95
    %p97 = scmp.eq.s32.totalorder %s15, 0
    %p98 = por %p96, %p97
    %s99 = ssub.s32 %s16, %s28
    %s100 = ssub.s32 %s17, %s24
    %s101 = sor.u32 %s99, %s100
    %p102 = scmp.eq.s32.totalorder %s101, 0
    %s104 = sadd.s32 %s103, 1
    %s105 = scalar_select %p102, %s103, %s104
    %p108 = pneg %p102
    %p109 = scmp.eq.s32.totalorder %s9, 3
    %p110 = por %p108, %p109
    %p111 = scmp.ne.s32.totalorder %s103, %s106
    %p112 = scmp.eq.s32.totalorder %s9, 0
    %p113 = por %p111, %p112
    %p114 = scmp.ne.s32.totalorder %s103, %s106
    %p115 = scmp.eq.s32.totalorder %s14, 3
    %p116 = por %p114, %p115
    %p117 = scmp.ne.s32.totalorder %s106, %s107
    %p118 = scmp.eq.s32.totalorder %s14, 0
    %p119 = por %p117, %p118
    %p120 = scmp.ne.s32.totalorder %s106, %s107
    %p121 = scmp.eq.s32.totalorder %s15, 3
    %p122 = por %p120, %p121
    %p124 = scmp.ne.s32.totalorder %s107, %s123
    %p125 = scmp.eq.s32.totalorder %s15, 0
    %p126 = por %p124, %p125
    %p127 = scmp.le.s32.totalorder 1, %s9
    %p128 = scmp.lt.s32.totalorder %s9, 5
    %p129 = pnand %p127, %p128
    %p130 = pneg %p129
    // Predicated region
    $region9: #{unet_upsample.5} parent=5 // pred_check
      _
    $region10: #{unet_upsample.5} parent=5 // pred_check_branch
      %132 = sbr.rel (%p129) target = $region12
    $region11: #{unet_upsample.5} parent=5 // pred_region
      %s133 = ssub.s32 %s9, 1
      // Predicated region
      $region13: #{unet_upsample.5} parent=11 // pred_check
        %p134 = pneg %p70
      $region14: #{unet_upsample.5} parent=11 // pred_check_branch
        %136 = sbr.rel (%p134) target = $region16
      $region15: #{unet_upsample.5} parent=11 // pred_region
        _
      $region16: #{unet_upsample.5} parent=11 // pred_fallthru
        _
      // Predicated region
      $region17: #{unet_upsample.5} parent=11 // pred_check
        %p137 = pneg %p91
      $region18: #{unet_upsample.5} parent=11 // pred_check_branch
        %139 = sbr.rel (%p137) target = $region20
      $region19: #{unet_upsample.5} parent=11 // pred_region
        _
      $region20: #{unet_upsample.5} parent=11 // pred_fallthru
        _
    $region12: #{unet_upsample.5} parent=5 // pred_fallthru
      _
    %p140 = scmp.lt.s32.totalorder %s9, 4
    // Predicated region
    $region21: #{unet_upsample.5} parent=5 // pred_check
      %p141 = pneg %p140
    $region22: #{unet_upsample.5} parent=5 // pred_check_branch
      %143 = sbr.rel (%p141) target = $region24
    $region23: #{unet_upsample.5} parent=5 // pred_region
      // Predicated region
      $region25: #{unet_upsample.5} parent=23 // pred_check
        %p144 = pneg %p43
      $region26: #{unet_upsample.5} parent=23 // pred_check_branch
        %146 = sbr.rel (%p144) target = $region28
      $region27: #{unet_upsample.5} parent=23 // pred_region
        %s147 = smul.u32 16, %s17
        %p148 = scmp.lt.s32.totalorder %s16, 1
        %s149 = scalar_select %p148, %s16, 1
        %p150 = scmp.lt.s32.totalorder %s147, 31
        %s151 = scalar_select %p150, %s147, 31
        %s152 = smul.addr %s149, 32
        %s153 = sadd.s32 %s151, %s152
        %s154 = smul.addr %s153, 8
        %s155 = scalar_lea.vmem %s0, %s154
        %s156 = smul.u32 16, %s17
      $region28: #{unet_upsample.5} parent=23 // pred_fallthru
        _
    $region24: #{unet_upsample.5} parent=5 // pred_fallthru
      _
    %p157 = scmp.le.s32.totalorder 1, %s9
    %p158 = scmp.lt.s32.totalorder %s9, 5
    %p159 = pnand %p157, %p158
    %p160 = pneg %p159
    // Predicated region
    $region29: #{unet_upsample.5} parent=5 // pred_check
      _
    $region30: #{unet_upsample.5} parent=5 // pred_check_branch
      %162 = sbr.rel (%p159) target = $region32
    $region31: #{unet_upsample.5} parent=5 // pred_region
      %s163 = ssub.s32 %s9, 1
      %s164 = smul.u32 16, %s19
      %p165 = scmp.lt.s32.totalorder %s18, 1
      %s166 = scalar_select %p165, %s18, 1
      %p167 = scmp.lt.s32.totalorder %s164, 31
      %s168 = scalar_select %p167, %s164, 31
      %s169 = smul.addr %s166, 32
      %s170 = sadd.s32 %s168, %s169
      %s171 = smul.addr %s170, 8
      %s172 = scalar_lea.vmem %s0, %s171
      %p173 = pneg %p49
      %p174 = pneg %p46
      %p175 = pneg %p70
      %p176 = pneg %p67
      %p177 = pneg %p91
      %p178 = pneg %p88
      %p179 = pneg %p119
      %p180 = pneg %p116
      %s181 = smul.u32 16, %s19
      %p182 = scmp.lt.s32.totalorder %s18, 1
      %s183 = scalar_select %p182, %s18, 1
      %p184 = scmp.lt.s32.totalorder %s181, 31
      %s185 = scalar_select %p184, %s181, 31
      %s186 = smul.addr %s183, 32
      %s187 = sadd.s32 %s185, %s186
      %s188 = smul.addr %s187, 8
      %s189 = scalar_lea.vmem %s3, %s188
      %s190 = smul.u32 16, %s19
      %p191 = scmp.lt.s32.totalorder %s18, 1
      %s192 = scalar_select %p191, %s18, 1
      %p193 = scmp.lt.s32.totalorder %s190, 31
      %s194 = scalar_select %p193, %s190, 31
      %s195 = smul.addr %s192, 32
      %s196 = sadd.s32 %s194, %s195
      %s197 = smul.addr %s196, 8
      %s198 = scalar_lea.vmem %s0, %s197
      %s199 = smul.u32 16, %s19
      %s200 = smul.u32 16, %s19
      %p201 = scmp.lt.s32.totalorder %s18, 1
      %s202 = scalar_select %p201, %s18, 1
      %p203 = scmp.lt.s32.totalorder %s200, 31
      %s204 = scalar_select %p203, %s200, 31
      %s205 = smul.addr %s202, 32
      %s206 = sadd.s32 %s204, %s205
      %s207 = smul.addr %s206, 8
      %s208 = scalar_lea.vmem %s3, %s207
      %s209 = smul.u32 16, %s19
      %v210 = vld [vmem:[%s198] sm:$0xff]
      %v211 = vld [vmem:[%s198 + $0x8] sm:$0xff]
      %v212 = vld [vmem:[%s198 + $0x10] sm:$0xff]
      %v213 = vld [vmem:[%s198 + $0x18] sm:$0xff]
      %v214 = vld [vmem:[%s198 + $0x20] sm:$0xff]
      %v215 = vld [vmem:[%s198 + $0x28] sm:$0xff]
      %v216 = vld [vmem:[%s198 + $0x30] sm:$0xff]
      %v217 = vld [vmem:[%s198 + $0x38] sm:$0xff]
      %v218 = vld [vmem:[%s198 + $0x40] sm:$0xff]
      %v219 = vld [vmem:[%s198 + $0x48] sm:$0xff]
      %v220 = vld [vmem:[%s198 + $0x50] sm:$0xff]
      %v221 = vld [vmem:[%s198 + $0x58] sm:$0xff]
      %v222 = vld [vmem:[%s198 + $0x60] sm:$0xff]
      %v223 = vld [vmem:[%s198 + $0x68] sm:$0xff]
      %v224 = vld [vmem:[%s198 + $0x70] sm:$0xff]
      %v225 = vld [vmem:[%s198 + $0x78] sm:$0xff]
      %v226 = vld [vmem:[%s1] sm:$0xff]
      %228 = vset.pattern.permute.xlu0 0
      %229 = vperm.xlu0 %228, %v226
      %v230 = vpop.permute.xlu0 %229
      %v232 = vmul.f32 %v210, %v230
      %v233 = vmul.f32 %v211, %v230
      %v234 = vmul.f32 %v212, %v230
      %v235 = vmul.f32 %v213, %v230
      %v236 = vmul.f32 %v214, %v230
      %v237 = vmul.f32 %v215, %v230
      %v238 = vmul.f32 %v216, %v230
      %v239 = vmul.f32 %v217, %v230
      %v240 = vmul.f32 %v218, %v230
      %v241 = vmul.f32 %v219, %v230
      %v242 = vmul.f32 %v220, %v230
      %v243 = vmul.f32 %v221, %v230
      %v244 = vmul.f32 %v222, %v230
      %v245 = vmul.f32 %v223, %v230
      %v246 = vmul.f32 %v224, %v230
      %v247 = vmul.f32 %v225, %v230
      %v248 = vld [vmem:[%s2] sm:$0xff]
      %250 = vset.pattern.permute.xlu0 0
      %251 = vperm.xlu0 %250, %v248
      %v252 = vpop.permute.xlu0 %251
      %v254 = vadd.f32 %v232, %v252
      %v255 = vadd.f32 %v233, %v252
      %v256 = vadd.f32 %v234, %v252
      %v257 = vadd.f32 %v235, %v252
      %v258 = vadd.f32 %v236, %v252
      %v259 = vadd.f32 %v237, %v252
      %v260 = vadd.f32 %v238, %v252
      %v261 = vadd.f32 %v239, %v252
      %v262 = vadd.f32 %v240, %v252
      %v263 = vadd.f32 %v241, %v252
      %v264 = vadd.f32 %v242, %v252
      %v265 = vadd.f32 %v243, %v252
      %v266 = vadd.f32 %v244, %v252
      %v267 = vadd.f32 %v245, %v252
      %v268 = vadd.f32 %v246, %v252
      %v269 = vadd.f32 %v247, %v252
      %vm270 = vcmp.gt.f32.partialorder %v254, 0.0
      %vm271 = vcmp.gt.f32.partialorder %v255, 0.0
      %vm272 = vcmp.gt.f32.partialorder %v256, 0.0
      %vm273 = vcmp.gt.f32.partialorder %v257, 0.0
      %vm274 = vcmp.gt.f32.partialorder %v258, 0.0
      %vm275 = vcmp.gt.f32.partialorder %v259, 0.0
      %vm276 = vcmp.gt.f32.partialorder %v260, 0.0
      %vm277 = vcmp.gt.f32.partialorder %v261, 0.0
      %vm278 = vcmp.gt.f32.partialorder %v262, 0.0
      %vm279 = vcmp.gt.f32.partialorder %v263, 0.0
      %vm280 = vcmp.gt.f32.partialorder %v264, 0.0
      %vm281 = vcmp.gt.f32.partialorder %v265, 0.0
      %vm282 = vcmp.gt.f32.partialorder %v266, 0.0
      %vm283 = vcmp.gt.f32.partialorder %v267, 0.0
      %vm284 = vcmp.gt.f32.partialorder %v268, 0.0
      %vm285 = vcmp.gt.f32.partialorder %v269, 0.0
      %v286 = vmul.f32 %v254, 0.01
      %v287 = vmul.f32 %v255, 0.01
      %v288 = vmul.f32 %v256, 0.01
      %v289 = vmul.f32 %v257, 0.01
      %v290 = vmul.f32 %v258, 0.01
      %v291 = vmul.f32 %v259, 0.01
      %v292 = vmul.f32 %v260, 0.01
      %v293 = vmul.f32 %v261, 0.01
      %v294 = vmul.f32 %v262, 0.01
      %v295 = vmul.f32 %v263, 0.01
      %v296 = vmul.f32 %v264, 0.01
      %v297 = vmul.f32 %v265, 0.01
      %v298 = vmul.f32 %v266, 0.01
      %v299 = vmul.f32 %v267, 0.01
      %v300 = vmul.f32 %v268, 0.01
      %v301 = vmul.f32 %v269, 0.01
      %v302 = vsel %vm270, %v254, %v286
      %v303 = vsel %vm271, %v255, %v287
      %v304 = vsel %vm272, %v256, %v288
      %v305 = vsel %vm273, %v257, %v289
      %v306 = vsel %vm274, %v258, %v290
      %v307 = vsel %vm275, %v259, %v291
      %v308 = vsel %vm276, %v260, %v292
      %v309 = vsel %vm277, %v261, %v293
      %v310 = vsel %vm278, %v262, %v294
      %v311 = vsel %vm279, %v263, %v295
      %v312 = vsel %vm280, %v264, %v296
      %v313 = vsel %vm281, %v265, %v297
      %v314 = vsel %vm282, %v266, %v298
      %v315 = vsel %vm283, %v267, %v299
      %v316 = vsel %vm284, %v268, %v300
      %v317 = vsel %vm285, %v269, %v301
      %318 = vst [vmem:[%s208] sm:$0xff] %v302
      %319 = vst [vmem:[%s208 + $0x8] sm:$0xff] %v303
      %320 = vst [vmem:[%s208 + $0x10] sm:$0xff] %v304
      %321 = vst [vmem:[%s208 + $0x18] sm:$0xff] %v305
      %322 = vst [vmem:[%s208 + $0x20] sm:$0xff] %v306
      %323 = vst [vmem:[%s208 + $0x28] sm:$0xff] %v307
      %324 = vst [vmem:[%s208 + $0x30] sm:$0xff] %v308
      %325 = vst [vmem:[%s208 + $0x38] sm:$0xff] %v309
      %326 = vst [vmem:[%s208 + $0x40] sm:$0xff] %v310
      %327 = vst [vmem:[%s208 + $0x48] sm:$0xff] %v311
      %328 = vst [vmem:[%s208 + $0x50] sm:$0xff] %v312
      %329 = vst [vmem:[%s208 + $0x58] sm:$0xff] %v313
      %330 = vst [vmem:[%s208 + $0x60] sm:$0xff] %v314
      %331 = vst [vmem:[%s208 + $0x68] sm:$0xff] %v315
      %332 = vst [vmem:[%s208 + $0x70] sm:$0xff] %v316
      %333 = vst [vmem:[%s208 + $0x78] sm:$0xff] %v317
      %s334 = smul.u32 16, %s19
      %p335 = scmp.lt.s32.totalorder %s18, 1
      %s336 = scalar_select %p335, %s18, 1
      %p337 = scmp.lt.s32.totalorder %s334, 31
      %s338 = scalar_select %p337, %s334, 31
      %s339 = smul.addr %s336, 32
      %s340 = sadd.s32 %s338, %s339
      %s341 = smul.addr %s340, 8
      %s342 = scalar_lea.vmem %s3, %s341
      // Predicated region
      $region33: #{unet_upsample.5} parent=31 // pred_check
        %p343 = pneg %p116
      $region34: #{unet_upsample.5} parent=31 // pred_check_branch
        %345 = sbr.rel (%p343) target = $region36
      $region35: #{unet_upsample.5} parent=31 // pred_region
        %s346 = smul.u32 16, %s19
      $region36: #{unet_upsample.5} parent=31 // pred_fallthru
        _
    $region32: #{unet_upsample.5} parent=5 // pred_fallthru
      _
    %p347 = scmp.le.s32.totalorder 2, %s9
    // Predicated region
    $region37: #{unet_upsample.5} parent=5 // pred_check
      %p348 = pneg %p347
    $region38: #{unet_upsample.5} parent=5 // pred_check_branch
      %350 = sbr.rel (%p348) target = $region40
    $region39: #{unet_upsample.5} parent=5 // pred_region
      %s351 = ssub.s32 %s9, 2
      // Predicated region
      $region41: #{unet_upsample.5} parent=39 // pred_check
        %p352 = pneg %p122
      $region42: #{unet_upsample.5} parent=39 // pred_check_branch
        %354 = sbr.rel (%p352) target = $region44
      $region43: #{unet_upsample.5} parent=39 // pred_region
        %s355 = smul.u32 16, %s21
        %p356 = scmp.lt.s32.totalorder %s20, 1
        %s357 = scalar_select %p356, %s20, 1
        %p358 = scmp.lt.s32.totalorder %s355, 31
        %s359 = scalar_select %p358, %s355, 31
        %s360 = smul.addr %s357, 32
        %s361 = sadd.s32 %s359, %s360
        %s362 = smul.addr %s361, 8
        %s363 = scalar_lea.vmem %s3, %s362
      $region44: #{unet_upsample.5} parent=39 // pred_fallthru
        _
    $region40: #{unet_upsample.5} parent=5 // pred_fallthru
      _
  $region6: #{unet_upsample.5} parent=0 // loop_footer
    %s13 = sadd.s32 1, %s9
  $region7: #{unet_upsample.5} parent=0 // loop_footer_branch
    %8 = sbr.rel target = $region3
  $region8: #{unet_upsample.5} parent=0 // loop_exit
    _

// kernel: unet_upsample.3
$region0: #{unet_upsample.3}
  #allocation0 [shape = 'u32[]', space=smem, size = 0x4, offset = 0x4, fixed_abs, tag = 'smem constant byte address 0x4 - core index']
  #allocation1 [shape = 'u32[144,128]{1,0:T(1,128)}', space=vmem, size = 0x12000, scoped, tag = 'internal scratch']
  %s0 = inlined_call_operand.vmem [shape: f32[4,27], index: 0, kind: input, shape index: {}]
  %s1 = inlined_call_operand.vmem [shape: f32[2,4,18,18,18], index: 1, kind: input, shape index: {}]
  %s2 = inlined_call_operand.vmem [shape: f32[2,4,16,16,16], index: 2, kind: output, shape index: {0}]
  %s3 = inlined_call_operand.vmem [shape: f32[2,4,2,128], index: 3, kind: output, shape index: {1}]
  %4 = xla_tuple %s2, %s3
  %s5 = sld [smem:[#allocation0]]
  $region53: #{unet_upsample.3} parent=0
    _
  %s7 = ssub.s32 1, %s5
  %s8 = scalar_select 0, %s7, %s5
  $region1: #{unet_upsample.3} parent=0
    #allocation2 [shape = 'u8[2048]{0}', space=smem, size = 0x800, scoped, tag = 'input window, operand 0, single buffered']
    #allocation3 [shape = 's32[2]{0}', space=sflag, size = 0x8, scoped, tag = 'scoped memory for unet_upsample.3']
    %9 = vsyncpa [#allocation3], 0
    loop: start=0, step=1, limit=10
    $region2: #{unet_upsample.3} parent=1 // loop_pre_header
      _
    $region3: #{unet_upsample.3} parent=1 // loop_header
      %s11 = sphi 0, %s15
      %p12 = scmp.ge.s32.totalorder %s11, 10
      %s18 = sphi 0, %s30
      %s19 = sphi 0, %s26
      %s20 = sphi 0, %s18
      %s21 = sphi 0, %s19
      %s22 = sphi 0, %s20
      %s23 = sphi 0, %s21
      %s31 = sphi 0, %s31
      %s33 = sphi 0, %s31
      %s34 = sphi 0, %s33
      %s48 = sphi 0, %s34
      %s56 = sphi 0, %s58
      %s59 = sphi 0, %s56
      %s60 = sphi 0, %s59
      %s76 = sphi 0, %s60
      %s84 = sphi 0, %s86
      %s87 = sphi 0, %s84
      %s88 = sphi 0, %s87
      %s104 = sphi 0, %s88
      %s112 = sphi 0, %s114
      %s115 = sphi 0, %s112
      %s116 = sphi 0, %s115
      %s132 = sphi 0, %s116
    $region4: #{unet_upsample.3} parent=1 // loop_header_branch
      %14 = sbr.rel (%p12) target = $region8
    $region5: #{unet_upsample.3} parent=1 // loop_body
      %s16 = ssub.s32 %s11, 1
      %s17 = ssub.s32 %s11, 2
      %s24 = sadd.s32 1, %s19
      %p25 = scmp.ge.s32.totalorder %s24, 4
      %s26 = scalar_select %p25, 0, %s24
      %s27 = sadd.s32 1, %s18
      %s28 = scalar_select %p25, %s27, %s18
      %p29 = scmp.ge.s32.totalorder %s28, 2
      %s30 = scalar_select %p29, 0, %s28
      %s32 = sadd.s32 %s31, 1
      %p35 = scmp.eq.s32.totalorder %s11, 7
      %p36 = scmp.ne.s32.totalorder %s31, %s33
      %p37 = scmp.eq.s32.totalorder %s11, 0
      %p38 = por %p36, %p37
      %p39 = scmp.ne.s32.totalorder %s31, %s33
      %p40 = scmp.eq.s32.totalorder %s16, 7
      %p41 = por %p39, %p40
      %p42 = scmp.ne.s32.totalorder %s33, %s34
      %p43 = scmp.eq.s32.totalorder %s16, 0
      %p44 = por %p42, %p43
      %p45 = scmp.ne.s32.totalorder %s33, %s34
      %p46 = scmp.eq.s32.totalorder %s17, 7
      %p47 = por %p45, %p46
      %p49 = scmp.ne.s32.totalorder %s34, %s48
      %p50 = scmp.eq.s32.totalorder %s17, 0
      %p51 = por %p49, %p50
      %s52 = ssub.s32 %s18, %s30
      %s53 = ssub.s32 %s19, %s26
      %s54 = sor.u32 %s52, %s53
      %p55 = scmp.eq.s32.totalorder %s54, 0
      %s57 = sadd.s32 %s56, 1
      %s58 = scalar_select %p55, %s56, %s57
      %p61 = pneg %p55
      %p62 = scmp.eq.s32.totalorder %s11, 7
      %p63 = por %p61, %p62
      %p64 = scmp.ne.s32.totalorder %s56, %s59
      %p65 = scmp.eq.s32.totalorder %s11, 0
      %p66 = por %p64, %p65
      %p67 = scmp.ne.s32.totalorder %s56, %s59
      %p68 = scmp.eq.s32.totalorder %s16, 7
      %p69 = por %p67, %p68
      %p70 = scmp.ne.s32.totalorder %s59, %s60
      %p71 = scmp.eq.s32.totalorder %s16, 0
      %p72 = por %p70, %p71
      %p73 = scmp.ne.s32.totalorder %s59, %s60
      %p74 = scmp.eq.s32.totalorder %s17, 7
      %p75 = por %p73, %p74
      %p77 = scmp.ne.s32.totalorder %s60, %s76
      %p78 = scmp.eq.s32.totalorder %s17, 0
      %p79 = por %p77, %p78
      %s80 = ssub.s32 %s18, %s30
      %s81 = ssub.s32 %s19, %s26
      %s82 = sor.u32 %s80, %s81
      %p83 = scmp.eq.s32.totalorder %s82, 0
      %s85 = sadd.s32 %s84, 1
      %s86 = scalar_select %p83, %s84, %s85
      %p89 = pneg %p83
      %p90 = scmp.eq.s32.totalorder %s11, 7
      %p91 = por %p89, %p90
      %p92 = scmp.ne.s32.totalorder %s84, %s87
      %p93 = scmp.eq.s32.totalorder %s11, 0
      %p94 = por %p92, %p93
      %p95 = scmp.ne.s32.totalorder %s84, %s87
      %p96 = scmp.eq.s32.totalorder %s16, 7
      %p97 = por %p95, %p96
      %p98 = scmp.ne.s32.totalorder %s87, %s88
      %p99 = scmp.eq.s32.totalorder %s16, 0
      %p100 = por %p98, %p99
      %p101 = scmp.ne.s32.totalorder %s87, %s88
      %p102 = scmp.eq.s32.totalorder %s17, 7
      %p103 = por %p101, %p102
      %p105 = scmp.ne.s32.totalorder %s88, %s104
      %p106 = scmp.eq.s32.totalorder %s17, 0
      %p107 = por %p105, %p106
      %s108 = ssub.s32 %s18, %s30
      %s109 = ssub.s32 %s19, %s26
      %s110 = sor.u32 %s108, %s109
      %p111 = scmp.eq.s32.totalorder %s110, 0
      %s113 = sadd.s32 %s112, 1
      %s114 = scalar_select %p111, %s112, %s113
      %p117 = pneg %p111
      %p118 = scmp.eq.s32.totalorder %s11, 7
      %p119 = por %p117, %p118
      %p120 = scmp.ne.s32.totalorder %s112, %s115
      %p121 = scmp.eq.s32.totalorder %s11, 0
      %p122 = por %p120, %p121
      %p123 = scmp.ne.s32.totalorder %s112, %s115
      %p124 = scmp.eq.s32.totalorder %s16, 7
      %p125 = por %p123, %p124
      %p126 = scmp.ne.s32.totalorder %s115, %s116
      %p127 = scmp.eq.s32.totalorder %s16, 0
      %p128 = por %p126, %p127
      %p129 = scmp.ne.s32.totalorder %s115, %s116
      %p130 = scmp.eq.s32.totalorder %s17, 7
      %p131 = por %p129, %p130
      %p133 = scmp.ne.s32.totalorder %s116, %s132
      %p134 = scmp.eq.s32.totalorder %s17, 0
      %p135 = por %p133, %p134
      %p136 = scmp.le.s32.totalorder 1, %s11
      %p137 = scmp.lt.s32.totalorder %s11, 9
      %p138 = pnand %p136, %p137
      %p139 = pneg %p138
      // Predicated region
      $region9: #{unet_upsample.3} parent=5 // pred_check
        _
      $region10: #{unet_upsample.3} parent=5 // pred_check_branch
        %141 = sbr.rel (%p138) target = $region12
      $region11: #{unet_upsample.3} parent=5 // pred_region
        %s142 = ssub.s32 %s11, 1
        // Predicated region
        $region13: #{unet_upsample.3} parent=11 // pred_check
          %p143 = pneg %p44
        $region14: #{unet_upsample.3} parent=11 // pred_check_branch
          %145 = sbr.rel (%p143) target = $region16
        $region15: #{unet_upsample.3} parent=11 // pred_region
          %s147 = ssub.s32 64, 64
          %148 = vsyncadd [#allocation3], %s147
          %s150 = sshll.u32 %s0, 4
          %s151 = int_to_ptr.vmem [resolvable:$true] %s150
          %153 = dma.vmem_to_smem %s151, 64, [#allocation2], [#allocation3]
        $region16: #{unet_upsample.3} parent=11 // pred_fallthru
          _
      $region12: #{unet_upsample.3} parent=5 // pred_fallthru
        _
      %p154 = scmp.lt.s32.totalorder %s11, 8
      // Predicated region
      $region17: #{unet_upsample.3} parent=5 // pred_check
        %p155 = pneg %p154
      $region18: #{unet_upsample.3} parent=5 // pred_check_branch
        %157 = sbr.rel (%p155) target = $region20
      $region19: #{unet_upsample.3} parent=5 // pred_region
        // Predicated region
        $region21: #{unet_upsample.3} parent=19 // pred_check
          %p158 = pneg %p66
        $region22: #{unet_upsample.3} parent=19 // pred_check_branch
          %160 = sbr.rel (%p158) target = $region24
        $region23: #{unet_upsample.3} parent=19 // pred_region
          %p161 = scmp.lt.s32.totalorder %s18, 1
          %s162 = scalar_select %p161, %s18, 1
          %p163 = scmp.lt.s32.totalorder %s19, 3
          %s164 = scalar_select %p163, %s19, 3
          %s165 = smul.addr %s164, 54
          %s166 = smul.addr %s162, 216
          %s167 = sadd.s32 %s165, %s166
          %s168 = smul.addr %s167, 8
          %s169 = scalar_lea.vmem %s1, %s168
        $region24: #{unet_upsample.3} parent=19 // pred_fallthru
          _
      $region20: #{unet_upsample.3} parent=5 // pred_fallthru
        _
      %p170 = scmp.le.s32.totalorder 1, %s11
      %p171 = scmp.lt.s32.totalorder %s11, 9
      %p172 = pnand %p170, %p171
      %p173 = pneg %p172
      // Predicated region
      $region25: #{unet_upsample.3} parent=5 // pred_check
        _
      $region26: #{unet_upsample.3} parent=5 // pred_check_branch
        %175 = sbr.rel (%p172) target = $region28
      $region27: #{unet_upsample.3} parent=5 // pred_region
        %s176 = ssub.s32 %s11, 1
        // Predicated region
        $region29: #{unet_upsample.3} parent=27 // pred_check
          %p177 = pneg %p44
        $region30: #{unet_upsample.3} parent=27 // pred_check_branch
          %179 = sbr.rel (%p177) target = $region32
        $region31: #{unet_upsample.3} parent=27 // pred_region
          %180 = dma.done [#allocation3], 64
        $region32: #{unet_upsample.3} parent=27 // pred_fallthru
          _
        %181 = sfence
        %p182 = pneg %p44
        %p183 = pneg %p41
        %p184 = scmp.lt.s32.totalorder %s20, 1
        %s185 = scalar_select %p184, %s20, 1
        %p186 = scmp.lt.s32.totalorder %s21, 3
        %s187 = scalar_select %p186, %s21, 3
        %s188 = smul.addr %s187, 54
        %s189 = smul.addr %s185, 216
        %s190 = sadd.s32 %s188, %s189
        %s191 = smul.addr %s190, 8
        %s192 = scalar_lea.vmem %s1, %s191
        %p193 = pneg %p72
        %p194 = pneg %p69
        %p195 = pneg %p100
        %p196 = pneg %p97
        %p197 = scmp.lt.s32.totalorder %s20, 1
        %s198 = scalar_select %p197, %s20, 1
        %p199 = scmp.lt.s32.totalorder %s21, 3
        %s200 = scalar_select %p199, %s21, 3
        %s201 = smul.addr %s200, 32
        %s202 = smul.addr %s198, 128
        %s203 = sadd.s32 %s201, %s202
        %s204 = smul.addr %s203, 8
        %s205 = scalar_lea.vmem %s2, %s204
        %p206 = pneg %p128
        %p207 = pneg %p125
        %p208 = scmp.lt.s32.totalorder %s20, 1
        %s209 = scalar_select %p208, %s20, 1
        %p210 = scmp.lt.s32.totalorder %s21, 3
        %s211 = scalar_select %p210, %s21, 3
        %s212 = smul.addr %s209, 4
        %s213 = sadd.s32 %s211, %s212
        %s214 = smul.addr %s213, 2
        %s215 = scalar_lea.vmem %s3, %s214
        %p216 = scmp.lt.s32.totalorder %s20, 1
        %s217 = scalar_select %p216, %s20, 1
        %p218 = scmp.lt.s32.totalorder %s21, 3
        %s219 = scalar_select %p218, %s21, 3
        %s220 = smul.addr %s219, 54
        %s221 = smul.addr %s217, 216
        %s222 = sadd.s32 %s220, %s221
        %s223 = smul.addr %s222, 8
        %s224 = scalar_lea.vmem %s1, %s223
        %p225 = scmp.lt.s32.totalorder %s20, 1
        %s226 = scalar_select %p225, %s20, 1
        %p227 = scmp.lt.s32.totalorder %s21, 3
        %s228 = scalar_select %p227, %s21, 3
        %s229 = smul.addr %s228, 32
        %s230 = smul.addr %s226, 128
        %s231 = sadd.s32 %s229, %s230
        %s232 = smul.addr %s231, 8
        %s233 = scalar_lea.vmem %s2, %s232
        %p234 = scmp.lt.s32.totalorder %s20, 1
        %s235 = scalar_select %p234, %s20, 1
        %p236 = scmp.lt.s32.totalorder %s21, 3
        %s237 = scalar_select %p236, %s21, 3
        %s238 = smul.addr %s235, 4
        %s239 = sadd.s32 %s237, %s238
        %s240 = smul.addr %s239, 2
        %s241 = scalar_lea.vmem %s3, %s240
        %s242 = smul.u32 %s21, 128
        %s243 = sld [smem:[#allocation2 + %s242]]
        %v244 = vld [vmem:[%s224] sm:$0xff]
        %v245 = vld [vmem:[%s224 + $0x8] sm:$0xff]
        %v246 = vld [vmem:[%s224 + $0x18] sm:$0xff]
        %v247 = vld [vmem:[%s224 + $0x20] sm:$0xff]
        %v248 = vld [vmem:[%s224 + $0x30] sm:$0xff]
        %v249 = vld [vmem:[%s224 + $0x38] sm:$0xff]
        %v250 = vld [vmem:[%s224 + $0x48] sm:$0xff]
        %v251 = vld [vmem:[%s224 + $0x50] sm:$0xff]
        %v252 = vld [vmem:[%s224 + $0x60] sm:$0xff]
        %v253 = vld [vmem:[%s224 + $0x68] sm:$0xff]
        %v254 = vld [vmem:[%s224 + $0x78] sm:$0xff]
        %v255 = vld [vmem:[%s224 + $0x80] sm:$0xff]
        %v256 = vld [vmem:[%s224 + $0x90] sm:$0xff]
        %v257 = vld [vmem:[%s224 + $0x98] sm:$0xff]
        %v258 = vld [vmem:[%s224 + $0xa8] sm:$0xff]
        %v259 = vld [vmem:[%s224 + $0xb0] sm:$0xff]
        %v260 = vld [vmem:[%s224 + $0xc0] sm:$0xff]
        %v261 = vld [vmem:[%s224 + $0xc8] sm:$0xff]
        %v262 = vld [vmem:[%s224 + $0xd8] sm:$0xff]
        %v263 = vld [vmem:[%s224 + $0xe0] sm:$0xff]
        %v264 = vld [vmem:[%s224 + $0xf0] sm:$0xff]
        %v265 = vld [vmem:[%s224 + $0xf8] sm:$0xff]
        %v266 = vld [vmem:[%s224 + $0x108] sm:$0xff]
        %v267 = vld [vmem:[%s224 + $0x110] sm:$0xff]
        %v268 = vld [vmem:[%s224 + $0x120] sm:$0xff]
        %v269 = vld [vmem:[%s224 + $0x128] sm:$0xff]
        %v270 = vld [vmem:[%s224 + $0x138] sm:$0xff]
        %v271 = vld [vmem:[%s224 + $0x140] sm:$0xff]
        %v272 = vld [vmem:[%s224 + $0x150] sm:$0xff]
        %v273 = vld [vmem:[%s224 + $0x158] sm:$0xff]
        %v274 = vld [vmem:[%s224 + $0x168] sm:$0xff]
        %v275 = vld [vmem:[%s224 + $0x170] sm:$0xff]
        %v276 = vstv %s243
        %v277 = vmul.f32 %v276, %v244
        %v278 = vmul.f32 %v276, %v245
        %v279 = vmul.f32 %v276, %v246
        %v280 = vmul.f32 %v276, %v247
        %v281 = vmul.f32 %v276, %v248
        %v282 = vmul.f32 %v276, %v249
        %v283 = vmul.f32 %v276, %v250
        %v284 = vmul.f32 %v276, %v251
        %v285 = vmul.f32 %v276, %v252
        %v286 = vmul.f32 %v276, %v253
        %v287 = vmul.f32 %v276, %v254
        %v288 = vmul.f32 %v276, %v255
        %v289 = vmul.f32 %v276, %v256
        %v290 = vmul.f32 %v276, %v257
        %v291 = vmul.f32 %v276, %v258
        %v292 = vmul.f32 %v276, %v259
        %v293 = vmul.f32 %v276, %v260
        %v294 = vmul.f32 %v276, %v261
        %v295 = vmul.f32 %v276, %v262
        %v296 = vmul.f32 %v276, %v263
        %v297 = vmul.f32 %v276, %v264
        %v298 = vmul.f32 %v276, %v265
        %v299 = vmul.f32 %v276, %v266
        %v300 = vmul.f32 %v276, %v267
        %v301 = vmul.f32 %v276, %v268
        %v302 = vmul.f32 %v276, %v269
        %v303 = vmul.f32 %v276, %v270
        %v304 = vmul.f32 %v276, %v271
        %v305 = vmul.f32 %v276, %v272
        %v306 = vmul.f32 %v276, %v273
        %v307 = vmul.f32 %v276, %v274
        %v308 = vmul.f32 %v276, %v275
        %v309 = vadd.f32 %v277, 0.0
        %v310 = vadd.f32 %v278, 0.0
        %v311 = vadd.f32 %v279, 0.0
        %v312 = vadd.f32 %v280, 0.0
        %v313 = vadd.f32 %v281, 0.0
        %v314 = vadd.f32 %v282, 0.0
        %v315 = vadd.f32 %v283, 0.0
        %v316 = vadd.f32 %v284, 0.0
        %v317 = vadd.f32 %v285, 0.0
        %v318 = vadd.f32 %v286, 0.0
        %v319 = vadd.f32 %v287, 0.0
        %v320 = vadd.f32 %v288, 0.0
        %v321 = vadd.f32 %v289, 0.0
        %v322 = vadd.f32 %v290, 0.0
        %v323 = vadd.f32 %v291, 0.0
        %v324 = vadd.f32 %v292, 0.0
        %v325 = vadd.f32 %v293, 0.0
        %v326 = vadd.f32 %v294, 0.0
        %v327 = vadd.f32 %v295, 0.0
        %v328 = vadd.f32 %v296, 0.0
        %v329 = vadd.f32 %v297, 0.0
        %v330 = vadd.f32 %v298, 0.0
        %v331 = vadd.f32 %v299, 0.0
        %v332 = vadd.f32 %v300, 0.0
        %v333 = vadd.f32 %v301, 0.0
        %v334 = vadd.f32 %v302, 0.0
        %v335 = vadd.f32 %v303, 0.0
        %v336 = vadd.f32 %v304, 0.0
        %v337 = vadd.f32 %v305, 0.0
        %v338 = vadd.f32 %v306, 0.0
        %v339 = vadd.f32 %v307, 0.0
        %v340 = vadd.f32 %v308, 0.0
        %s341 = sadd.s32 %s242, 1
        %s342 = sld [smem:[#allocation2 + %s341]]
        %v343 = vstv %s342
        %v344 = vmul.f32 %v343, %v244
        %v345 = vmul.f32 %v343, %v245
        %v346 = vmul.f32 %v343, %v246
        %v347 = vmul.f32 %v343, %v247
        %v348 = vmul.f32 %v343, %v248
        %v349 = vmul.f32 %v343, %v249
        %v350 = vmul.f32 %v343, %v250
        %v351 = vmul.f32 %v343, %v251
        %v352 = vmul.f32 %v343, %v252
        %v353 = vmul.f32 %v343, %v253
        %v354 = vmul.f32 %v343, %v254
        %v355 = vmul.f32 %v343, %v255
        %v356 = vmul.f32 %v343, %v256
        %v357 = vmul.f32 %v343, %v257
        %v358 = vmul.f32 %v343, %v258
        %v359 = vmul.f32 %v343, %v259
        %v360 = vmul.f32 %v343, %v260
        %v361 = vmul.f32 %v343, %v261
        %v362 = vmul.f32 %v343, %v262
        %v363 = vmul.f32 %v343, %v263
        %v364 = vmul.f32 %v343, %v264
        %v365 = vmul.f32 %v343, %v265
        %v366 = vmul.f32 %v343, %v266
        %v367 = vmul.f32 %v343, %v267
        %v368 = vmul.f32 %v343, %v268
        %v369 = vmul.f32 %v343, %v269
        %v370 = vmul.f32 %v343, %v270
        %v371 = vmul.f32 %v343, %v271
        %v372 = vmul.f32 %v343, %v272
        %v373 = vmul.f32 %v343, %v273
        %v374 = vmul.f32 %v343, %v274
        %v375 = vmul.f32 %v343, %v275
        %408 = vrot.lane.b32.xlu0 %v344, 127
        %v409 = vpop.permute.xlu0 %408
        %410 = vrot.lane.b32.xlu0 %v345, 127
        %v411 = vpop.permute.xlu0 %410
        %412 = vrot.lane.b32.xlu0 %v346, 127
        %v413 = vpop.permute.xlu0 %412
        %414 = vrot.lane.b32.xlu0 %v347, 127
        %v415 = vpop.permute.xlu0 %414
        %416 = vrot.lane.b32.xlu0 %v348, 127
        %v417 = vpop.permute.xlu0 %416
        %418 = vrot.lane.b32.xlu0 %v349, 127
        %v419 = vpop.permute.xlu0 %418
        %420 = vrot.lane.b32.xlu0 %v350, 127
        %v421 = vpop.permute.xlu0 %420
        %422 = vrot.lane.b32.xlu0 %v351, 127
        %v423 = vpop.permute.xlu0 %422
        %424 = vrot.lane.b32.xlu0 %v352, 127
        %v425 = vpop.permute.xlu0 %424
        %426 = vrot.lane.b32.xlu0 %v353, 127
        %v427 = vpop.permute.xlu0 %426
        %428 = vrot.lane.b32.xlu0 %v354, 127
        %v429 = vpop.permute.xlu0 %428
        %430 = vrot.lane.b32.xlu0 %v355, 127
        %v431 = vpop.permute.xlu0 %430
        %432 = vrot.lane.b32.xlu0 %v356, 127
        %v433 = vpop.permute.xlu0 %432
        %434 = vrot.lane.b32.xlu0 %v357, 127
        %v435 = vpop.permute.xlu0 %434
        %436 = vrot.lane.b32.xlu0 %v358, 127
        %v437 = vpop.permute.xlu0 %436
        %438 = vrot.lane.b32.xlu0 %v359, 127
        %v439 = vpop.permute.xlu0 %438
        %440 = vrot.lane.b32.xlu0 %v360, 127
        %v441 = vpop.permute.xlu0 %440
        %442 = vrot.lane.b32.xlu0 %v361, 127
        %v443 = vpop.permute.xlu0 %442
        %444 = vrot.lane.b32.xlu0 %v362, 127
        %v445 = vpop.permute.xlu0 %444
        %446 = vrot.lane.b32.xlu0 %v363, 127
        %v447 = vpop.permute.xlu0 %446
        %448 = vrot.lane.b32.xlu0 %v364, 127
        %v449 = vpop.permute.xlu0 %448
        %450 = vrot.lane.b32.xlu0 %v365, 127
        %v451 = vpop.permute.xlu0 %450
        %452 = vrot.lane.b32.xlu0 %v366, 127
        %v453 = vpop.permute.xlu0 %452
        %454 = vrot.lane.b32.xlu0 %v367, 127
        %v455 = vpop.permute.xlu0 %454
        %456 = vrot.lane.b32.xlu0 %v368, 127
        %v457 = vpop.permute.xlu0 %456
        %458 = vrot.lane.b32.xlu0 %v369, 127
        %v459 = vpop.permute.xlu0 %458
        %460 = vrot.lane.b32.xlu0 %v370, 127
        %v461 = vpop.permute.xlu0 %460
        %462 = vrot.lane.b32.xlu0 %v371, 127
        %v463 = vpop.permute.xlu0 %462
        %464 = vrot.lane.b32.xlu0 %v372, 127
        %v465 = vpop.permute.xlu0 %464
        %466 = vrot.lane.b32.xlu0 %v373, 127
        %v467 = vpop.permute.xlu0 %466
        %468 = vrot.lane.b32.xlu0 %v374, 127
        %v469 = vpop.permute.xlu0 %468
        %470 = vrot.lane.b32.xlu0 %v375, 127
        %v471 = vpop.permute.xlu0 %470
        %v504 = vadd.f32 %v309, %v409
        %v505 = vadd.f32 %v310, %v411
        %v506 = vadd.f32 %v311, %v413
        %v507 = vadd.f32 %v312, %v415
        %v508 = vadd.f32 %v313, %v417
        %v509 = vadd.f32 %v314, %v419
        %v510 = vadd.f32 %v315, %v421
        %v511 = vadd.f32 %v316, %v423
        %v512 = vadd.f32 %v317, %v425
        %v513 = vadd.f32 %v318, %v427
        %v514 = vadd.f32 %v319, %v429
        %v515 = vadd.f32 %v320, %v431
        %v516 = vadd.f32 %v321, %v433
        %v517 = vadd.f32 %v322, %v435
        %v518 = vadd.f32 %v323, %v437
        %v519 = vadd.f32 %v324, %v439
        %v520 = vadd.f32 %v325, %v441
        %v521 = vadd.f32 %v326, %v443
        %v522 = vadd.f32 %v327, %v445
        %v523 = vadd.f32 %v328, %v447
        %v524 = vadd.f32 %v329, %v449
        %v525 = vadd.f32 %v330, %v451
        %v526 = vadd.f32 %v331, %v453
        %v527 = vadd.f32 %v332, %v455
        %v528 = vadd.f32 %v333, %v457
        %v529 = vadd.f32 %v334, %v459
        %v530 = vadd.f32 %v335, %v461
        %v531 = vadd.f32 %v336, %v463
        %v532 = vadd.f32 %v337, %v465
        %v533 = vadd.f32 %v338, %v467
        %v534 = vadd.f32 %v339, %v469
        %v535 = vadd.f32 %v340, %v471
        %s536 = sadd.s32 %s242, 2
        %s537 = sld [smem:[#allocation2 + %s536]]
        %v538 = vstv %s537
        %v539 = vmul.f32 %v538, %v244
        %v540 = vmul.f32 %v538, %v245
        %v541 = vmul.f32 %v538, %v246
        %v542 = vmul.f32 %v538, %v247
        %v543 = vmul.f32 %v538, %v248
        %v544 = vmul.f32 %v538, %v249
        %v545 = vmul.f32 %v538, %v250
        %v546 = vmul.f32 %v538, %v251
        %v547 = vmul.f32 %v538, %v252
        %v548 = vmul.f32 %v538, %v253
        %v549 = vmul.f32 %v538, %v254
        %v550 = vmul.f32 %v538, %v255
        %v551 = vmul.f32 %v538, %v256
        %v552 = vmul.f32 %v538, %v257
        %v553 = vmul.f32 %v538, %v258
        %v554 = vmul.f32 %v538, %v259
        %v555 = vmul.f32 %v538, %v260
        %v556 = vmul.f32 %v538, %v261
        %v557 = vmul.f32 %v538, %v262
        %v558 = vmul.f32 %v538, %v263
        %v559 = vmul.f32 %v538, %v264
        %v560 = vmul.f32 %v538, %v265
        %v561 = vmul.f32 %v538, %v266
        %v562 = vmul.f32 %v538, %v267
        %v563 = vmul.f32 %v538, %v268
        %v564 = vmul.f32 %v538, %v269
        %v565 = vmul.f32 %v538, %v270
        %v566 = vmul.f32 %v538, %v271
        %v567 = vmul.f32 %v538, %v272
        %v568 = vmul.f32 %v538, %v273
        %v569 = vmul.f32 %v538, %v274
        %v570 = vmul.f32 %v538, %v275
        %603 = vrot.lane.b32.xlu0 %v539, 126
        %v604 = vpop.permute.xlu0 %603
        %605 = vrot.lane.b32.xlu0 %v540, 126
        %v606 = vpop.permute.xlu0 %605
        %607 = vrot.lane.b32.xlu0 %v541, 126
        %v608 = vpop.permute.xlu0 %607
        %609 = vrot.lane.b32.xlu0 %v542, 126
        %v610 = vpop.permute.xlu0 %609
        %611 = vrot.lane.b32.xlu0 %v543, 126
        %v612 = vpop.permute.xlu0 %611
        %613 = vrot.lane.b32.xlu0 %v544, 126
        %v614 = vpop.permute.xlu0 %613
        %615 = vrot.lane.b32.xlu0 %v545, 126
        %v616 = vpop.permute.xlu0 %615
        %617 = vrot.lane.b32.xlu0 %v546, 126
        %v618 = vpop.permute.xlu0 %617
        %619 = vrot.lane.b32.xlu0 %v547, 126
        %v620 = vpop.permute.xlu0 %619
        %621 = vrot.lane.b32.xlu0 %v548, 126
        %v622 = vpop.permute.xlu0 %621
        %623 = vrot.lane.b32.xlu0 %v549, 126
        %v624 = vpop.permute.xlu0 %623
        %625 = vrot.lane.b32.xlu0 %v550, 126
        %v626 = vpop.permute.xlu0 %625
        %627 = vrot.lane.b32.xlu0 %v551, 126
        %v628 = vpop.permute.xlu0 %627
        %629 = vrot.lane.b32.xlu0 %v552, 126
        %v630 = vpop.permute.xlu0 %629
        %631 = vrot.lane.b32.xlu0 %v553, 126
        %v632 = vpop.permute.xlu0 %631
        %633 = vrot.lane.b32.xlu0 %v554, 126
        %v634 = vpop.permute.xlu0 %633
        %635 = vrot.lane.b32.xlu0 %v555, 126
        %v636 = vpop.permute.xlu0 %635
        %637 = vrot.lane.b32.xlu0 %v556, 126
        %v638 = vpop.permute.xlu0 %637
        %639 = vrot.lane.b32.xlu0 %v557, 126
        %v640 = vpop.permute.xlu0 %639
        %641 = vrot.lane.b32.xlu0 %v558, 126
        %v642 = vpop.permute.xlu0 %641
        %643 = vrot.lane.b32.xlu0 %v559, 126
        %v644 = vpop.permute.xlu0 %643
        %645 = vrot.lane.b32.xlu0 %v560, 126
        %v646 = vpop.permute.xlu0 %645
        %647 = vrot.lane.b32.xlu0 %v561, 126
        %v648 = vpop.permute.xlu0 %647
        %649 = vrot.lane.b32.xlu0 %v562, 126
        %v650 = vpop.permute.xlu0 %649
        %651 = vrot.lane.b32.xlu0 %v563, 126
        %v652 = vpop.permute.xlu0 %651
        %653 = vrot.lane.b32.xlu0 %v564, 126
        %v654 = vpop.permute.xlu0 %653
        %655 = vrot.lane.b32.xlu0 %v565, 126
        %v656 = vpop.permute.xlu0 %655
        %657 = vrot.lane.b32.xlu0 %v566, 126
        %v658 = vpop.permute.xlu0 %657
        %659 = vrot.lane.b32.xlu0 %v567, 126
        %v660 = vpop.permute.xlu0 %659
        %661 = vrot.lane.b32.xlu0 %v568, 126
        %v662 = vpop.permute.xlu0 %661
        %663 = vrot.lane.b32.xlu0 %v569, 126
        %v664 = vpop.permute.xlu0 %663
        %665 = vrot.lane.b32.xlu0 %v570, 126
        %v666 = vpop.permute.xlu0 %665
        %v699 = vadd.f32 %v504, %v604
        %v700 = vadd.f32 %v505, %v606
        %v701 = vadd.f32 %v506, %v608
        %v702 = vadd.f32 %v507, %v610
        %v703 = vadd.f32 %v508, %v612
        %v704 = vadd.f32 %v509, %v614
        %v705 = vadd.f32 %v510, %v616
        %v706 = vadd.f32 %v511, %v618
        %v707 = vadd.f32 %v512, %v620
        %v708 = vadd.f32 %v513, %v622
        %v709 = vadd.f32 %v514, %v624
        %v710 = vadd.f32 %v515, %v626
        %v711 = vadd.f32 %v516, %v628
        %v712 = vadd.f32 %v517, %v630
        %v713 = vadd.f32 %v518, %v632
        %v714 = vadd.f32 %v519, %v634
        %v715 = vadd.f32 %v520, %v636
        %v716 = vadd.f32 %v521, %v638
        %v717 = vadd.f32 %v522, %v640
        %v718 = vadd.f32 %v523, %v642
        %v719 = vadd.f32 %v524, %v644
        %v720 = vadd.f32 %v525, %v646
        %v721 = vadd.f32 %v526, %v648
        %v722 = vadd.f32 %v527, %v650
        %v723 = vadd.f32 %v528, %v652
        %v724 = vadd.f32 %v529, %v654
        %v725 = vadd.f32 %v530, %v656
        %v726 = vadd.f32 %v531, %v658
        %v727 = vadd.f32 %v532, %v660
        %v728 = vadd.f32 %v533, %v662
        %v729 = vadd.f32 %v534, %v664
        %v730 = vadd.f32 %v535, %v666
        %s731 = sadd.s32 %s242, 3
        %s732 = sld [smem:[#allocation2 + %s731]]
        %v733 = vld [vmem:[%s224 + $0x1] sm:$0xff]
        %v734 = vld [vmem:[%s224 + $0x9] sm:$0xff]
        %v735 = vld [vmem:[%s224 + $0x19] sm:$0xff]
        %v736 = vld [vmem:[%s224 + $0x21] sm:$0xff]
        %v737 = vld [vmem:[%s224 + $0x31] sm:$0xff]
        %v738 = vld [vmem:[%s224 + $0x39] sm:$0xff]
        %v739 = vld [vmem:[%s224 + $0x49] sm:$0xff]
        %v740 = vld [vmem:[%s224 + $0x51] sm:$0xff]
        %v741 = vld [vmem:[%s224 + $0x61] sm:$0xff]
        %v742 = vld [vmem:[%s224 + $0x69] sm:$0xff]
        %v743 = vld [vmem:[%s224 + $0x79] sm:$0xff]
        %v744 = vld [vmem:[%s224 + $0x81] sm:$0xff]
        %v745 = vld [vmem:[%s224 + $0x91] sm:$0xff]
        %v746 = vld [vmem:[%s224 + $0x99] sm:$0xff]
        %v747 = vld [vmem:[%s224 + $0xa9] sm:$0xff]
        %v748 = vld [vmem:[%s224 + $0xb1] sm:$0xff]
        %v749 = vld [vmem:[%s224 + $0xc1] sm:$0xff]
        %v750 = vld [vmem:[%s224 + $0xc9] sm:$0xff]
        %v751 = vld [vmem:[%s224 + $0xd9] sm:$0xff]
        %v752 = vld [vmem:[%s224 + $0xe1] sm:$0xff]
        %v753 = vld [vmem:[%s224 + $0xf1] sm:$0xff]
        %v754 = vld [vmem:[%s224 + $0xf9] sm:$0xff]
        %v755 = vld [vmem:[%s224 + $0x109] sm:$0xff]
        %v756 = vld [vmem:[%s224 + $0x111] sm:$0xff]
        %v757 = vld [vmem:[%s224 + $0x121] sm:$0xff]
        %v758 = vld [vmem:[%s224 + $0x129] sm:$0xff]
        %v759 = vld [vmem:[%s224 + $0x139] sm:$0xff]
        %v760 = vld [vmem:[%s224 + $0x141] sm:$0xff]
        %v761 = vld [vmem:[%s224 + $0x151] sm:$0xff]
        %v762 = vld [vmem:[%s224 + $0x159] sm:$0xff]
        %v763 = vld [vmem:[%s224 + $0x169] sm:$0xff]
        %v764 = vld [vmem:[%s224 + $0x171] sm:$0xff]
        %v765 = vstv %s732
        %v766 = vmul.f32 %v765, %v733
        %v767 = vmul.f32 %v765, %v734
        %v768 = vmul.f32 %v765, %v735
        %v769 = vmul.f32 %v765, %v736
        %v770 = vmul.f32 %v765, %v737
        %v771 = vmul.f32 %v765, %v738
        %v772 = vmul.f32 %v765, %v739
        %v773 = vmul.f32 %v765, %v740
        %v774 = vmul.f32 %v765, %v741
        %v775 = vmul.f32 %v765, %v742
        %v776 = vmul.f32 %v765, %v743
        %v777 = vmul.f32 %v765, %v744
        %v778 = vmul.f32 %v765, %v745
        %v779 = vmul.f32 %v765, %v746
        %v780 = vmul.f32 %v765, %v747
        %v781 = vmul.f32 %v765, %v748
        %v782 = vmul.f32 %v765, %v749
        %v783 = vmul.f32 %v765, %v750
        %v784 = vmul.f32 %v765, %v751
        %v785 = vmul.f32 %v765, %v752
        %v786 = vmul.f32 %v765, %v753
        %v787 = vmul.f32 %v765, %v754
        %v788 = vmul.f32 %v765, %v755
        %v789 = vmul.f32 %v765, %v756
        %v790 = vmul.f32 %v765, %v757
        %v791 = vmul.f32 %v765, %v758
        %v792 = vmul.f32 %v765, %v759
        %v793 = vmul.f32 %v765, %v760
        %v794 = vmul.f32 %v765, %v761
        %v795 = vmul.f32 %v765, %v762
        %v796 = vmul.f32 %v765, %v763
        %v797 = vmul.f32 %v765, %v764
        %v798 = vadd.f32 %v699, %v766
        %v799 = vadd.f32 %v700, %v767
        %v800 = vadd.f32 %v701, %v768
        %v801 = vadd.f32 %v702, %v769
        %v802 = vadd.f32 %v703, %v770
        %v803 = vadd.f32 %v704, %v771
        %v804 = vadd.f32 %v705, %v772
        %v805 = vadd.f32 %v706, %v773
        %v806 = vadd.f32 %v707, %v774
        %v807 = vadd.f32 %v708, %v775
        %v808 = vadd.f32 %v709, %v776
        %v809 = vadd.f32 %v710, %v777
        %v810 = vadd.f32 %v711, %v778
        %v811 = vadd.f32 %v712, %v779
        %v812 = vadd.f32 %v713, %v780
        %v813 = vadd.f32 %v714, %v781
        %v814 = vadd.f32 %v715, %v782
        %v815 = vadd.f32 %v716, %v783
        %v816 = vadd.f32 %v717, %v784
        %v817 = vadd.f32 %v718, %v785
        %v818 = vadd.f32 %v719, %v786
        %v819 = vadd.f32 %v720, %v787
        %v820 = vadd.f32 %v721, %v788
        %v821 = vadd.f32 %v722, %v789
        %v822 = vadd.f32 %v723, %v790
        %v823 = vadd.f32 %v724, %v791
        %v824 = vadd.f32 %v725, %v792
        %v825 = vadd.f32 %v726, %v793
        %v826 = vadd.f32 %v727, %v794
        %v827 = vadd.f32 %v728, %v795
        %v828 = vadd.f32 %v729, %v796
        %v829 = vadd.f32 %v730, %v797
        %s830 = sadd.s32 %s242, 4
        %s831 = sld [smem:[#allocation2 + %s830]]
        %v832 = vstv %s831
        %v833 = vmul.f32 %v832, %v733
        %v834 = vmul.f32 %v832, %v734
        %v835 = vmul.f32 %v832, %v735
        %v836 = vmul.f32 %v832, %v736
        %v837 = vmul.f32 %v832, %v737
        %v838 = vmul.f32 %v832, %v738
        %v839 = vmul.f32 %v832, %v739
        %v840 = vmul.f32 %v832, %v740
        %v841 = vmul.f32 %v832, %v741
        %v842 = vmul.f32 %v832, %v742
        %v843 = vmul.f32 %v832, %v743
        %v844 = vmul.f32 %v832, %v744
        %v845 = vmul.f32 %v832, %v745
        %v846 = vmul.f32 %v832, %v746
        %v847 = vmul.f32 %v832, %v747
        %v848 = vmul.f32 %v832, %v748
        %v849 = vmul.f32 %v832, %v749
        %v850 = vmul.f32 %v832, %v750
        %v851 = vmul.f32 %v832, %v751
        %v852 = vmul.f32 %v832, %v752
        %v853 = vmul.f32 %v832, %v753
        %v854 = vmul.f32 %v832, %v754
        %v855 = vmul.f32 %v832, %v755
        %v856 = vmul.f32 %v832, %v756
        %v857 = vmul.f32 %v832, %v757
        %v858 = vmul.f32 %v832, %v758
        %v859 = vmul.f32 %v832, %v759
        %v860 = vmul.f32 %v832, %v760
        %v861 = vmul.f32 %v832, %v761
        %v862 = vmul.f32 %v832, %v762
        %v863 = vmul.f32 %v832, %v763
        %v864 = vmul.f32 %v832, %v764
        %897 = vrot.lane.b32.xlu0 %v833, 127
        %v898 = vpop.permute.xlu0 %897
        %899 = vrot.lane.b32.xlu0 %v834, 127
        %v900 = vpop.permute.xlu0 %899
        %901 = vrot.lane.b32.xlu0 %v835, 127
        %v902 = vpop.permute.xlu0 %901
        %903 = vrot.lane.b32.xlu0 %v836, 127
        %v904 = vpop.permute.xlu0 %903
        %905 = vrot.lane.b32.xlu0 %v837, 127
        %v906 = vpop.permute.xlu0 %905
        %907 = vrot.lane.b32.xlu0 %v838, 127
        %v908 = vpop.permute.xlu0 %907
        %909 = vrot.lane.b32.xlu0 %v839, 127
        %v910 = vpop.permute.xlu0 %909
        %911 = vrot.lane.b32.xlu0 %v840, 127
        %v912 = vpop.permute.xlu0 %911
        %913 = vrot.lane.b32.xlu0 %v841, 127
        %v914 = vpop.permute.xlu0 %913
        %915 = vrot.lane.b32.xlu0 %v842, 127
        %v916 = vpop.permute.xlu0 %915
        %917 = vrot.lane.b32.xlu0 %v843, 127
        %v918 = vpop.permute.xlu0 %917
        %919 = vrot.lane.b32.xlu0 %v844, 127
        %v920 = vpop.permute.xlu0 %919
        %921 = vrot.lane.b32.xlu0 %v845, 127
        %v922 = vpop.permute.xlu0 %921
        %923 = vrot.lane.b32.xlu0 %v846, 127
        %v924 = vpop.permute.xlu0 %923
        %925 = vrot.lane.b32.xlu0 %v847, 127
        %v926 = vpop.permute.xlu0 %925
        %927 = vrot.lane.b32.xlu0 %v848, 127
        %v928 = vpop.permute.xlu0 %927
        %929 = vrot.lane.b32.xlu0 %v849, 127
        %v930 = vpop.permute.xlu0 %929
        %931 = vrot.lane.b32.xlu0 %v850, 127
        %v932 = vpop.permute.xlu0 %931
        %933 = vrot.lane.b32.xlu0 %v851, 127
        %v934 = vpop.permute.xlu0 %933
        %935 = vrot.lane.b32.xlu0 %v852, 127
        %v936 = vpop.permute.xlu0 %935
        %937 = vrot.lane.b32.xlu0 %v853, 127
        %v938 = vpop.permute.xlu0 %937
        %939 = vrot.lane.b32.xlu0 %v854, 127
        %v940 = vpop.permute.xlu0 %939
        %941 = vrot.lane.b32.xlu0 %v855, 127
        %v942 = vpop.permute.xlu0 %941
        %943 = vrot.lane.b32.xlu0 %v856, 127
        %v944 = vpop.permute.xlu0 %943
        %945 = vrot.lane.b32.xlu0 %v857, 127
        %v946 = vpop.permute.xlu0 %945
        %947 = vrot.lane.b32.xlu0 %v858, 127
        %v948 = vpop.permute.xlu0 %947
        %949 = vrot.lane.b32.xlu0 %v859, 127
        %v950 = vpop.permute.xlu0 %949
        %951 = vrot.lane.b32.xlu0 %v860, 127
        %v952 = vpop.permute.xlu0 %951
        %953 = vrot.lane.b32.xlu0 %v861, 127
        %v954 = vpop.permute.xlu0 %953
        %955 = vrot.lane.b32.xlu0 %v862, 127
        %v956 = vpop.permute.xlu0 %955
        %957 = vrot.lane.b32.xlu0 %v863, 127
        %v958 = vpop.permute.xlu0 %957
        %959 = vrot.lane.b32.xlu0 %v864, 127
        %v960 = vpop.permute.xlu0 %959
        %v993 = vadd.f32 %v798, %v898
        %v994 = vadd.f32 %v799, %v900
        %v995 = vadd.f32 %v800, %v902
        %v996 = vadd.f32 %v801, %v904
        %v997 = vadd.f32 %v802, %v906
        %v998 = vadd.f32 %v803, %v908
        %v999 = vadd.f32 %v804, %v910
        %v1000 = vadd.f32 %v805, %v912
        %v1001 = vadd.f32 %v806, %v914
        %v1002 = vadd.f32 %v807, %v916
        %v1003 = vadd.f32 %v808, %v918
        %v1004 = vadd.f32 %v809, %v920
        %v1005 = vadd.f32 %v810, %v922
        %v1006 = vadd.f32 %v811, %v924
        %v1007 = vadd.f32 %v812, %v926
        %v1008 = vadd.f32 %v813, %v928
        %v1009 = vadd.f32 %v814, %v930
        %v1010 = vadd.f32 %v815, %v932
        %v1011 = vadd.f32 %v816, %v934
        %v1012 = vadd.f32 %v817, %v936
        %v1013 = vadd.f32 %v818, %v938
        %v1014 = vadd.f32 %v819, %v940
        %v1015 = vadd.f32 %v820, %v942
        %v1016 = vadd.f32 %v821, %v944
        %v1017 = vadd.f32 %v822, %v946
        %v1018 = vadd.f32 %v823, %v948
        %v1019 = vadd.f32 %v824, %v950
        %v1020 = vadd.f32 %v825, %v952
        %v1021 = vadd.f32 %v826, %v954
        %v1022 = vadd.f32 %v827, %v956
        %v1023 = vadd.f32 %v828, %v958
        %v1024 = vadd.f32 %v829, %v960
        %s1025 = sadd.s32 %s242, 5
        %s1026 = sld [smem:[#allocation2 + %s1025]]
        %v1027 = vstv %s1026
        %v1028 = vmul.f32 %v1027, %v733
        %v1029 = vmul.f32 %v1027, %v734
        %v1030 = vmul.f32 %v1027, %v735
        %v1031 = vmul.f32 %v1027, %v736
        %v1032 = vmul.f32 %v1027, %v737
        %v1033 = vmul.f32 %v1027, %v738
        %v1034 = vmul.f32 %v1027, %v739
        %v1035 = vmul.f32 %v1027, %v740
        %v1036 = vmul.f32 %v1027, %v741
        %v1037 = vmul.f32 %v1027, %v742
        %v1038 = vmul.f32 %v1027, %v743
        %v1039 = vmul.f32 %v1027, %v744
        %v1040 = vmul.f32 %v1027, %v745
        %v1041 = vmul.f32 %v1027, %v746
        %v1042 = vmul.f32 %v1027, %v747
        %v1043 = vmul.f32 %v1027, %v748
        %v1044 = vmul.f32 %v1027, %v749
        %v1045 = vmul.f32 %v1027, %v750
        %v1046 = vmul.f32 %v1027, %v751
        %v1047 = vmul.f32 %v1027, %v752
        %v1048 = vmul.f32 %v1027, %v753
        %v1049 = vmul.f32 %v1027, %v754
        %v1050 = vmul.f32 %v1027, %v755
        %v1051 = vmul.f32 %v1027, %v756
        %v1052 = vmul.f32 %v1027, %v757
        %v1053 = vmul.f32 %v1027, %v758
        %v1054 = vmul.f32 %v1027, %v759
        %v1055 = vmul.f32 %v1027, %v760
        %v1056 = vmul.f32 %v1027, %v761
        %v1057 = vmul.f32 %v1027, %v762
        %v1058 = vmul.f32 %v1027, %v763
        %v1059 = vmul.f32 %v1027, %v764
        %1092 = vrot.lane.b32.xlu0 %v1028, 126
        %v1093 = vpop.permute.xlu0 %1092
        %1094 = vrot.lane.b32.xlu0 %v1029, 126
        %v1095 = vpop.permute.xlu0 %1094
        %1096 = vrot.lane.b32.xlu0 %v1030, 126
        %v1097 = vpop.permute.xlu0 %1096
        %1098 = vrot.lane.b32.xlu0 %v1031, 126
        %v1099 = vpop.permute.xlu0 %1098
        %1100 = vrot.lane.b32.xlu0 %v1032, 126
        %v1101 = vpop.permute.xlu0 %1100
        %1102 = vrot.lane.b32.xlu0 %v1033, 126
        %v1103 = vpop.permute.xlu0 %1102
        %1104 = vrot.lane.b32.xlu0 %v1034, 126
        %v1105 = vpop.permute.xlu0 %1104
        %1106 = vrot.lane.b32.xlu0 %v1035, 126
        %v1107 = vpop.permute.xlu0 %1106
        %1108 = vrot.lane.b32.xlu0 %v1036, 126
        %v1109 = vpop.permute.xlu0 %1108
        %1110 = vrot.lane.b32.xlu0 %v1037, 126
        %v1111 = vpop.permute.xlu0 %1110
        %1112 = vrot.lane.b32.xlu0 %v1038, 126
        %v1113 = vpop.permute.xlu0 %1112
        %1114 = vrot.lane.b32.xlu0 %v1039, 126
        %v1115 = vpop.permute.xlu0 %1114
        %1116 = vrot.lane.b32.xlu0 %v1040, 126
        %v1117 = vpop.permute.xlu0 %1116
        %1118 = vrot.lane.b32.xlu0 %v1041, 126
        %v1119 = vpop.permute.xlu0 %1118
        %1120 = vrot.lane.b32.xlu0 %v1042, 126
        %v1121 = vpop.permute.xlu0 %1120
        %1122 = vrot.lane.b32.xlu0 %v1043, 126
        %v1123 = vpop.permute.xlu0 %1122
        %1124 = vrot.lane.b32.xlu0 %v1044, 126
        %v1125 = vpop.permute.xlu0 %1124
        %1126 = vrot.lane.b32.xlu0 %v1045, 126
        %v1127 = vpop.permute.xlu0 %1126
        %1128 = vrot.lane.b32.xlu0 %v1046, 126
        %v1129 = vpop.permute.xlu0 %1128
        %1130 = vrot.lane.b32.xlu0 %v1047, 126
        %v1131 = vpop.permute.xlu0 %1130
        %1132 = vrot.lane.b32.xlu0 %v1048, 126
        %v1133 = vpop.permute.xlu0 %1132
        %1134 = vrot.lane.b32.xlu0 %v1049, 126
        %v1135 = vpop.permute.xlu0 %1134
        %1136 = vrot.lane.b32.xlu0 %v1050, 126
        %v1137 = vpop.permute.xlu0 %1136
        %1138 = vrot.lane.b32.xlu0 %v1051, 126
        %v1139 = vpop.permute.xlu0 %1138
        %1140 = vrot.lane.b32.xlu0 %v1052, 126
        %v1141 = vpop.permute.xlu0 %1140
        %1142 = vrot.lane.b32.xlu0 %v1053, 126
        %v1143 = vpop.permute.xlu0 %1142
        %1144 = vrot.lane.b32.xlu0 %v1054, 126
        %v1145 = vpop.permute.xlu0 %1144
        %1146 = vrot.lane.b32.xlu0 %v1055, 126
        %v1147 = vpop.permute.xlu0 %1146
        %1148 = vrot.lane.b32.xlu0 %v1056, 126
        %v1149 = vpop.permute.xlu0 %1148
        %1150 = vrot.lane.b32.xlu0 %v1057, 126
        %v1151 = vpop.permute.xlu0 %1150
        %1152 = vrot.lane.b32.xlu0 %v1058, 126
        %v1153 = vpop.permute.xlu0 %1152
        %1154 = vrot.lane.b32.xlu0 %v1059, 126
        %v1155 = vpop.permute.xlu0 %1154
        %v1188 = vadd.f32 %v993, %v1093
        %v1189 = vadd.f32 %v994, %v1095
        %v1190 = vadd.f32 %v995, %v1097
        %v1191 = vadd.f32 %v996, %v1099
        %v1192 = vadd.f32 %v997, %v1101
        %v1193 = vadd.f32 %v998, %v1103
        %v1194 = vadd.f32 %v999, %v1105
        %v1195 = vadd.f32 %v1000, %v1107
        %v1196 = vadd.f32 %v1001, %v1109
        %v1197 = vadd.f32 %v1002, %v1111
        %v1198 = vadd.f32 %v1003, %v1113
        %v1199 = vadd.f32 %v1004, %v1115
        %v1200 = vadd.f32 %v1005, %v1117
        %v1201 = vadd.f32 %v1006, %v1119
        %v1202 = vadd.f32 %v1007, %v1121
        %v1203 = vadd.f32 %v1008, %v1123
        %v1204 = vadd.f32 %v1009, %v1125
        %v1205 = vadd.f32 %v1010, %v1127
        %v1206 = vadd.f32 %v1011, %v1129
        %v1207 = vadd.f32 %v1012, %v1131
        %v1208 = vadd.f32 %v1013, %v1133
        %v1209 = vadd.f32 %v1014, %v1135
        %v1210 = vadd.f32 %v1015, %v1137
        %v1211 = vadd.f32 %v1016, %v1139
        %v1212 = vadd.f32 %v1017, %v1141
        %v1213 = vadd.f32 %v1018, %v1143
        %v1214 = vadd.f32 %v1019, %v1145
        %v1215 = vadd.f32 %v1020, %v1147
        %v1216 = vadd.f32 %v1021, %v1149
        %v1217 = vadd.f32 %v1022, %v1151
        %v1218 = vadd.f32 %v1023, %v1153
        %v1219 = vadd.f32 %v1024, %v1155
        %s1220 = sadd.s32 %s242, 6
        %s1221 = sld [smem:[#allocation2 + %s1220]]
        %v1222 = vld [vmem:[%s224 + $0x2] sm:$0xff]
        %v1223 = vld [vmem:[%s224 + $0xa] sm:$0xff]
        %v1224 = vld [vmem:[%s224 + $0x1a] sm:$0xff]
        %v1225 = vld [vmem:[%s224 + $0x22] sm:$0xff]
        %v1226 = vld [vmem:[%s224 + $0x32] sm:$0xff]
        %v1227 = vld [vmem:[%s224 + $0x3a] sm:$0xff]
        %v1228 = vld [vmem:[%s224 + $0x4a] sm:$0xff]
        %v1229 = vld [vmem:[%s224 + $0x52] sm:$0xff]
        %v1230 = vld [vmem:[%s224 + $0x62] sm:$0xff]
        %v1231 = vld [vmem:[%s224 + $0x6a] sm:$0xff]
        %v1232 = vld [vmem:[%s224 + $0x7a] sm:$0xff]
        %v1233 = vld [vmem:[%s224 + $0x82] sm:$0xff]
        %v1234 = vld [vmem:[%s224 + $0x92] sm:$0xff]
        %v1235 = vld [vmem:[%s224 + $0x9a] sm:$0xff]
        %v1236 = vld [vmem:[%s224 + $0xaa] sm:$0xff]
        %v1237 = vld [vmem:[%s224 + $0xb2] sm:$0xff]
        %v1238 = vld [vmem:[%s224 + $0xc2] sm:$0xff]
        %v1239 = vld [vmem:[%s224 + $0xca] sm:$0xff]
        %v1240 = vld [vmem:[%s224 + $0xda] sm:$0xff]
        %v1241 = vld [vmem:[%s224 + $0xe2] sm:$0xff]
        %v1242 = vld [vmem:[%s224 + $0xf2] sm:$0xff]
        %v1243 = vld [vmem:[%s224 + $0xfa] sm:$0xff]
        %v1244 = vld [vmem:[%s224 + $0x10a] sm:$0xff]
        %v1245 = vld [vmem:[%s224 + $0x112] sm:$0xff]
        %v1246 = vld [vmem:[%s224 + $0x122] sm:$0xff]
        %v1247 = vld [vmem:[%s224 + $0x12a] sm:$0xff]
        %v1248 = vld [vmem:[%s224 + $0x13a] sm:$0xff]
        %v1249 = vld [vmem:[%s224 + $0x142] sm:$0xff]
        %v1250 = vld [vmem:[%s224 + $0x152] sm:$0xff]
        %v1251 = vld [vmem:[%s224 + $0x15a] sm:$0xff]
        %v1252 = vld [vmem:[%s224 + $0x16a] sm:$0xff]
        %v1253 = vld [vmem:[%s224 + $0x172] sm:$0xff]
        %v1254 = vstv %s1221
        %v1255 = vmul.f32 %v1254, %v1222
        %v1256 = vmul.f32 %v1254, %v1223
        %v1257 = vmul.f32 %v1254, %v1224
        %v1258 = vmul.f32 %v1254, %v1225
        %v1259 = vmul.f32 %v1254, %v1226
        %v1260 = vmul.f32 %v1254, %v1227
        %v1261 = vmul.f32 %v1254, %v1228
        %v1262 = vmul.f32 %v1254, %v1229
        %v1263 = vmul.f32 %v1254, %v1230
        %v1264 = vmul.f32 %v1254, %v1231
        %v1265 = vmul.f32 %v1254, %v1232
        %v1266 = vmul.f32 %v1254, %v1233
        %v1267 = vmul.f32 %v1254, %v1234
        %v1268 = vmul.f32 %v1254, %v1235
        %v1269 = vmul.f32 %v1254, %v1236
        %v1270 = vmul.f32 %v1254, %v1237
        %v1271 = vmul.f32 %v1254, %v1238
        %v1272 = vmul.f32 %v1254, %v1239
        %v1273 = vmul.f32 %v1254, %v1240
        %v1274 = vmul.f32 %v1254, %v1241
        %v1275 = vmul.f32 %v1254, %v1242
        %v1276 = vmul.f32 %v1254, %v1243
        %v1277 = vmul.f32 %v1254, %v1244
        %v1278 = vmul.f32 %v1254, %v1245
        %v1279 = vmul.f32 %v1254, %v1246
        %v1280 = vmul.f32 %v1254, %v1247
        %v1281 = vmul.f32 %v1254, %v1248
        %v1282 = vmul.f32 %v1254, %v1249
        %v1283 = vmul.f32 %v1254, %v1250
        %v1284 = vmul.f32 %v1254, %v1251
        %v1285 = vmul.f32 %v1254, %v1252
        %v1286 = vmul.f32 %v1254, %v1253
        %v1287 = vadd.f32 %v1188, %v1255
        %v1288 = vadd.f32 %v1189, %v1256
        %v1289 = vadd.f32 %v1190, %v1257
        %v1290 = vadd.f32 %v1191, %v1258
        %v1291 = vadd.f32 %v1192, %v1259
        %v1292 = vadd.f32 %v1193, %v1260
        %v1293 = vadd.f32 %v1194, %v1261
        %v1294 = vadd.f32 %v1195, %v1262
        %v1295 = vadd.f32 %v1196, %v1263
        %v1296 = vadd.f32 %v1197, %v1264
        %v1297 = vadd.f32 %v1198, %v1265
        %v1298 = vadd.f32 %v1199, %v1266
        %v1299 = vadd.f32 %v1200, %v1267
        %v1300 = vadd.f32 %v1201, %v1268
        %v1301 = vadd.f32 %v1202, %v1269
        %v1302 = vadd.f32 %v1203, %v1270
        %v1303 = vadd.f32 %v1204, %v1271
        %v1304 = vadd.f32 %v1205, %v1272
        %v1305 = vadd.f32 %v1206, %v1273
        %v1306 = vadd.f32 %v1207, %v1274
        %v1307 = vadd.f32 %v1208, %v1275
        %v1308 = vadd.f32 %v1209, %v1276
        %v1309 = vadd.f32 %v1210, %v1277
        %v1310 = vadd.f32 %v1211, %v1278
        %v1311 = vadd.f32 %v1212, %v1279
        %v1312 = vadd.f32 %v1213, %v1280
        %v1313 = vadd.f32 %v1214, %v1281
        %v1314 = vadd.f32 %v1215, %v1282
        %v1315 = vadd.f32 %v1216, %v1283
        %v1316 = vadd.f32 %v1217, %v1284
        %v1317 = vadd.f32 %v1218, %v1285
        %v1318 = vadd.f32 %v1219, %v1286
        %s1319 = sadd.s32 %s242, 7
        %s1320 = sld [smem:[#allocation2 + %s1319]]
        %v1321 = vstv %s1320
        %v1322 = vmul.f32 %v1321, %v1222
        %v1323 = vmul.f32 %v1321, %v1223
        %v1324 = vmul.f32 %v1321, %v1224
        %v1325 = vmul.f32 %v1321, %v1225
        %v1326 = vmul.f32 %v1321, %v1226
        %v1327 = vmul.f32 %v1321, %v1227
        %v1328 = vmul.f32 %v1321, %v1228
        %v1329 = vmul.f32 %v1321, %v1229
        %v1330 = vmul.f32 %v1321, %v1230
        %v1331 = vmul.f32 %v1321, %v1231
        %v1332 = vmul.f32 %v1321, %v1232
        %v1333 = vmul.f32 %v1321, %v1233
        %v1334 = vmul.f32 %v1321, %v1234
        %v1335 = vmul.f32 %v1321, %v1235
        %v1336 = vmul.f32 %v1321, %v1236
        %v1337 = vmul.f32 %v1321, %v1237
        %v1338 = vmul.f32 %v1321, %v1238
        %v1339 = vmul.f32 %v1321, %v1239
        %v1340 = vmul.f32 %v1321, %v1240
        %v1341 = vmul.f32 %v1321, %v1241
        %v1342 = vmul.f32 %v1321, %v1242
        %v1343 = vmul.f32 %v1321, %v1243
        %v1344 = vmul.f32 %v1321, %v1244
        %v1345 = vmul.f32 %v1321, %v1245
        %v1346 = vmul.f32 %v1321, %v1246
        %v1347 = vmul.f32 %v1321, %v1247
        %v1348 = vmul.f32 %v1321, %v1248
        %v1349 = vmul.f32 %v1321, %v1249
        %v1350 = vmul.f32 %v1321, %v1250
        %v1351 = vmul.f32 %v1321, %v1251
        %v1352 = vmul.f32 %v1321, %v1252
        %v1353 = vmul.f32 %v1321, %v1253
        %1386 = vrot.lane.b32.xlu0 %v1322, 127
        %v1387 = vpop.permute.xlu0 %1386
        %1388 = vrot.lane.b32.xlu0 %v1323, 127
        %v1389 = vpop.permute.xlu0 %1388
        %1390 = vrot.lane.b32.xlu0 %v1324, 127
        %v1391 = vpop.permute.xlu0 %1390
        %1392 = vrot.lane.b32.xlu0 %v1325, 127
        %v1393 = vpop.permute.xlu0 %1392
        %1394 = vrot.lane.b32.xlu0 %v1326, 127
        %v1395 = vpop.permute.xlu0 %1394
        %1396 = vrot.lane.b32.xlu0 %v1327, 127
        %v1397 = vpop.permute.xlu0 %1396
        %1398 = vrot.lane.b32.xlu0 %v1328, 127
        %v1399 = vpop.permute.xlu0 %1398
        %1400 = vrot.lane.b32.xlu0 %v1329, 127
        %v1401 = vpop.permute.xlu0 %1400
        %1402 = vrot.lane.b32.xlu0 %v1330, 127
        %v1403 = vpop.permute.xlu0 %1402
        %1404 = vrot.lane.b32.xlu0 %v1331, 127
        %v1405 = vpop.permute.xlu0 %1404
        %1406 = vrot.lane.b32.xlu0 %v1332, 127
        %v1407 = vpop.permute.xlu0 %1406
        %1408 = vrot.lane.b32.xlu0 %v1333, 127
        %v1409 = vpop.permute.xlu0 %1408
        %1410 = vrot.lane.b32.xlu0 %v1334, 127
        %v1411 = vpop.permute.xlu0 %1410
        %1412 = vrot.lane.b32.xlu0 %v1335, 127
        %v1413 = vpop.permute.xlu0 %1412
        %1414 = vrot.lane.b32.xlu0 %v1336, 127
        %v1415 = vpop.permute.xlu0 %1414
        %1416 = vrot.lane.b32.xlu0 %v1337, 127
        %v1417 = vpop.permute.xlu0 %1416
        %1418 = vrot.lane.b32.xlu0 %v1338, 127
        %v1419 = vpop.permute.xlu0 %1418
        %1420 = vrot.lane.b32.xlu0 %v1339, 127
        %v1421 = vpop.permute.xlu0 %1420
        %1422 = vrot.lane.b32.xlu0 %v1340, 127
        %v1423 = vpop.permute.xlu0 %1422
        %1424 = vrot.lane.b32.xlu0 %v1341, 127
        %v1425 = vpop.permute.xlu0 %1424
        %1426 = vrot.lane.b32.xlu0 %v1342, 127
        %v1427 = vpop.permute.xlu0 %1426
        %1428 = vrot.lane.b32.xlu0 %v1343, 127
        %v1429 = vpop.permute.xlu0 %1428
        %1430 = vrot.lane.b32.xlu0 %v1344, 127
        %v1431 = vpop.permute.xlu0 %1430
        %1432 = vrot.lane.b32.xlu0 %v1345, 127
        %v1433 = vpop.permute.xlu0 %1432
        %1434 = vrot.lane.b32.xlu0 %v1346, 127
        %v1435 = vpop.permute.xlu0 %1434
        %1436 = vrot.lane.b32.xlu0 %v1347, 127
        %v1437 = vpop.permute.xlu0 %1436
        %1438 = vrot.lane.b32.xlu0 %v1348, 127
        %v1439 = vpop.permute.xlu0 %1438
        %1440 = vrot.lane.b32.xlu0 %v1349, 127
        %v1441 = vpop.permute.xlu0 %1440
        %1442 = vrot.lane.b32.xlu0 %v1350, 127
        %v1443 = vpop.permute.xlu0 %1442
        %1444 = vrot.lane.b32.xlu0 %v1351, 127
        %v1445 = vpop.permute.xlu0 %1444
        %1446 = vrot.lane.b32.xlu0 %v1352, 127
        %v1447 = vpop.permute.xlu0 %1446
        %1448 = vrot.lane.b32.xlu0 %v1353, 127
        %v1449 = vpop.permute.xlu0 %1448
        %v1482 = vadd.f32 %v1287, %v1387
        %v1483 = vadd.f32 %v1288, %v1389
        %v1484 = vadd.f32 %v1289, %v1391
        %v1485 = vadd.f32 %v1290, %v1393
        %v1486 = vadd.f32 %v1291, %v1395
        %v1487 = vadd.f32 %v1292, %v1397
        %v1488 = vadd.f32 %v1293, %v1399
        %v1489 = vadd.f32 %v1294, %v1401
        %v1490 = vadd.f32 %v1295, %v1403
        %v1491 = vadd.f32 %v1296, %v1405
        %v1492 = vadd.f32 %v1297, %v1407
        %v1493 = vadd.f32 %v1298, %v1409
        %v1494 = vadd.f32 %v1299, %v1411
        %v1495 = vadd.f32 %v1300, %v1413
        %v1496 = vadd.f32 %v1301, %v1415
        %v1497 = vadd.f32 %v1302, %v1417
        %v1498 = vadd.f32 %v1303, %v1419
        %v1499 = vadd.f32 %v1304, %v1421
        %v1500 = vadd.f32 %v1305, %v1423
        %v1501 = vadd.f32 %v1306, %v1425
        %v1502 = vadd.f32 %v1307, %v1427
        %v1503 = vadd.f32 %v1308, %v1429
        %v1504 = vadd.f32 %v1309, %v1431
        %v1505 = vadd.f32 %v1310, %v1433
        %v1506 = vadd.f32 %v1311, %v1435
        %v1507 = vadd.f32 %v1312, %v1437
        %v1508 = vadd.f32 %v1313, %v1439
        %v1509 = vadd.f32 %v1314, %v1441
        %v1510 = vadd.f32 %v1315, %v1443
        %v1511 = vadd.f32 %v1316, %v1445
        %v1512 = vadd.f32 %v1317, %v1447
        %v1513 = vadd.f32 %v1318, %v1449
        %s1514 = sadd.s32 %s242, 8
        %s1515 = sld [smem:[#allocation2 + %s1514]]
        %v1516 = vstv %s1515
        %v1517 = vmul.f32 %v1516, %v1222
        %v1518 = vmul.f32 %v1516, %v1223
        %v1519 = vmul.f32 %v1516, %v1224
        %v1520 = vmul.f32 %v1516, %v1225
        %v1521 = vmul.f32 %v1516, %v1226
        %v1522 = vmul.f32 %v1516, %v1227
        %v1523 = vmul.f32 %v1516, %v1228
        %v1524 = vmul.f32 %v1516, %v1229
        %v1525 = vmul.f32 %v1516, %v1230
        %v1526 = vmul.f32 %v1516, %v1231
        %v1527 = vmul.f32 %v1516, %v1232
        %v1528 = vmul.f32 %v1516, %v1233
        %v1529 = vmul.f32 %v1516, %v1234
        %v1530 = vmul.f32 %v1516, %v1235
        %v1531 = vmul.f32 %v1516, %v1236
        %v1532 = vmul.f32 %v1516, %v1237
        %v1533 = vmul.f32 %v1516, %v1238
        %v1534 = vmul.f32 %v1516, %v1239
        %v1535 = vmul.f32 %v1516, %v1240
        %v1536 = vmul.f32 %v1516, %v1241
        %v1537 = vmul.f32 %v1516, %v1242
        %v1538 = vmul.f32 %v1516, %v1243
        %v1539 = vmul.f32 %v1516, %v1244
        %v1540 = vmul.f32 %v1516, %v1245
        %v1541 = vmul.f32 %v1516, %v1246
        %v1542 = vmul.f32 %v1516, %v1247
        %v1543 = vmul.f32 %v1516, %v1248
        %v1544 = vmul.f32 %v1516, %v1249
        %v1545 = vmul.f32 %v1516, %v1250
        %v1546 = vmul.f32 %v1516, %v1251
        %v1547 = vmul.f32 %v1516, %v1252
        %v1548 = vmul.f32 %v1516, %v1253
        %1581 = vrot.lane.b32.xlu0 %v1517, 126
        %v1582 = vpop.permute.xlu0 %1581
        %1583 = vrot.lane.b32.xlu0 %v1518, 126
        %v1584 = vpop.permute.xlu0 %1583
        %1585 = vrot.lane.b32.xlu0 %v1519, 126
        %v1586 = vpop.permute.xlu0 %1585
        %1587 = vrot.lane.b32.xlu0 %v1520, 126
        %v1588 = vpop.permute.xlu0 %1587
        %1589 = vrot.lane.b32.xlu0 %v1521, 126
        %v1590 = vpop.permute.xlu0 %1589
        %1591 = vrot.lane.b32.xlu0 %v1522, 126
        %v1592 = vpop.permute.xlu0 %1591
        %1593 = vrot.lane.b32.xlu0 %v1523, 126
        %v1594 = vpop.permute.xlu0 %1593
        %1595 = vrot.lane.b32.xlu0 %v1524, 126
        %v1596 = vpop.permute.xlu0 %1595
        %1597 = vrot.lane.b32.xlu0 %v1525, 126
        %v1598 = vpop.permute.xlu0 %1597
        %1599 = vrot.lane.b32.xlu0 %v1526, 126
        %v1600 = vpop.permute.xlu0 %1599
        %1601 = vrot.lane.b32.xlu0 %v1527, 126
        %v1602 = vpop.permute.xlu0 %1601
        %1603 = vrot.lane.b32.xlu0 %v1528, 126
        %v1604 = vpop.permute.xlu0 %1603
        %1605 = vrot.lane.b32.xlu0 %v1529, 126
        %v1606 = vpop.permute.xlu0 %1605
        %1607 = vrot.lane.b32.xlu0 %v1530, 126
        %v1608 = vpop.permute.xlu0 %1607
        %1609 = vrot.lane.b32.xlu0 %v1531, 126
        %v1610 = vpop.permute.xlu0 %1609
        %1611 = vrot.lane.b32.xlu0 %v1532, 126
        %v1612 = vpop.permute.xlu0 %1611
        %1613 = vrot.lane.b32.xlu0 %v1533, 126
        %v1614 = vpop.permute.xlu0 %1613
        %1615 = vrot.lane.b32.xlu0 %v1534, 126
        %v1616 = vpop.permute.xlu0 %1615
        %1617 = vrot.lane.b32.xlu0 %v1535, 126
        %v1618 = vpop.permute.xlu0 %1617
        %1619 = vrot.lane.b32.xlu0 %v1536, 126
        %v1620 = vpop.permute.xlu0 %1619
        %1621 = vrot.lane.b32.xlu0 %v1537, 126
        %v1622 = vpop.permute.xlu0 %1621
        %1623 = vrot.lane.b32.xlu0 %v1538, 126
        %v1624 = vpop.permute.xlu0 %1623
        %1625 = vrot.lane.b32.xlu0 %v1539, 126
        %v1626 = vpop.permute.xlu0 %1625
        %1627 = vrot.lane.b32.xlu0 %v1540, 126
        %v1628 = vpop.permute.xlu0 %1627
        %1629 = vrot.lane.b32.xlu0 %v1541, 126
        %v1630 = vpop.permute.xlu0 %1629
        %1631 = vrot.lane.b32.xlu0 %v1542, 126
        %v1632 = vpop.permute.xlu0 %1631
        %1633 = vrot.lane.b32.xlu0 %v1543, 126
        %v1634 = vpop.permute.xlu0 %1633
        %1635 = vrot.lane.b32.xlu0 %v1544, 126
        %v1636 = vpop.permute.xlu0 %1635
        %1637 = vrot.lane.b32.xlu0 %v1545, 126
        %v1638 = vpop.permute.xlu0 %1637
        %1639 = vrot.lane.b32.xlu0 %v1546, 126
        %v1640 = vpop.permute.xlu0 %1639
        %1641 = vrot.lane.b32.xlu0 %v1547, 126
        %v1642 = vpop.permute.xlu0 %1641
        %1643 = vrot.lane.b32.xlu0 %v1548, 126
        %v1644 = vpop.permute.xlu0 %1643
        %v1677 = vadd.f32 %v1482, %v1582
        %v1678 = vadd.f32 %v1483, %v1584
        %v1679 = vadd.f32 %v1484, %v1586
        %v1680 = vadd.f32 %v1485, %v1588
        %v1681 = vadd.f32 %v1486, %v1590
        %v1682 = vadd.f32 %v1487, %v1592
        %v1683 = vadd.f32 %v1488, %v1594
        %v1684 = vadd.f32 %v1489, %v1596
        %v1685 = vadd.f32 %v1490, %v1598
        %v1686 = vadd.f32 %v1491, %v1600
        %v1687 = vadd.f32 %v1492, %v1602
        %v1688 = vadd.f32 %v1493, %v1604
        %v1689 = vadd.f32 %v1494, %v1606
        %v1690 = vadd.f32 %v1495, %v1608
        %v1691 = vadd.f32 %v1496, %v1610
        %v1692 = vadd.f32 %v1497, %v1612
        %v1693 = vadd.f32 %v1498, %v1614
        %v1694 = vadd.f32 %v1499, %v1616
        %v1695 = vadd.f32 %v1500, %v1618
        %v1696 = vadd.f32 %v1501, %v1620
        %v1697 = vadd.f32 %v1502, %v1622
        %v1698 = vadd.f32 %v1503, %v1624
        %v1699 = vadd.f32 %v1504, %v1626
        %v1700 = vadd.f32 %v1505, %v1628
        %v1701 = vadd.f32 %v1506, %v1630
        %v1702 = vadd.f32 %v1507, %v1632
        %v1703 = vadd.f32 %v1508, %v1634
        %v1704 = vadd.f32 %v1509, %v1636
        %v1705 = vadd.f32 %v1510, %v1638
        %v1706 = vadd.f32 %v1511, %v1640
        %v1707 = vadd.f32 %v1512, %v1642
        %v1708 = vadd.f32 %v1513, %v1644
        %s1709 = sadd.s32 %s242, 9
        %s1710 = sld [smem:[#allocation2 + %s1709]]
        %s1711 = scalar_lea.vmem %s224, 24
        %v1712 = vld [vmem:[%s1711] sm:$0xff]
        %v1713 = vld [vmem:[%s1711 + $0x8] sm:$0xff]
        %v1714 = vld [vmem:[%s1711 + $0x18] sm:$0xff]
        %v1715 = vld [vmem:[%s1711 + $0x20] sm:$0xff]
        %v1716 = vld [vmem:[%s1711 + $0x30] sm:$0xff]
        %v1717 = vld [vmem:[%s1711 + $0x38] sm:$0xff]
        %v1718 = vld [vmem:[%s1711 + $0x48] sm:$0xff]
        %v1719 = vld [vmem:[%s1711 + $0x50] sm:$0xff]
        %v1720 = vld [vmem:[%s1711 + $0x60] sm:$0xff]
        %v1721 = vld [vmem:[%s1711 + $0x68] sm:$0xff]
        %v1722 = vld [vmem:[%s1711 + $0x78] sm:$0xff]
        %v1723 = vld [vmem:[%s1711 + $0x80] sm:$0xff]
        %v1724 = vld [vmem:[%s1711 + $0x90] sm:$0xff]
        %v1725 = vld [vmem:[%s1711 + $0x98] sm:$0xff]
        %v1726 = vld [vmem:[%s1711 + $0xa8] sm:$0xff]
        %v1727 = vld [vmem:[%s1711 + $0xb0] sm:$0xff]
        %v1728 = vld [vmem:[%s1711 + $0xc0] sm:$0xff]
        %v1729 = vld [vmem:[%s1711 + $0xc8] sm:$0xff]
        %v1730 = vld [vmem:[%s1711 + $0xd8] sm:$0xff]
        %v1731 = vld [vmem:[%s1711 + $0xe0] sm:$0xff]
        %v1732 = vld [vmem:[%s1711 + $0xf0] sm:$0xff]
        %v1733 = vld [vmem:[%s1711 + $0xf8] sm:$0xff]
        %v1734 = vld [vmem:[%s1711 + $0x108] sm:$0xff]
        %v1735 = vld [vmem:[%s1711 + $0x110] sm:$0xff]
        %v1736 = vld [vmem:[%s1711 + $0x120] sm:$0xff]
        %v1737 = vld [vmem:[%s1711 + $0x128] sm:$0xff]
        %v1738 = vld [vmem:[%s1711 + $0x138] sm:$0xff]
        %v1739 = vld [vmem:[%s1711 + $0x140] sm:$0xff]
        %v1740 = vld [vmem:[%s1711 + $0x150] sm:$0xff]
        %v1741 = vld [vmem:[%s1711 + $0x158] sm:$0xff]
        %v1742 = vld [vmem:[%s1711 + $0x168] sm:$0xff]
        %v1743 = vld [vmem:[%s1711 + $0x170] sm:$0xff]
        %v1744 = vstv %s1710
        %v1745 = vmul.f32 %v1744, %v1712
        %v1746 = vmul.f32 %v1744, %v1713
        %v1747 = vmul.f32 %v1744, %v1714
        %v1748 = vmul.f32 %v1744, %v1715
        %v1749 = vmul.f32 %v1744, %v1716
        %v1750 = vmul.f32 %v1744, %v1717
        %v1751 = vmul.f32 %v1744, %v1718
        %v1752 = vmul.f32 %v1744, %v1719
        %v1753 = vmul.f32 %v1744, %v1720
        %v1754 = vmul.f32 %v1744, %v1721
        %v1755 = vmul.f32 %v1744, %v1722
        %v1756 = vmul.f32 %v1744, %v1723
        %v1757 = vmul.f32 %v1744, %v1724
        %v1758 = vmul.f32 %v1744, %v1725
        %v1759 = vmul.f32 %v1744, %v1726
        %v1760 = vmul.f32 %v1744, %v1727
        %v1761 = vmul.f32 %v1744, %v1728
        %v1762 = vmul.f32 %v1744, %v1729
        %v1763 = vmul.f32 %v1744, %v1730
        %v1764 = vmul.f32 %v1744, %v1731
        %v1765 = vmul.f32 %v1744, %v1732
        %v1766 = vmul.f32 %v1744, %v1733
        %v1767 = vmul.f32 %v1744, %v1734
        %v1768 = vmul.f32 %v1744, %v1735
        %v1769 = vmul.f32 %v1744, %v1736
        %v1770 = vmul.f32 %v1744, %v1737
        %v1771 = vmul.f32 %v1744, %v1738
        %v1772 = vmul.f32 %v1744, %v1739
        %v1773 = vmul.f32 %v1744, %v1740
        %v1774 = vmul.f32 %v1744, %v1741
        %v1775 = vmul.f32 %v1744, %v1742
        %v1776 = vmul.f32 %v1744, %v1743
        %v1777 = vadd.f32 %v1677, %v1745
        %v1778 = vadd.f32 %v1678, %v1746
        %v1779 = vadd.f32 %v1679, %v1747
        %v1780 = vadd.f32 %v1680, %v1748
        %v1781 = vadd.f32 %v1681, %v1749
        %v1782 = vadd.f32 %v1682, %v1750
        %v1783 = vadd.f32 %v1683, %v1751
        %v1784 = vadd.f32 %v1684, %v1752
        %v1785 = vadd.f32 %v1685, %v1753
        %v1786 = vadd.f32 %v1686, %v1754
        %v1787 = vadd.f32 %v1687, %v1755
        %v1788 = vadd.f32 %v1688, %v1756
        %v1789 = vadd.f32 %v1689, %v1757
        %v1790 = vadd.f32 %v1690, %v1758
        %v1791 = vadd.f32 %v1691, %v1759
        %v1792 = vadd.f32 %v1692, %v1760
        %v1793 = vadd.f32 %v1693, %v1761
        %v1794 = vadd.f32 %v1694, %v1762
        %v1795 = vadd.f32 %v1695, %v1763
        %v1796 = vadd.f32 %v1696, %v1764
        %v1797 = vadd.f32 %v1697, %v1765
        %v1798 = vadd.f32 %v1698, %v1766
        %v1799 = vadd.f32 %v1699, %v1767
        %v1800 = vadd.f32 %v1700, %v1768
        %v1801 = vadd.f32 %v1701, %v1769
        %v1802 = vadd.f32 %v1702, %v1770
        %v1803 = vadd.f32 %v1703, %v1771
        %v1804 = vadd.f32 %v1704, %v1772
        %v1805 = vadd.f32 %v1705, %v1773
        %v1806 = vadd.f32 %v1706, %v1774
        %v1807 = vadd.f32 %v1707, %v1775
        %v1808 = vadd.f32 %v1708, %v1776
        %s1809 = sadd.s32 %s242, 10
        %s1810 = sld [smem:[#allocation2 + %s1809]]
        %v1811 = vstv %s1810
        %v1812 = vmul.f32 %v1811, %v1712
        %v1813 = vmul.f32 %v1811, %v1713
        %v1814 = vmul.f32 %v1811, %v1714
        %v1815 = vmul.f32 %v1811, %v1715
        %v1816 = vmul.f32 %v1811, %v1716
        %v1817 = vmul.f32 %v1811, %v1717
        %v1818 = vmul.f32 %v1811, %v1718
        %v1819 = vmul.f32 %v1811, %v1719
        %v1820 = vmul.f32 %v1811, %v1720
        %v1821 = vmul.f32 %v1811, %v1721
        %v1822 = vmul.f32 %v1811, %v1722
        %v1823 = vmul.f32 %v1811, %v1723
        %v1824 = vmul.f32 %v1811, %v1724
        %v1825 = vmul.f32 %v1811, %v1725
        %v1826 = vmul.f32 %v1811, %v1726
        %v1827 = vmul.f32 %v1811, %v1727
        %v1828 = vmul.f32 %v1811, %v1728
        %v1829 = vmul.f32 %v1811, %v1729
        %v1830 = vmul.f32 %v1811, %v1730
        %v1831 = vmul.f32 %v1811, %v1731
        %v1832 = vmul.f32 %v1811, %v1732
        %v1833 = vmul.f32 %v1811, %v1733
        %v1834 = vmul.f32 %v1811, %v1734
        %v1835 = vmul.f32 %v1811, %v1735
        %v1836 = vmul.f32 %v1811, %v1736
        %v1837 = vmul.f32 %v1811, %v1737
        %v1838 = vmul.f32 %v1811, %v1738
        %v1839 = vmul.f32 %v1811, %v1739
        %v1840 = vmul.f32 %v1811, %v1740
        %v1841 = vmul.f32 %v1811, %v1741
        %v1842 = vmul.f32 %v1811, %v1742
        %v1843 = vmul.f32 %v1811, %v1743
        %1876 = vrot.lane.b32.xlu0 %v1812, 127
        %v1877 = vpop.permute.xlu0 %1876
        %1878 = vrot.lane.b32.xlu0 %v1813, 127
        %v1879 = vpop.permute.xlu0 %1878
        %1880 = vrot.lane.b32.xlu0 %v1814, 127
        %v1881 = vpop.permute.xlu0 %1880
        %1882 = vrot.lane.b32.xlu0 %v1815, 127
        %v1883 = vpop.permute.xlu0 %1882
        %1884 = vrot.lane.b32.xlu0 %v1816, 127
        %v1885 = vpop.permute.xlu0 %1884
        %1886 = vrot.lane.b32.xlu0 %v1817, 127
        %v1887 = vpop.permute.xlu0 %1886
        %1888 = vrot.lane.b32.xlu0 %v1818, 127
        %v1889 = vpop.permute.xlu0 %1888
        %1890 = vrot.lane.b32.xlu0 %v1819, 127
        %v1891 = vpop.permute.xlu0 %1890
        %1892 = vrot.lane.b32.xlu0 %v1820, 127
        %v1893 = vpop.permute.xlu0 %1892
        %1894 = vrot.lane.b32.xlu0 %v1821, 127
        %v1895 = vpop.permute.xlu0 %1894
        %1896 = vrot.lane.b32.xlu0 %v1822, 127
        %v1897 = vpop.permute.xlu0 %1896
        %1898 = vrot.lane.b32.xlu0 %v1823, 127
        %v1899 = vpop.permute.xlu0 %1898
        %1900 = vrot.lane.b32.xlu0 %v1824, 127
        %v1901 = vpop.permute.xlu0 %1900
        %1902 = vrot.lane.b32.xlu0 %v1825, 127
        %v1903 = vpop.permute.xlu0 %1902
        %1904 = vrot.lane.b32.xlu0 %v1826, 127
        %v1905 = vpop.permute.xlu0 %1904
        %1906 = vrot.lane.b32.xlu0 %v1827, 127
        %v1907 = vpop.permute.xlu0 %1906
        %1908 = vrot.lane.b32.xlu0 %v1828, 127
        %v1909 = vpop.permute.xlu0 %1908
        %1910 = vrot.lane.b32.xlu0 %v1829, 127
        %v1911 = vpop.permute.xlu0 %1910
        %1912 = vrot.lane.b32.xlu0 %v1830, 127
        %v1913 = vpop.permute.xlu0 %1912
        %1914 = vrot.lane.b32.xlu0 %v1831, 127
        %v1915 = vpop.permute.xlu0 %1914
        %1916 = vrot.lane.b32.xlu0 %v1832, 127
        %v1917 = vpop.permute.xlu0 %1916
        %1918 = vrot.lane.b32.xlu0 %v1833, 127
        %v1919 = vpop.permute.xlu0 %1918
        %1920 = vrot.lane.b32.xlu0 %v1834, 127
        %v1921 = vpop.permute.xlu0 %1920
        %1922 = vrot.lane.b32.xlu0 %v1835, 127
        %v1923 = vpop.permute.xlu0 %1922
        %1924 = vrot.lane.b32.xlu0 %v1836, 127
        %v1925 = vpop.permute.xlu0 %1924
        %1926 = vrot.lane.b32.xlu0 %v1837, 127
        %v1927 = vpop.permute.xlu0 %1926
        %1928 = vrot.lane.b32.xlu0 %v1838, 127
        %v1929 = vpop.permute.xlu0 %1928
        %1930 = vrot.lane.b32.xlu0 %v1839, 127
        %v1931 = vpop.permute.xlu0 %1930
        %1932 = vrot.lane.b32.xlu0 %v1840, 127
        %v1933 = vpop.permute.xlu0 %1932
        %1934 = vrot.lane.b32.xlu0 %v1841, 127
        %v1935 = vpop.permute.xlu0 %1934
        %1936 = vrot.lane.b32.xlu0 %v1842, 127
        %v1937 = vpop.permute.xlu0 %1936
        %1938 = vrot.lane.b32.xlu0 %v1843, 127
        %v1939 = vpop.permute.xlu0 %1938
        %v1972 = vadd.f32 %v1777, %v1877
        %v1973 = vadd.f32 %v1778, %v1879
        %v1974 = vadd.f32 %v1779, %v1881
        %v1975 = vadd.f32 %v1780, %v1883
        %v1976 = vadd.f32 %v1781, %v1885
        %v1977 = vadd.f32 %v1782, %v1887
        %v1978 = vadd.f32 %v1783, %v1889
        %v1979 = vadd.f32 %v1784, %v1891
        %v1980 = vadd.f32 %v1785, %v1893
        %v1981 = vadd.f32 %v1786, %v1895
        %v1982 = vadd.f32 %v1787, %v1897
        %v1983 = vadd.f32 %v1788, %v1899
        %v1984 = vadd.f32 %v1789, %v1901
        %v1985 = vadd.f32 %v1790, %v1903
        %v1986 = vadd.f32 %v1791, %v1905
        %v1987 = vadd.f32 %v1792, %v1907
        %v1988 = vadd.f32 %v1793, %v1909
        %v1989 = vadd.f32 %v1794, %v1911
        %v1990 = vadd.f32 %v1795, %v1913
        %v1991 = vadd.f32 %v1796, %v1915
        %v1992 = vadd.f32 %v1797, %v1917
        %v1993 = vadd.f32 %v1798, %v1919
        %v1994 = vadd.f32 %v1799, %v1921
        %v1995 = vadd.f32 %v1800, %v1923
        %v1996 = vadd.f32 %v1801, %v1925
        %v1997 = vadd.f32 %v1802, %v1927
        %v1998 = vadd.f32 %v1803, %v1929
        %v1999 = vadd.f32 %v1804, %v1931
        %v2000 = vadd.f32 %v1805, %v1933
        %v2001 = vadd.f32 %v1806, %v1935
        %v2002 = vadd.f32 %v1807, %v1937
        %v2003 = vadd.f32 %v1808, %v1939
        %s2004 = sadd.s32 %s242, 11
        %s2005 = sld [smem:[#allocation2 + %s2004]]
        %v2006 = vstv %s2005
        %v2007 = vmul.f32 %v2006, %v1712
        %v2008 = vmul.f32 %v2006, %v1713
        %v2009 = vmul.f32 %v2006, %v1714
        %v2010 = vmul.f32 %v2006, %v1715
        %v2011 = vmul.f32 %v2006, %v1716
        %v2012 = vmul.f32 %v2006, %v1717
        %v2013 = vmul.f32 %v2006, %v1718
        %v2014 = vmul.f32 %v2006, %v1719
        %v2015 = vmul.f32 %v2006, %v1720
        %v2016 = vmul.f32 %v2006, %v1721
        %v2017 = vmul.f32 %v2006, %v1722
        %v2018 = vmul.f32 %v2006, %v1723
        %v2019 = vmul.f32 %v2006, %v1724
        %v2020 = vmul.f32 %v2006, %v1725
        %v2021 = vmul.f32 %v2006, %v1726
        %v2022 = vmul.f32 %v2006, %v1727
        %v2023 = vmul.f32 %v2006, %v1728
        %v2024 = vmul.f32 %v2006, %v1729
        %v2025 = vmul.f32 %v2006, %v1730
        %v2026 = vmul.f32 %v2006, %v1731
        %v2027 = vmul.f32 %v2006, %v1732
        %v2028 = vmul.f32 %v2006, %v1733
        %v2029 = vmul.f32 %v2006, %v1734
        %v2030 = vmul.f32 %v2006, %v1735
        %v2031 = vmul.f32 %v2006, %v1736
        %v2032 = vmul.f32 %v2006, %v1737
        %v2033 = vmul.f32 %v2006, %v1738
        %v2034 = vmul.f32 %v2006, %v1739
        %v2035 = vmul.f32 %v2006, %v1740
        %v2036 = vmul.f32 %v2006, %v1741
        %v2037 = vmul.f32 %v2006, %v1742
        %v2038 = vmul.f32 %v2006, %v1743
        %2071 = vrot.lane.b32.xlu0 %v2007, 126
        %v2072 = vpop.permute.xlu0 %2071
        %2073 = vrot.lane.b32.xlu0 %v2008, 126
        %v2074 = vpop.permute.xlu0 %2073
        %2075 = vrot.lane.b32.xlu0 %v2009, 126
        %v2076 = vpop.permute.xlu0 %2075
        %2077 = vrot.lane.b32.xlu0 %v2010, 126
        %v2078 = vpop.permute.xlu0 %2077
        %2079 = vrot.lane.b32.xlu0 %v2011, 126
        %v2080 = vpop.permute.xlu0 %2079
        %2081 = vrot.lane.b32.xlu0 %v2012, 126
        %v2082 = vpop.permute.xlu0 %2081
        %2083 = vrot.lane.b32.xlu0 %v2013, 126
        %v2084 = vpop.permute.xlu0 %2083
        %2085 = vrot.lane.b32.xlu0 %v2014, 126
        %v2086 = vpop.permute.xlu0 %2085
        %2087 = vrot.lane.b32.xlu0 %v2015, 126
        %v2088 = vpop.permute.xlu0 %2087
        %2089 = vrot.lane.b32.xlu0 %v2016, 126
        %v2090 = vpop.permute.xlu0 %2089
        %2091 = vrot.lane.b32.xlu0 %v2017, 126
        %v2092 = vpop.permute.xlu0 %2091
        %2093 = vrot.lane.b32.xlu0 %v2018, 126
        %v2094 = vpop.permute.xlu0 %2093
        %2095 = vrot.lane.b32.xlu0 %v2019, 126
        %v2096 = vpop.permute.xlu0 %2095
        %2097 = vrot.lane.b32.xlu0 %v2020, 126
        %v2098 = vpop.permute.xlu0 %2097
        %2099 = vrot.lane.b32.xlu0 %v2021, 126
        %v2100 = vpop.permute.xlu0 %2099
        %2101 = vrot.lane.b32.xlu0 %v2022, 126
        %v2102 = vpop.permute.xlu0 %2101
        %2103 = vrot.lane.b32.xlu0 %v2023, 126
        %v2104 = vpop.permute.xlu0 %2103
        %2105 = vrot.lane.b32.xlu0 %v2024, 126
        %v2106 = vpop.permute.xlu0 %2105
        %2107 = vrot.lane.b32.xlu0 %v2025, 126
        %v2108 = vpop.permute.xlu0 %2107
        %2109 = vrot.lane.b32.xlu0 %v2026, 126
        %v2110 = vpop.permute.xlu0 %2109
        %2111 = vrot.lane.b32.xlu0 %v2027, 126
        %v2112 = vpop.permute.xlu0 %2111
        %2113 = vrot.lane.b32.xlu0 %v2028, 126
        %v2114 = vpop.permute.xlu0 %2113
        %2115 = vrot.lane.b32.xlu0 %v2029, 126
        %v2116 = vpop.permute.xlu0 %2115
        %2117 = vrot.lane.b32.xlu0 %v2030, 126
        %v2118 = vpop.permute.xlu0 %2117
        %2119 = vrot.lane.b32.xlu0 %v2031, 126
        %v2120 = vpop.permute.xlu0 %2119
        %2121 = vrot.lane.b32.xlu0 %v2032, 126
        %v2122 = vpop.permute.xlu0 %2121
        %2123 = vrot.lane.b32.xlu0 %v2033, 126
        %v2124 = vpop.permute.xlu0 %2123
        %2125 = vrot.lane.b32.xlu0 %v2034, 126
        %v2126 = vpop.permute.xlu0 %2125
        %2127 = vrot.lane.b32.xlu0 %v2035, 126
        %v2128 = vpop.permute.xlu0 %2127
        %2129 = vrot.lane.b32.xlu0 %v2036, 126
        %v2130 = vpop.permute.xlu0 %2129
        %2131 = vrot.lane.b32.xlu0 %v2037, 126
        %v2132 = vpop.permute.xlu0 %2131
        %2133 = vrot.lane.b32.xlu0 %v2038, 126
        %v2134 = vpop.permute.xlu0 %2133
        %v2167 = vadd.f32 %v1972, %v2072
        %v2168 = vadd.f32 %v1973, %v2074
        %v2169 = vadd.f32 %v1974, %v2076
        %v2170 = vadd.f32 %v1975, %v2078
        %v2171 = vadd.f32 %v1976, %v2080
        %v2172 = vadd.f32 %v1977, %v2082
        %v2173 = vadd.f32 %v1978, %v2084
        %v2174 = vadd.f32 %v1979, %v2086
        %v2175 = vadd.f32 %v1980, %v2088
        %v2176 = vadd.f32 %v1981, %v2090
        %v2177 = vadd.f32 %v1982, %v2092
        %v2178 = vadd.f32 %v1983, %v2094
        %v2179 = vadd.f32 %v1984, %v2096
        %v2180 = vadd.f32 %v1985, %v2098
        %v2181 = vadd.f32 %v1986, %v2100
        %v2182 = vadd.f32 %v1987, %v2102
        %v2183 = vadd.f32 %v1988, %v2104
        %v2184 = vadd.f32 %v1989, %v2106
        %v2185 = vadd.f32 %v1990, %v2108
        %v2186 = vadd.f32 %v1991, %v2110
        %v2187 = vadd.f32 %v1992, %v2112
        %v2188 = vadd.f32 %v1993, %v2114
        %v2189 = vadd.f32 %v1994, %v2116
        %v2190 = vadd.f32 %v1995, %v2118
        %v2191 = vadd.f32 %v1996, %v2120
        %v2192 = vadd.f32 %v1997, %v2122
        %v2193 = vadd.f32 %v1998, %v2124
        %v2194 = vadd.f32 %v1999, %v2126
        %v2195 = vadd.f32 %v2000, %v2128
        %v2196 = vadd.f32 %v2001, %v2130
        %v2197 = vadd.f32 %v2002, %v2132
        %v2198 = vadd.f32 %v2003, %v2134
        %s2199 = sadd.s32 %s242, 12
        %s2200 = sld [smem:[#allocation2 + %s2199]]
        %v2201 = vld [vmem:[%s1711 + $0x1] sm:$0xff]
        %v2202 = vld [vmem:[%s1711 + $0x9] sm:$0xff]
        %v2203 = vld [vmem:[%s1711 + $0x19] sm:$0xff]
        %v2204 = vld [vmem:[%s1711 + $0x21] sm:$0xff]
        %v2205 = vld [vmem:[%s1711 + $0x31] sm:$0xff]
        %v2206 = vld [vmem:[%s1711 + $0x39] sm:$0xff]
        %v2207 = vld [vmem:[%s1711 + $0x49] sm:$0xff]
        %v2208 = vld [vmem:[%s1711 + $0x51] sm:$0xff]
        %v2209 = vld [vmem:[%s1711 + $0x61] sm:$0xff]
        %v2210 = vld [vmem:[%s1711 + $0x69] sm:$0xff]
        %v2211 = vld [vmem:[%s1711 + $0x79] sm:$0xff]
        %v2212 = vld [vmem:[%s1711 + $0x81] sm:$0xff]
        %v2213 = vld [vmem:[%s1711 + $0x91] sm:$0xff]
        %v2214 = vld [vmem:[%s1711 + $0x99] sm:$0xff]
        %v2215 = vld [vmem:[%s1711 + $0xa9] sm:$0xff]
        %v2216 = vld [vmem:[%s1711 + $0xb1] sm:$0xff]
        %v2217 = vld [vmem:[%s1711 + $0xc1] sm:$0xff]
        %v2218 = vld [vmem:[%s1711 + $0xc9] sm:$0xff]
        %v2219 = vld [vmem:[%s1711 + $0xd9] sm:$0xff]
        %v2220 = vld [vmem:[%s1711 + $0xe1] sm:$0xff]
        %v2221 = vld [vmem:[%s1711 + $0xf1] sm:$0xff]
        %v2222 = vld [vmem:[%s1711 + $0xf9] sm:$0xff]
        %v2223 = vld [vmem:[%s1711 + $0x109] sm:$0xff]
        %v2224 = vld [vmem:[%s1711 + $0x111] sm:$0xff]
        %v2225 = vld [vmem:[%s1711 + $0x121] sm:$0xff]
        %v2226 = vld [vmem:[%s1711 + $0x129] sm:$0xff]
        %v2227 = vld [vmem:[%s1711 + $0x139] sm:$0xff]
        %v2228 = vld [vmem:[%s1711 + $0x141] sm:$0xff]
        %v2229 = vld [vmem:[%s1711 + $0x151] sm:$0xff]
        %v2230 = vld [vmem:[%s1711 + $0x159] sm:$0xff]
        %v2231 = vld [vmem:[%s1711 + $0x169] sm:$0xff]
        %v2232 = vld [vmem:[%s1711 + $0x171] sm:$0xff]
        %v2233 = vstv %s2200
        %v2234 = vmul.f32 %v2233, %v2201
        %v2235 = vmul.f32 %v2233, %v2202
        %v2236 = vmul.f32 %v2233, %v2203
        %v2237 = vmul.f32 %v2233, %v2204
        %v2238 = vmul.f32 %v2233, %v2205
        %v2239 = vmul.f32 %v2233, %v2206
        %v2240 = vmul.f32 %v2233, %v2207
        %v2241 = vmul.f32 %v2233, %v2208
        %v2242 = vmul.f32 %v2233, %v2209
        %v2243 = vmul.f32 %v2233, %v2210
        %v2244 = vmul.f32 %v2233, %v2211
        %v2245 = vmul.f32 %v2233, %v2212
        %v2246 = vmul.f32 %v2233, %v2213
        %v2247 = vmul.f32 %v2233, %v2214
        %v2248 = vmul.f32 %v2233, %v2215
        %v2249 = vmul.f32 %v2233, %v2216
        %v2250 = vmul.f32 %v2233, %v2217
        %v2251 = vmul.f32 %v2233, %v2218
        %v2252 = vmul.f32 %v2233, %v2219
        %v2253 = vmul.f32 %v2233, %v2220
        %v2254 = vmul.f32 %v2233, %v2221
        %v2255 = vmul.f32 %v2233, %v2222
        %v2256 = vmul.f32 %v2233, %v2223
        %v2257 = vmul.f32 %v2233, %v2224
        %v2258 = vmul.f32 %v2233, %v2225
        %v2259 = vmul.f32 %v2233, %v2226
        %v2260 = vmul.f32 %v2233, %v2227
        %v2261 = vmul.f32 %v2233, %v2228
        %v2262 = vmul.f32 %v2233, %v2229
        %v2263 = vmul.f32 %v2233, %v2230
        %v2264 = vmul.f32 %v2233, %v2231
        %v2265 = vmul.f32 %v2233, %v2232
        %v2266 = vadd.f32 %v2167, %v2234
        %v2267 = vadd.f32 %v2168, %v2235
        %v2268 = vadd.f32 %v2169, %v2236
        %v2269 = vadd.f32 %v2170, %v2237
        %v2270 = vadd.f32 %v2171, %v2238
        %v2271 = vadd.f32 %v2172, %v2239
        %v2272 = vadd.f32 %v2173, %v2240
        %v2273 = vadd.f32 %v2174, %v2241
        %v2274 = vadd.f32 %v2175, %v2242
        %v2275 = vadd.f32 %v2176, %v2243
        %v2276 = vadd.f32 %v2177, %v2244
        %v2277 = vadd.f32 %v2178, %v2245
        %v2278 = vadd.f32 %v2179, %v2246
        %v2279 = vadd.f32 %v2180, %v2247
        %v2280 = vadd.f32 %v2181, %v2248
        %v2281 = vadd.f32 %v2182, %v2249
        %v2282 = vadd.f32 %v2183, %v2250
        %v2283 = vadd.f32 %v2184, %v2251
        %v2284 = vadd.f32 %v2185, %v2252
        %v2285 = vadd.f32 %v2186, %v2253
        %v2286 = vadd.f32 %v2187, %v2254
        %v2287 = vadd.f32 %v2188, %v2255
        %v2288 = vadd.f32 %v2189, %v2256
        %v2289 = vadd.f32 %v2190, %v2257
        %v2290 = vadd.f32 %v2191, %v2258
        %v2291 = vadd.f32 %v2192, %v2259
        %v2292 = vadd.f32 %v2193, %v2260
        %v2293 = vadd.f32 %v2194, %v2261
        %v2294 = vadd.f32 %v2195, %v2262
        %v2295 = vadd.f32 %v2196, %v2263
        %v2296 = vadd.f32 %v2197, %v2264
        %v2297 = vadd.f32 %v2198, %v2265
        %s2298 = sadd.s32 %s242, 13
        %s2299 = sld [smem:[#allocation2 + %s2298]]
        %v2300 = vstv %s2299
        %v2301 = vmul.f32 %v2300, %v2201
        %v2302 = vmul.f32 %v2300, %v2202
        %v2303 = vmul.f32 %v2300, %v2203
        %v2304 = vmul.f32 %v2300, %v2204
        %v2305 = vmul.f32 %v2300, %v2205
        %v2306 = vmul.f32 %v2300, %v2206
        %v2307 = vmul.f32 %v2300, %v2207
        %v2308 = vmul.f32 %v2300, %v2208
        %v2309 = vmul.f32 %v2300, %v2209
        %v2310 = vmul.f32 %v2300, %v2210
        %v2311 = vmul.f32 %v2300, %v2211
        %v2312 = vmul.f32 %v2300, %v2212
        %v2313 = vmul.f32 %v2300, %v2213
        %v2314 = vmul.f32 %v2300, %v2214
        %v2315 = vmul.f32 %v2300, %v2215
        %v2316 = vmul.f32 %v2300, %v2216
        %v2317 = vmul.f32 %v2300, %v2217
        %v2318 = vmul.f32 %v2300, %v2218
        %v2319 = vmul.f32 %v2300, %v2219
        %v2320 = vmul.f32 %v2300, %v2220
        %v2321 = vmul.f32 %v2300, %v2221
        %v2322 = vmul.f32 %v2300, %v2222
        %v2323 = vmul.f32 %v2300, %v2223
        %v2324 = vmul.f32 %v2300, %v2224
        %v2325 = vmul.f32 %v2300, %v2225
        %v2326 = vmul.f32 %v2300, %v2226
        %v2327 = vmul.f32 %v2300, %v2227
        %v2328 = vmul.f32 %v2300, %v2228
        %v2329 = vmul.f32 %v2300, %v2229
        %v2330 = vmul.f32 %v2300, %v2230
        %v2331 = vmul.f32 %v2300, %v2231
        %v2332 = vmul.f32 %v2300, %v2232
        %2365 = vrot.lane.b32.xlu0 %v2301, 127
        %v2366 = vpop.permute.xlu0 %2365
        %2367 = vrot.lane.b32.xlu0 %v2302, 127
        %v2368 = vpop.permute.xlu0 %2367
        %2369 = vrot.lane.b32.xlu0 %v2303, 127
        %v2370 = vpop.permute.xlu0 %2369
        %2371 = vrot.lane.b32.xlu0 %v2304, 127
        %v2372 = vpop.permute.xlu0 %2371
        %2373 = vrot.lane.b32.xlu0 %v2305, 127
        %v2374 = vpop.permute.xlu0 %2373
        %2375 = vrot.lane.b32.xlu0 %v2306, 127
        %v2376 = vpop.permute.xlu0 %2375
        %2377 = vrot.lane.b32.xlu0 %v2307, 127
        %v2378 = vpop.permute.xlu0 %2377
        %2379 = vrot.lane.b32.xlu0 %v2308, 127
        %v2380 = vpop.permute.xlu0 %2379
        %2381 = vrot.lane.b32.xlu0 %v2309, 127
        %v2382 = vpop.permute.xlu0 %2381
        %2383 = vrot.lane.b32.xlu0 %v2310, 127
        %v2384 = vpop.permute.xlu0 %2383
        %2385 = vrot.lane.b32.xlu0 %v2311, 127
        %v2386 = vpop.permute.xlu0 %2385
        %2387 = vrot.lane.b32.xlu0 %v2312, 127
        %v2388 = vpop.permute.xlu0 %2387
        %2389 = vrot.lane.b32.xlu0 %v2313, 127
        %v2390 = vpop.permute.xlu0 %2389
        %2391 = vrot.lane.b32.xlu0 %v2314, 127
        %v2392 = vpop.permute.xlu0 %2391
        %2393 = vrot.lane.b32.xlu0 %v2315, 127
        %v2394 = vpop.permute.xlu0 %2393
        %2395 = vrot.lane.b32.xlu0 %v2316, 127
        %v2396 = vpop.permute.xlu0 %2395
        %2397 = vrot.lane.b32.xlu0 %v2317, 127
        %v2398 = vpop.permute.xlu0 %2397
        %2399 = vrot.lane.b32.xlu0 %v2318, 127
        %v2400 = vpop.permute.xlu0 %2399
        %2401 = vrot.lane.b32.xlu0 %v2319, 127
        %v2402 = vpop.permute.xlu0 %2401
        %2403 = vrot.lane.b32.xlu0 %v2320, 127
        %v2404 = vpop.permute.xlu0 %2403
        %2405 = vrot.lane.b32.xlu0 %v2321, 127
        %v2406 = vpop.permute.xlu0 %2405
        %2407 = vrot.lane.b32.xlu0 %v2322, 127
        %v2408 = vpop.permute.xlu0 %2407
        %2409 = vrot.lane.b32.xlu0 %v2323, 127
        %v2410 = vpop.permute.xlu0 %2409
        %2411 = vrot.lane.b32.xlu0 %v2324, 127
        %v2412 = vpop.permute.xlu0 %2411
        %2413 = vrot.lane.b32.xlu0 %v2325, 127
        %v2414 = vpop.permute.xlu0 %2413
        %2415 = vrot.lane.b32.xlu0 %v2326, 127
        %v2416 = vpop.permute.xlu0 %2415
        %2417 = vrot.lane.b32.xlu0 %v2327, 127
        %v2418 = vpop.permute.xlu0 %2417
        %2419 = vrot.lane.b32.xlu0 %v2328, 127
        %v2420 = vpop.permute.xlu0 %2419
        %2421 = vrot.lane.b32.xlu0 %v2329, 127
        %v2422 = vpop.permute.xlu0 %2421
        %2423 = vrot.lane.b32.xlu0 %v2330, 127
        %v2424 = vpop.permute.xlu0 %2423
        %2425 = vrot.lane.b32.xlu0 %v2331, 127
        %v2426 = vpop.permute.xlu0 %2425
        %2427 = vrot.lane.b32.xlu0 %v2332, 127
        %v2428 = vpop.permute.xlu0 %2427
        %v2461 = vadd.f32 %v2266, %v2366
        %v2462 = vadd.f32 %v2267, %v2368
        %v2463 = vadd.f32 %v2268, %v2370
        %v2464 = vadd.f32 %v2269, %v2372
        %v2465 = vadd.f32 %v2270, %v2374
        %v2466 = vadd.f32 %v2271, %v2376
        %v2467 = vadd.f32 %v2272, %v2378
        %v2468 = vadd.f32 %v2273, %v2380
        %v2469 = vadd.f32 %v2274, %v2382
        %v2470 = vadd.f32 %v2275, %v2384
        %v2471 = vadd.f32 %v2276, %v2386
        %v2472 = vadd.f32 %v2277, %v2388
        %v2473 = vadd.f32 %v2278, %v2390
        %v2474 = vadd.f32 %v2279, %v2392
        %v2475 = vadd.f32 %v2280, %v2394
        %v2476 = vadd.f32 %v2281, %v2396
        %v2477 = vadd.f32 %v2282, %v2398
        %v2478 = vadd.f32 %v2283, %v2400
        %v2479 = vadd.f32 %v2284, %v2402
        %v2480 = vadd.f32 %v2285, %v2404
        %v2481 = vadd.f32 %v2286, %v2406
        %v2482 = vadd.f32 %v2287, %v2408
        %v2483 = vadd.f32 %v2288, %v2410
        %v2484 = vadd.f32 %v2289, %v2412
        %v2485 = vadd.f32 %v2290, %v2414
        %v2486 = vadd.f32 %v2291, %v2416
        %v2487 = vadd.f32 %v2292, %v2418
        %v2488 = vadd.f32 %v2293, %v2420
        %v2489 = vadd.f32 %v2294, %v2422
        %v2490 = vadd.f32 %v2295, %v2424
        %v2491 = vadd.f32 %v2296, %v2426
        %v2492 = vadd.f32 %v2297, %v2428
        %s2493 = sadd.s32 %s242, 14
        %s2494 = sld [smem:[#allocation2 + %s2493]]
        %v2495 = vstv %s2494
        %v2496 = vmul.f32 %v2495, %v2201
        %v2497 = vmul.f32 %v2495, %v2202
        %v2498 = vmul.f32 %v2495, %v2203
        %v2499 = vmul.f32 %v2495, %v2204
        %v2500 = vmul.f32 %v2495, %v2205
        %v2501 = vmul.f32 %v2495, %v2206
        %v2502 = vmul.f32 %v2495, %v2207
        %v2503 = vmul.f32 %v2495, %v2208
        %v2504 = vmul.f32 %v2495, %v2209
        %v2505 = vmul.f32 %v2495, %v2210
        %v2506 = vmul.f32 %v2495, %v2211
        %v2507 = vmul.f32 %v2495, %v2212
        %v2508 = vmul.f32 %v2495, %v2213
        %v2509 = vmul.f32 %v2495, %v2214
        %v2510 = vmul.f32 %v2495, %v2215
        %v2511 = vmul.f32 %v2495, %v2216
        %v2512 = vmul.f32 %v2495, %v2217
        %v2513 = vmul.f32 %v2495, %v2218
        %v2514 = vmul.f32 %v2495, %v2219
        %v2515 = vmul.f32 %v2495, %v2220
        %v2516 = vmul.f32 %v2495, %v2221
        %v2517 = vmul.f32 %v2495, %v2222
        %v2518 = vmul.f32 %v2495, %v2223
        %v2519 = vmul.f32 %v2495, %v2224
        %v2520 = vmul.f32 %v2495, %v2225
        %v2521 = vmul.f32 %v2495, %v2226
        %v2522 = vmul.f32 %v2495, %v2227
        %v2523 = vmul.f32 %v2495, %v2228
        %v2524 = vmul.f32 %v2495, %v2229
        %v2525 = vmul.f32 %v2495, %v2230
        %v2526 = vmul.f32 %v2495, %v2231
        %v2527 = vmul.f32 %v2495, %v2232
        %2560 = vrot.lane.b32.xlu0 %v2496, 126
        %v2561 = vpop.permute.xlu0 %2560
        %2562 = vrot.lane.b32.xlu0 %v2497, 126
        %v2563 = vpop.permute.xlu0 %2562
        %2564 = vrot.lane.b32.xlu0 %v2498, 126
        %v2565 = vpop.permute.xlu0 %2564
        %2566 = vrot.lane.b32.xlu0 %v2499, 126
        %v2567 = vpop.permute.xlu0 %2566
        %2568 = vrot.lane.b32.xlu0 %v2500, 126
        %v2569 = vpop.permute.xlu0 %2568
        %2570 = vrot.lane.b32.xlu0 %v2501, 126
        %v2571 = vpop.permute.xlu0 %2570
        %2572 = vrot.lane.b32.xlu0 %v2502, 126
        %v2573 = vpop.permute.xlu0 %2572
        %2574 = vrot.lane.b32.xlu0 %v2503, 126
        %v2575 = vpop.permute.xlu0 %2574
        %2576 = vrot.lane.b32.xlu0 %v2504, 126
        %v2577 = vpop.permute.xlu0 %2576
        %2578 = vrot.lane.b32.xlu0 %v2505, 126
        %v2579 = vpop.permute.xlu0 %2578
        %2580 = vrot.lane.b32.xlu0 %v2506, 126
        %v2581 = vpop.permute.xlu0 %2580
        %2582 = vrot.lane.b32.xlu0 %v2507, 126
        %v2583 = vpop.permute.xlu0 %2582
        %2584 = vrot.lane.b32.xlu0 %v2508, 126
        %v2585 = vpop.permute.xlu0 %2584
        %2586 = vrot.lane.b32.xlu0 %v2509, 126
        %v2587 = vpop.permute.xlu0 %2586
        %2588 = vrot.lane.b32.xlu0 %v2510, 126
        %v2589 = vpop.permute.xlu0 %2588
        %2590 = vrot.lane.b32.xlu0 %v2511, 126
        %v2591 = vpop.permute.xlu0 %2590
        %2592 = vrot.lane.b32.xlu0 %v2512, 126
        %v2593 = vpop.permute.xlu0 %2592
        %2594 = vrot.lane.b32.xlu0 %v2513, 126
        %v2595 = vpop.permute.xlu0 %2594
        %2596 = vrot.lane.b32.xlu0 %v2514, 126
        %v2597 = vpop.permute.xlu0 %2596
        %2598 = vrot.lane.b32.xlu0 %v2515, 126
        %v2599 = vpop.permute.xlu0 %2598
        %2600 = vrot.lane.b32.xlu0 %v2516, 126
        %v2601 = vpop.permute.xlu0 %2600
        %2602 = vrot.lane.b32.xlu0 %v2517, 126
        %v2603 = vpop.permute.xlu0 %2602
        %2604 = vrot.lane.b32.xlu0 %v2518, 126
        %v2605 = vpop.permute.xlu0 %2604
        %2606 = vrot.lane.b32.xlu0 %v2519, 126
        %v2607 = vpop.permute.xlu0 %2606
        %2608 = vrot.lane.b32.xlu0 %v2520, 126
        %v2609 = vpop.permute.xlu0 %2608
        %2610 = vrot.lane.b32.xlu0 %v2521, 126
        %v2611 = vpop.permute.xlu0 %2610
        %2612 = vrot.lane.b32.xlu0 %v2522, 126
        %v2613 = vpop.permute.xlu0 %2612
        %2614 = vrot.lane.b32.xlu0 %v2523, 126
        %v2615 = vpop.permute.xlu0 %2614
        %2616 = vrot.lane.b32.xlu0 %v2524, 126
        %v2617 = vpop.permute.xlu0 %2616
        %2618 = vrot.lane.b32.xlu0 %v2525, 126
        %v2619 = vpop.permute.xlu0 %2618
        %2620 = vrot.lane.b32.xlu0 %v2526, 126
        %v2621 = vpop.permute.xlu0 %2620
        %2622 = vrot.lane.b32.xlu0 %v2527, 126
        %v2623 = vpop.permute.xlu0 %2622
        %v2656 = vadd.f32 %v2461, %v2561
        %v2657 = vadd.f32 %v2462, %v2563
        %v2658 = vadd.f32 %v2463, %v2565
        %v2659 = vadd.f32 %v2464, %v2567
        %v2660 = vadd.f32 %v2465, %v2569
        %v2661 = vadd.f32 %v2466, %v2571
        %v2662 = vadd.f32 %v2467, %v2573
        %v2663 = vadd.f32 %v2468, %v2575
        %v2664 = vadd.f32 %v2469, %v2577
        %v2665 = vadd.f32 %v2470, %v2579
        %v2666 = vadd.f32 %v2471, %v2581
        %v2667 = vadd.f32 %v2472, %v2583
        %v2668 = vadd.f32 %v2473, %v2585
        %v2669 = vadd.f32 %v2474, %v2587
        %v2670 = vadd.f32 %v2475, %v2589
        %v2671 = vadd.f32 %v2476, %v2591
        %v2672 = vadd.f32 %v2477, %v2593
        %v2673 = vadd.f32 %v2478, %v2595
        %v2674 = vadd.f32 %v2479, %v2597
        %v2675 = vadd.f32 %v2480, %v2599
        %v2676 = vadd.f32 %v2481, %v2601
        %v2677 = vadd.f32 %v2482, %v2603
        %v2678 = vadd.f32 %v2483, %v2605
        %v2679 = vadd.f32 %v2484, %v2607
        %v2680 = vadd.f32 %v2485, %v2609
        %v2681 = vadd.f32 %v2486, %v2611
        %v2682 = vadd.f32 %v2487, %v2613
        %v2683 = vadd.f32 %v2488, %v2615
        %v2684 = vadd.f32 %v2489, %v2617
        %v2685 = vadd.f32 %v2490, %v2619
        %v2686 = vadd.f32 %v2491, %v2621
        %v2687 = vadd.f32 %v2492, %v2623
        %s2688 = sadd.s32 %s242, 15
        %s2689 = sld [smem:[#allocation2 + %s2688]]
        %v2690 = vld [vmem:[%s1711 + $0x2] sm:$0xff]
        %v2691 = vld [vmem:[%s1711 + $0xa] sm:$0xff]
        %v2692 = vld [vmem:[%s1711 + $0x1a] sm:$0xff]
        %v2693 = vld [vmem:[%s1711 + $0x22] sm:$0xff]
        %v2694 = vld [vmem:[%s1711 + $0x32] sm:$0xff]
        %v2695 = vld [vmem:[%s1711 + $0x3a] sm:$0xff]
        %v2696 = vld [vmem:[%s1711 + $0x4a] sm:$0xff]
        %v2697 = vld [vmem:[%s1711 + $0x52] sm:$0xff]
        %v2698 = vld [vmem:[%s1711 + $0x62] sm:$0xff]
        %v2699 = vld [vmem:[%s1711 + $0x6a] sm:$0xff]
        %v2700 = vld [vmem:[%s1711 + $0x7a] sm:$0xff]
        %v2701 = vld [vmem:[%s1711 + $0x82] sm:$0xff]
        %v2702 = vld [vmem:[%s1711 + $0x92] sm:$0xff]
        %v2703 = vld [vmem:[%s1711 + $0x9a] sm:$0xff]
        %v2704 = vld [vmem:[%s1711 + $0xaa] sm:$0xff]
        %v2705 = vld [vmem:[%s1711 + $0xb2] sm:$0xff]
        %v2706 = vld [vmem:[%s1711 + $0xc2] sm:$0xff]
        %v2707 = vld [vmem:[%s1711 + $0xca] sm:$0xff]
        %v2708 = vld [vmem:[%s1711 + $0xda] sm:$0xff]
        %v2709 = vld [vmem:[%s1711 + $0xe2] sm:$0xff]
        %v2710 = vld [vmem:[%s1711 + $0xf2] sm:$0xff]
        %v2711 = vld [vmem:[%s1711 + $0xfa] sm:$0xff]
        %v2712 = vld [vmem:[%s1711 + $0x10a] sm:$0xff]
        %v2713 = vld [vmem:[%s1711 + $0x112] sm:$0xff]
        %v2714 = vld [vmem:[%s1711 + $0x122] sm:$0xff]
        %v2715 = vld [vmem:[%s1711 + $0x12a] sm:$0xff]
        %v2716 = vld [vmem:[%s1711 + $0x13a] sm:$0xff]
        %v2717 = vld [vmem:[%s1711 + $0x142] sm:$0xff]
        %v2718 = vld [vmem:[%s1711 + $0x152] sm:$0xff]
        %v2719 = vld [vmem:[%s1711 + $0x15a] sm:$0xff]
        %v2720 = vld [vmem:[%s1711 + $0x16a] sm:$0xff]
        %v2721 = vld [vmem:[%s1711 + $0x172] sm:$0xff]
        %v2722 = vstv %s2689
        %v2723 = vmul.f32 %v2722, %v2690
        %v2724 = vmul.f32 %v2722, %v2691
        %v2725 = vmul.f32 %v2722, %v2692
        %v2726 = vmul.f32 %v2722, %v2693
        %v2727 = vmul.f32 %v2722, %v2694
        %v2728 = vmul.f32 %v2722, %v2695
        %v2729 = vmul.f32 %v2722, %v2696
        %v2730 = vmul.f32 %v2722, %v2697
        %v2731 = vmul.f32 %v2722, %v2698
        %v2732 = vmul.f32 %v2722, %v2699
        %v2733 = vmul.f32 %v2722, %v2700
        %v2734 = vmul.f32 %v2722, %v2701
        %v2735 = vmul.f32 %v2722, %v2702
        %v2736 = vmul.f32 %v2722, %v2703
        %v2737 = vmul.f32 %v2722, %v2704
        %v2738 = vmul.f32 %v2722, %v2705
        %v2739 = vmul.f32 %v2722, %v2706
        %v2740 = vmul.f32 %v2722, %v2707
        %v2741 = vmul.f32 %v2722, %v2708
        %v2742 = vmul.f32 %v2722, %v2709
        %v2743 = vmul.f32 %v2722, %v2710
        %v2744 = vmul.f32 %v2722, %v2711
        %v2745 = vmul.f32 %v2722, %v2712
        %v2746 = vmul.f32 %v2722, %v2713
        %v2747 = vmul.f32 %v2722, %v2714
        %v2748 = vmul.f32 %v2722, %v2715
        %v2749 = vmul.f32 %v2722, %v2716
        %v2750 = vmul.f32 %v2722, %v2717
        %v2751 = vmul.f32 %v2722, %v2718
        %v2752 = vmul.f32 %v2722, %v2719
        %v2753 = vmul.f32 %v2722, %v2720
        %v2754 = vmul.f32 %v2722, %v2721
        %v2755 = vadd.f32 %v2656, %v2723
        %v2756 = vadd.f32 %v2657, %v2724
        %v2757 = vadd.f32 %v2658, %v2725
        %v2758 = vadd.f32 %v2659, %v2726
        %v2759 = vadd.f32 %v2660, %v2727
        %v2760 = vadd.f32 %v2661, %v2728
        %v2761 = vadd.f32 %v2662, %v2729
        %v2762 = vadd.f32 %v2663, %v2730
        %v2763 = vadd.f32 %v2664, %v2731
        %v2764 = vadd.f32 %v2665, %v2732
        %v2765 = vadd.f32 %v2666, %v2733
        %v2766 = vadd.f32 %v2667, %v2734
        %v2767 = vadd.f32 %v2668, %v2735
        %v2768 = vadd.f32 %v2669, %v2736
        %v2769 = vadd.f32 %v2670, %v2737
        %v2770 = vadd.f32 %v2671, %v2738
        %v2771 = vadd.f32 %v2672, %v2739
        %v2772 = vadd.f32 %v2673, %v2740
        %v2773 = vadd.f32 %v2674, %v2741
        %v2774 = vadd.f32 %v2675, %v2742
        %v2775 = vadd.f32 %v2676, %v2743
        %v2776 = vadd.f32 %v2677, %v2744
        %v2777 = vadd.f32 %v2678, %v2745
        %v2778 = vadd.f32 %v2679, %v2746
        %v2779 = vadd.f32 %v2680, %v2747
        %v2780 = vadd.f32 %v2681, %v2748
        %v2781 = vadd.f32 %v2682, %v2749
        %v2782 = vadd.f32 %v2683, %v2750
        %v2783 = vadd.f32 %v2684, %v2751
        %v2784 = vadd.f32 %v2685, %v2752
        %v2785 = vadd.f32 %v2686, %v2753
        %v2786 = vadd.f32 %v2687, %v2754
        %s2787 = sadd.s32 %s242, 16
        %s2788 = sld [smem:[#allocation2 + %s2787]]
        %v2789 = vstv %s2788
        %v2790 = vmul.f32 %v2789, %v2690
        %v2791 = vmul.f32 %v2789, %v2691
        %v2792 = vmul.f32 %v2789, %v2692
        %v2793 = vmul.f32 %v2789, %v2693
        %v2794 = vmul.f32 %v2789, %v2694
        %v2795 = vmul.f32 %v2789, %v2695
        %v2796 = vmul.f32 %v2789, %v2696
        %v2797 = vmul.f32 %v2789, %v2697
        %v2798 = vmul.f32 %v2789, %v2698
        %v2799 = vmul.f32 %v2789, %v2699
        %v2800 = vmul.f32 %v2789, %v2700
        %v2801 = vmul.f32 %v2789, %v2701
        %v2802 = vmul.f32 %v2789, %v2702
        %v2803 = vmul.f32 %v2789, %v2703
        %v2804 = vmul.f32 %v2789, %v2704
        %v2805 = vmul.f32 %v2789, %v2705
        %v2806 = vmul.f32 %v2789, %v2706
        %v2807 = vmul.f32 %v2789, %v2707
        %v2808 = vmul.f32 %v2789, %v2708
        %v2809 = vmul.f32 %v2789, %v2709
        %v2810 = vmul.f32 %v2789, %v2710
        %v2811 = vmul.f32 %v2789, %v2711
        %v2812 = vmul.f32 %v2789, %v2712
        %v2813 = vmul.f32 %v2789, %v2713
        %v2814 = vmul.f32 %v2789, %v2714
        %v2815 = vmul.f32 %v2789, %v2715
        %v2816 = vmul.f32 %v2789, %v2716
        %v2817 = vmul.f32 %v2789, %v2717
        %v2818 = vmul.f32 %v2789, %v2718
        %v2819 = vmul.f32 %v2789, %v2719
        %v2820 = vmul.f32 %v2789, %v2720
        %v2821 = vmul.f32 %v2789, %v2721
        %2854 = vrot.lane.b32.xlu0 %v2790, 127
        %v2855 = vpop.permute.xlu0 %2854
        %2856 = vrot.lane.b32.xlu0 %v2791, 127
        %v2857 = vpop.permute.xlu0 %2856
        %2858 = vrot.lane.b32.xlu0 %v2792, 127
        %v2859 = vpop.permute.xlu0 %2858
        %2860 = vrot.lane.b32.xlu0 %v2793, 127
        %v2861 = vpop.permute.xlu0 %2860
        %2862 = vrot.lane.b32.xlu0 %v2794, 127
        %v2863 = vpop.permute.xlu0 %2862
        %2864 = vrot.lane.b32.xlu0 %v2795, 127
        %v2865 = vpop.permute.xlu0 %2864
        %2866 = vrot.lane.b32.xlu0 %v2796, 127
        %v2867 = vpop.permute.xlu0 %2866
        %2868 = vrot.lane.b32.xlu0 %v2797, 127
        %v2869 = vpop.permute.xlu0 %2868
        %2870 = vrot.lane.b32.xlu0 %v2798, 127
        %v2871 = vpop.permute.xlu0 %2870
        %2872 = vrot.lane.b32.xlu0 %v2799, 127
        %v2873 = vpop.permute.xlu0 %2872
        %2874 = vrot.lane.b32.xlu0 %v2800, 127
        %v2875 = vpop.permute.xlu0 %2874
        %2876 = vrot.lane.b32.xlu0 %v2801, 127
        %v2877 = vpop.permute.xlu0 %2876
        %2878 = vrot.lane.b32.xlu0 %v2802, 127
        %v2879 = vpop.permute.xlu0 %2878
        %2880 = vrot.lane.b32.xlu0 %v2803, 127
        %v2881 = vpop.permute.xlu0 %2880
        %2882 = vrot.lane.b32.xlu0 %v2804, 127
        %v2883 = vpop.permute.xlu0 %2882
        %2884 = vrot.lane.b32.xlu0 %v2805, 127
        %v2885 = vpop.permute.xlu0 %2884
        %2886 = vrot.lane.b32.xlu0 %v2806, 127
        %v2887 = vpop.permute.xlu0 %2886
        %2888 = vrot.lane.b32.xlu0 %v2807, 127
        %v2889 = vpop.permute.xlu0 %2888
        %2890 = vrot.lane.b32.xlu0 %v2808, 127
        %v2891 = vpop.permute.xlu0 %2890
        %2892 = vrot.lane.b32.xlu0 %v2809, 127
        %v2893 = vpop.permute.xlu0 %2892
        %2894 = vrot.lane.b32.xlu0 %v2810, 127
        %v2895 = vpop.permute.xlu0 %2894
        %2896 = vrot.lane.b32.xlu0 %v2811, 127
        %v2897 = vpop.permute.xlu0 %2896
        %2898 = vrot.lane.b32.xlu0 %v2812, 127
        %v2899 = vpop.permute.xlu0 %2898
        %2900 = vrot.lane.b32.xlu0 %v2813, 127
        %v2901 = vpop.permute.xlu0 %2900
        %2902 = vrot.lane.b32.xlu0 %v2814, 127
        %v2903 = vpop.permute.xlu0 %2902
        %2904 = vrot.lane.b32.xlu0 %v2815, 127
        %v2905 = vpop.permute.xlu0 %2904
        %2906 = vrot.lane.b32.xlu0 %v2816, 127
        %v2907 = vpop.permute.xlu0 %2906
        %2908 = vrot.lane.b32.xlu0 %v2817, 127
        %v2909 = vpop.permute.xlu0 %2908
        %2910 = vrot.lane.b32.xlu0 %v2818, 127
        %v2911 = vpop.permute.xlu0 %2910
        %2912 = vrot.lane.b32.xlu0 %v2819, 127
        %v2913 = vpop.permute.xlu0 %2912
        %2914 = vrot.lane.b32.xlu0 %v2820, 127
        %v2915 = vpop.permute.xlu0 %2914
        %2916 = vrot.lane.b32.xlu0 %v2821, 127
        %v2917 = vpop.permute.xlu0 %2916
        %v2950 = vadd.f32 %v2755, %v2855
        %v2951 = vadd.f32 %v2756, %v2857
        %v2952 = vadd.f32 %v2757, %v2859
        %v2953 = vadd.f32 %v2758, %v2861
        %v2954 = vadd.f32 %v2759, %v2863
        %v2955 = vadd.f32 %v2760, %v2865
        %v2956 = vadd.f32 %v2761, %v2867
        %v2957 = vadd.f32 %v2762, %v2869
        %v2958 = vadd.f32 %v2763, %v2871
        %v2959 = vadd.f32 %v2764, %v2873
        %v2960 = vadd.f32 %v2765, %v2875
        %v2961 = vadd.f32 %v2766, %v2877
        %v2962 = vadd.f32 %v2767, %v2879
        %v2963 = vadd.f32 %v2768, %v2881
        %v2964 = vadd.f32 %v2769, %v2883
        %v2965 = vadd.f32 %v2770, %v2885
        %v2966 = vadd.f32 %v2771, %v2887
        %v2967 = vadd.f32 %v2772, %v2889
        %v2968 = vadd.f32 %v2773, %v2891
        %v2969 = vadd.f32 %v2774, %v2893
        %v2970 = vadd.f32 %v2775, %v2895
        %v2971 = vadd.f32 %v2776, %v2897
        %v2972 = vadd.f32 %v2777, %v2899
        %v2973 = vadd.f32 %v2778, %v2901
        %v2974 = vadd.f32 %v2779, %v2903
        %v2975 = vadd.f32 %v2780, %v2905
        %v2976 = vadd.f32 %v2781, %v2907
        %v2977 = vadd.f32 %v2782, %v2909
        %v2978 = vadd.f32 %v2783, %v2911
        %v2979 = vadd.f32 %v2784, %v2913
        %v2980 = vadd.f32 %v2785, %v2915
        %v2981 = vadd.f32 %v2786, %v2917
        %s2982 = sadd.s32 %s242, 17
        %s2983 = sld [smem:[#allocation2 + %s2982]]
        %v2984 = vstv %s2983
        %v2985 = vmul.f32 %v2984, %v2690
        %v2986 = vmul.f32 %v2984, %v2691
        %v2987 = vmul.f32 %v2984, %v2692
        %v2988 = vmul.f32 %v2984, %v2693
        %v2989 = vmul.f32 %v2984, %v2694
        %v2990 = vmul.f32 %v2984, %v2695
        %v2991 = vmul.f32 %v2984, %v2696
        %v2992 = vmul.f32 %v2984, %v2697
        %v2993 = vmul.f32 %v2984, %v2698
        %v2994 = vmul.f32 %v2984, %v2699
        %v2995 = vmul.f32 %v2984, %v2700
        %v2996 = vmul.f32 %v2984, %v2701
        %v2997 = vmul.f32 %v2984, %v2702
        %v2998 = vmul.f32 %v2984, %v2703
        %v2999 = vmul.f32 %v2984, %v2704
        %v3000 = vmul.f32 %v2984, %v2705
        %v3001 = vmul.f32 %v2984, %v2706
        %v3002 = vmul.f32 %v2984, %v2707
        %v3003 = vmul.f32 %v2984, %v2708
        %v3004 = vmul.f32 %v2984, %v2709
        %v3005 = vmul.f32 %v2984, %v2710
        %v3006 = vmul.f32 %v2984, %v2711
        %v3007 = vmul.f32 %v2984, %v2712
        %v3008 = vmul.f32 %v2984, %v2713
        %v3009 = vmul.f32 %v2984, %v2714
        %v3010 = vmul.f32 %v2984, %v2715
        %v3011 = vmul.f32 %v2984, %v2716
        %v3012 = vmul.f32 %v2984, %v2717
        %v3013 = vmul.f32 %v2984, %v2718
        %v3014 = vmul.f32 %v2984, %v2719
        %v3015 = vmul.f32 %v2984, %v2720
        %v3016 = vmul.f32 %v2984, %v2721
        %3049 = vrot.lane.b32.xlu0 %v2985, 126
        %v3050 = vpop.permute.xlu0 %3049
        %3051 = vrot.lane.b32.xlu0 %v2986, 126
        %v3052 = vpop.permute.xlu0 %3051
        %3053 = vrot.lane.b32.xlu0 %v2987, 126
        %v3054 = vpop.permute.xlu0 %3053
        %3055 = vrot.lane.b32.xlu0 %v2988, 126
        %v3056 = vpop.permute.xlu0 %3055
        %3057 = vrot.lane.b32.xlu0 %v2989, 126
        %v3058 = vpop.permute.xlu0 %3057
        %3059 = vrot.lane.b32.xlu0 %v2990, 126
        %v3060 = vpop.permute.xlu0 %3059
        %3061 = vrot.lane.b32.xlu0 %v2991, 126
        %v3062 = vpop.permute.xlu0 %3061
        %3063 = vrot.lane.b32.xlu0 %v2992, 126
        %v3064 = vpop.permute.xlu0 %3063
        %3065 = vrot.lane.b32.xlu0 %v2993, 126
        %v3066 = vpop.permute.xlu0 %3065
        %3067 = vrot.lane.b32.xlu0 %v2994, 126
        %v3068 = vpop.permute.xlu0 %3067
        %3069 = vrot.lane.b32.xlu0 %v2995, 126
        %v3070 = vpop.permute.xlu0 %3069
        %3071 = vrot.lane.b32.xlu0 %v2996, 126
        %v3072 = vpop.permute.xlu0 %3071
        %3073 = vrot.lane.b32.xlu0 %v2997, 126
        %v3074 = vpop.permute.xlu0 %3073
        %3075 = vrot.lane.b32.xlu0 %v2998, 126
        %v3076 = vpop.permute.xlu0 %3075
        %3077 = vrot.lane.b32.xlu0 %v2999, 126
        %v3078 = vpop.permute.xlu0 %3077
        %3079 = vrot.lane.b32.xlu0 %v3000, 126
        %v3080 = vpop.permute.xlu0 %3079
        %3081 = vrot.lane.b32.xlu0 %v3001, 126
        %v3082 = vpop.permute.xlu0 %3081
        %3083 = vrot.lane.b32.xlu0 %v3002, 126
        %v3084 = vpop.permute.xlu0 %3083
        %3085 = vrot.lane.b32.xlu0 %v3003, 126
        %v3086 = vpop.permute.xlu0 %3085
        %3087 = vrot.lane.b32.xlu0 %v3004, 126
        %v3088 = vpop.permute.xlu0 %3087
        %3089 = vrot.lane.b32.xlu0 %v3005, 126
        %v3090 = vpop.permute.xlu0 %3089
        %3091 = vrot.lane.b32.xlu0 %v3006, 126
        %v3092 = vpop.permute.xlu0 %3091
        %3093 = vrot.lane.b32.xlu0 %v3007, 126
        %v3094 = vpop.permute.xlu0 %3093
        %3095 = vrot.lane.b32.xlu0 %v3008, 126
        %v3096 = vpop.permute.xlu0 %3095
        %3097 = vrot.lane.b32.xlu0 %v3009, 126
        %v3098 = vpop.permute.xlu0 %3097
        %3099 = vrot.lane.b32.xlu0 %v3010, 126
        %v3100 = vpop.permute.xlu0 %3099
        %3101 = vrot.lane.b32.xlu0 %v3011, 126
        %v3102 = vpop.permute.xlu0 %3101
        %3103 = vrot.lane.b32.xlu0 %v3012, 126
        %v3104 = vpop.permute.xlu0 %3103
        %3105 = vrot.lane.b32.xlu0 %v3013, 126
        %v3106 = vpop.permute.xlu0 %3105
        %3107 = vrot.lane.b32.xlu0 %v3014, 126
        %v3108 = vpop.permute.xlu0 %3107
        %3109 = vrot.lane.b32.xlu0 %v3015, 126
        %v3110 = vpop.permute.xlu0 %3109
        %3111 = vrot.lane.b32.xlu0 %v3016, 126
        %v3112 = vpop.permute.xlu0 %3111
        %v3145 = vadd.f32 %v2950, %v3050
        %v3146 = vadd.f32 %v2951, %v3052
        %v3147 = vadd.f32 %v2952, %v3054
        %v3148 = vadd.f32 %v2953, %v3056
        %v3149 = vadd.f32 %v2954, %v3058
        %v3150 = vadd.f32 %v2955, %v3060
        %v3151 = vadd.f32 %v2956, %v3062
        %v3152 = vadd.f32 %v2957, %v3064
        %v3153 = vadd.f32 %v2958, %v3066
        %v3154 = vadd.f32 %v2959, %v3068
        %v3155 = vadd.f32 %v2960, %v3070
        %v3156 = vadd.f32 %v2961, %v3072
        %v3157 = vadd.f32 %v2962, %v3074
        %v3158 = vadd.f32 %v2963, %v3076
        %v3159 = vadd.f32 %v2964, %v3078
        %v3160 = vadd.f32 %v2965, %v3080
        %v3161 = vadd.f32 %v2966, %v3082
        %v3162 = vadd.f32 %v2967, %v3084
        %v3163 = vadd.f32 %v2968, %v3086
        %v3164 = vadd.f32 %v2969, %v3088
        %v3165 = vadd.f32 %v2970, %v3090
        %v3166 = vadd.f32 %v2971, %v3092
        %v3167 = vadd.f32 %v2972, %v3094
        %v3168 = vadd.f32 %v2973, %v3096
        %v3169 = vadd.f32 %v2974, %v3098
        %v3170 = vadd.f32 %v2975, %v3100
        %v3171 = vadd.f32 %v2976, %v3102
        %v3172 = vadd.f32 %v2977, %v3104
        %v3173 = vadd.f32 %v2978, %v3106
        %v3174 = vadd.f32 %v2979, %v3108
        %v3175 = vadd.f32 %v2980, %v3110
        %v3176 = vadd.f32 %v2981, %v3112
        %s3177 = sadd.s32 %s242, 18
        %s3178 = sld [smem:[#allocation2 + %s3177]]
        %s3179 = scalar_lea.vmem %s224, 48
        %v3180 = vld [vmem:[%s3179] sm:$0xff]
        %v3181 = vld [vmem:[%s3179 + $0x8] sm:$0xff]
        %v3182 = vld [vmem:[%s3179 + $0x18] sm:$0xff]
        %v3183 = vld [vmem:[%s3179 + $0x20] sm:$0xff]
        %v3184 = vld [vmem:[%s3179 + $0x30] sm:$0xff]
        %v3185 = vld [vmem:[%s3179 + $0x38] sm:$0xff]
        %v3186 = vld [vmem:[%s3179 + $0x48] sm:$0xff]
        %v3187 = vld [vmem:[%s3179 + $0x50] sm:$0xff]
        %v3188 = vld [vmem:[%s3179 + $0x60] sm:$0xff]
        %v3189 = vld [vmem:[%s3179 + $0x68] sm:$0xff]
        %v3190 = vld [vmem:[%s3179 + $0x78] sm:$0xff]
        %v3191 = vld [vmem:[%s3179 + $0x80] sm:$0xff]
        %v3192 = vld [vmem:[%s3179 + $0x90] sm:$0xff]
        %v3193 = vld [vmem:[%s3179 + $0x98] sm:$0xff]
        %v3194 = vld [vmem:[%s3179 + $0xa8] sm:$0xff]
        %v3195 = vld [vmem:[%s3179 + $0xb0] sm:$0xff]
        %v3196 = vld [vmem:[%s3179 + $0xc0] sm:$0xff]
        %v3197 = vld [vmem:[%s3179 + $0xc8] sm:$0xff]
        %v3198 = vld [vmem:[%s3179 + $0xd8] sm:$0xff]
        %v3199 = vld [vmem:[%s3179 + $0xe0] sm:$0xff]
        %v3200 = vld [vmem:[%s3179 + $0xf0] sm:$0xff]
        %v3201 = vld [vmem:[%s3179 + $0xf8] sm:$0xff]
        %v3202 = vld [vmem:[%s3179 + $0x108] sm:$0xff]
        %v3203 = vld [vmem:[%s3179 + $0x110] sm:$0xff]
        %v3204 = vld [vmem:[%s3179 + $0x120] sm:$0xff]
        %v3205 = vld [vmem:[%s3179 + $0x128] sm:$0xff]
        %v3206 = vld [vmem:[%s3179 + $0x138] sm:$0xff]
        %v3207 = vld [vmem:[%s3179 + $0x140] sm:$0xff]
        %v3208 = vld [vmem:[%s3179 + $0x150] sm:$0xff]
        %v3209 = vld [vmem:[%s3179 + $0x158] sm:$0xff]
        %v3210 = vld [vmem:[%s3179 + $0x168] sm:$0xff]
        %v3211 = vld [vmem:[%s3179 + $0x170] sm:$0xff]
        %v3212 = vstv %s3178
        %v3213 = vmul.f32 %v3212, %v3180
        %v3214 = vmul.f32 %v3212, %v3181
        %v3215 = vmul.f32 %v3212, %v3182
        %v3216 = vmul.f32 %v3212, %v3183
        %v3217 = vmul.f32 %v3212, %v3184
        %v3218 = vmul.f32 %v3212, %v3185
        %v3219 = vmul.f32 %v3212, %v3186
        %v3220 = vmul.f32 %v3212, %v3187
        %v3221 = vmul.f32 %v3212, %v3188
        %v3222 = vmul.f32 %v3212, %v3189
        %v3223 = vmul.f32 %v3212, %v3190
        %v3224 = vmul.f32 %v3212, %v3191
        %v3225 = vmul.f32 %v3212, %v3192
        %v3226 = vmul.f32 %v3212, %v3193
        %v3227 = vmul.f32 %v3212, %v3194
        %v3228 = vmul.f32 %v3212, %v3195
        %v3229 = vmul.f32 %v3212, %v3196
        %v3230 = vmul.f32 %v3212, %v3197
        %v3231 = vmul.f32 %v3212, %v3198
        %v3232 = vmul.f32 %v3212, %v3199
        %v3233 = vmul.f32 %v3212, %v3200
        %v3234 = vmul.f32 %v3212, %v3201
        %v3235 = vmul.f32 %v3212, %v3202
        %v3236 = vmul.f32 %v3212, %v3203
        %v3237 = vmul.f32 %v3212, %v3204
        %v3238 = vmul.f32 %v3212, %v3205
        %v3239 = vmul.f32 %v3212, %v3206
        %v3240 = vmul.f32 %v3212, %v3207
        %v3241 = vmul.f32 %v3212, %v3208
        %v3242 = vmul.f32 %v3212, %v3209
        %v3243 = vmul.f32 %v3212, %v3210
        %v3244 = vmul.f32 %v3212, %v3211
        %v3245 = vadd.f32 %v3145, %v3213
        %v3246 = vadd.f32 %v3146, %v3214
        %v3247 = vadd.f32 %v3147, %v3215
        %v3248 = vadd.f32 %v3148, %v3216
        %v3249 = vadd.f32 %v3149, %v3217
        %v3250 = vadd.f32 %v3150, %v3218
        %v3251 = vadd.f32 %v3151, %v3219
        %v3252 = vadd.f32 %v3152, %v3220
        %v3253 = vadd.f32 %v3153, %v3221
        %v3254 = vadd.f32 %v3154, %v3222
        %v3255 = vadd.f32 %v3155, %v3223
        %v3256 = vadd.f32 %v3156, %v3224
        %v3257 = vadd.f32 %v3157, %v3225
        %v3258 = vadd.f32 %v3158, %v3226
        %v3259 = vadd.f32 %v3159, %v3227
        %v3260 = vadd.f32 %v3160, %v3228
        %v3261 = vadd.f32 %v3161, %v3229
        %v3262 = vadd.f32 %v3162, %v3230
        %v3263 = vadd.f32 %v3163, %v3231
        %v3264 = vadd.f32 %v3164, %v3232
        %v3265 = vadd.f32 %v3165, %v3233
        %v3266 = vadd.f32 %v3166, %v3234
        %v3267 = vadd.f32 %v3167, %v3235
        %v3268 = vadd.f32 %v3168, %v3236
        %v3269 = vadd.f32 %v3169, %v3237
        %v3270 = vadd.f32 %v3170, %v3238
        %v3271 = vadd.f32 %v3171, %v3239
        %v3272 = vadd.f32 %v3172, %v3240
        %v3273 = vadd.f32 %v3173, %v3241
        %v3274 = vadd.f32 %v3174, %v3242
        %v3275 = vadd.f32 %v3175, %v3243
        %v3276 = vadd.f32 %v3176, %v3244
        %s3277 = sadd.s32 %s242, 19
        %s3278 = sld [smem:[#allocation2 + %s3277]]
        %v3279 = vstv %s3278
        %v3280 = vmul.f32 %v3279, %v3180
        %v3281 = vmul.f32 %v3279, %v3181
        %v3282 = vmul.f32 %v3279, %v3182
        %v3283 = vmul.f32 %v3279, %v3183
        %v3284 = vmul.f32 %v3279, %v3184
        %v3285 = vmul.f32 %v3279, %v3185
        %v3286 = vmul.f32 %v3279, %v3186
        %v3287 = vmul.f32 %v3279, %v3187
        %v3288 = vmul.f32 %v3279, %v3188
        %v3289 = vmul.f32 %v3279, %v3189
        %v3290 = vmul.f32 %v3279, %v3190
        %v3291 = vmul.f32 %v3279, %v3191
        %v3292 = vmul.f32 %v3279, %v3192
        %v3293 = vmul.f32 %v3279, %v3193
        %v3294 = vmul.f32 %v3279, %v3194
        %v3295 = vmul.f32 %v3279, %v3195
        %v3296 = vmul.f32 %v3279, %v3196
        %v3297 = vmul.f32 %v3279, %v3197
        %v3298 = vmul.f32 %v3279, %v3198
        %v3299 = vmul.f32 %v3279, %v3199
        %v3300 = vmul.f32 %v3279, %v3200
        %v3301 = vmul.f32 %v3279, %v3201
        %v3302 = vmul.f32 %v3279, %v3202
        %v3303 = vmul.f32 %v3279, %v3203
        %v3304 = vmul.f32 %v3279, %v3204
        %v3305 = vmul.f32 %v3279, %v3205
        %v3306 = vmul.f32 %v3279, %v3206
        %v3307 = vmul.f32 %v3279, %v3207
        %v3308 = vmul.f32 %v3279, %v3208
        %v3309 = vmul.f32 %v3279, %v3209
        %v3310 = vmul.f32 %v3279, %v3210
        %v3311 = vmul.f32 %v3279, %v3211
        %3344 = vrot.lane.b32.xlu0 %v3280, 127
        %v3345 = vpop.permute.xlu0 %3344
        %3346 = vrot.lane.b32.xlu0 %v3281, 127
        %v3347 = vpop.permute.xlu0 %3346
        %3348 = vrot.lane.b32.xlu0 %v3282, 127
        %v3349 = vpop.permute.xlu0 %3348
        %3350 = vrot.lane.b32.xlu0 %v3283, 127
        %v3351 = vpop.permute.xlu0 %3350
        %3352 = vrot.lane.b32.xlu0 %v3284, 127
        %v3353 = vpop.permute.xlu0 %3352
        %3354 = vrot.lane.b32.xlu0 %v3285, 127
        %v3355 = vpop.permute.xlu0 %3354
        %3356 = vrot.lane.b32.xlu0 %v3286, 127
        %v3357 = vpop.permute.xlu0 %3356
        %3358 = vrot.lane.b32.xlu0 %v3287, 127
        %v3359 = vpop.permute.xlu0 %3358
        %3360 = vrot.lane.b32.xlu0 %v3288, 127
        %v3361 = vpop.permute.xlu0 %3360
        %3362 = vrot.lane.b32.xlu0 %v3289, 127
        %v3363 = vpop.permute.xlu0 %3362
        %3364 = vrot.lane.b32.xlu0 %v3290, 127
        %v3365 = vpop.permute.xlu0 %3364
        %3366 = vrot.lane.b32.xlu0 %v3291, 127
        %v3367 = vpop.permute.xlu0 %3366
        %3368 = vrot.lane.b32.xlu0 %v3292, 127
        %v3369 = vpop.permute.xlu0 %3368
        %3370 = vrot.lane.b32.xlu0 %v3293, 127
        %v3371 = vpop.permute.xlu0 %3370
        %3372 = vrot.lane.b32.xlu0 %v3294, 127
        %v3373 = vpop.permute.xlu0 %3372
        %3374 = vrot.lane.b32.xlu0 %v3295, 127
        %v3375 = vpop.permute.xlu0 %3374
        %3376 = vrot.lane.b32.xlu0 %v3296, 127
        %v3377 = vpop.permute.xlu0 %3376
        %3378 = vrot.lane.b32.xlu0 %v3297, 127
        %v3379 = vpop.permute.xlu0 %3378
        %3380 = vrot.lane.b32.xlu0 %v3298, 127
        %v3381 = vpop.permute.xlu0 %3380
        %3382 = vrot.lane.b32.xlu0 %v3299, 127
        %v3383 = vpop.permute.xlu0 %3382
        %3384 = vrot.lane.b32.xlu0 %v3300, 127
        %v3385 = vpop.permute.xlu0 %3384
        %3386 = vrot.lane.b32.xlu0 %v3301, 127
        %v3387 = vpop.permute.xlu0 %3386
        %3388 = vrot.lane.b32.xlu0 %v3302, 127
        %v3389 = vpop.permute.xlu0 %3388
        %3390 = vrot.lane.b32.xlu0 %v3303, 127
        %v3391 = vpop.permute.xlu0 %3390
        %3392 = vrot.lane.b32.xlu0 %v3304, 127
        %v3393 = vpop.permute.xlu0 %3392
        %3394 = vrot.lane.b32.xlu0 %v3305, 127
        %v3395 = vpop.permute.xlu0 %3394
        %3396 = vrot.lane.b32.xlu0 %v3306, 127
        %v3397 = vpop.permute.xlu0 %3396
        %3398 = vrot.lane.b32.xlu0 %v3307, 127
        %v3399 = vpop.permute.xlu0 %3398
        %3400 = vrot.lane.b32.xlu0 %v3308, 127
        %v3401 = vpop.permute.xlu0 %3400
        %3402 = vrot.lane.b32.xlu0 %v3309, 127
        %v3403 = vpop.permute.xlu0 %3402
        %3404 = vrot.lane.b32.xlu0 %v3310, 127
        %v3405 = vpop.permute.xlu0 %3404
        %3406 = vrot.lane.b32.xlu0 %v3311, 127
        %v3407 = vpop.permute.xlu0 %3406
        %v3440 = vadd.f32 %v3245, %v3345
        %v3441 = vadd.f32 %v3246, %v3347
        %v3442 = vadd.f32 %v3247, %v3349
        %v3443 = vadd.f32 %v3248, %v3351
        %v3444 = vadd.f32 %v3249, %v3353
        %v3445 = vadd.f32 %v3250, %v3355
        %v3446 = vadd.f32 %v3251, %v3357
        %v3447 = vadd.f32 %v3252, %v3359
        %v3448 = vadd.f32 %v3253, %v3361
        %v3449 = vadd.f32 %v3254, %v3363
        %v3450 = vadd.f32 %v3255, %v3365
        %v3451 = vadd.f32 %v3256, %v3367
        %v3452 = vadd.f32 %v3257, %v3369
        %v3453 = vadd.f32 %v3258, %v3371
        %v3454 = vadd.f32 %v3259, %v3373
        %v3455 = vadd.f32 %v3260, %v3375
        %v3456 = vadd.f32 %v3261, %v3377
        %v3457 = vadd.f32 %v3262, %v3379
        %v3458 = vadd.f32 %v3263, %v3381
        %v3459 = vadd.f32 %v3264, %v3383
        %v3460 = vadd.f32 %v3265, %v3385
        %v3461 = vadd.f32 %v3266, %v3387
        %v3462 = vadd.f32 %v3267, %v3389
        %v3463 = vadd.f32 %v3268, %v3391
        %v3464 = vadd.f32 %v3269, %v3393
        %v3465 = vadd.f32 %v3270, %v3395
        %v3466 = vadd.f32 %v3271, %v3397
        %v3467 = vadd.f32 %v3272, %v3399
        %v3468 = vadd.f32 %v3273, %v3401
        %v3469 = vadd.f32 %v3274, %v3403
        %v3470 = vadd.f32 %v3275, %v3405
        %v3471 = vadd.f32 %v3276, %v3407
        %s3472 = sadd.s32 %s242, 20
        %s3473 = sld [smem:[#allocation2 + %s3472]]
        %v3474 = vstv %s3473
        %v3475 = vmul.f32 %v3474, %v3180
        %v3476 = vmul.f32 %v3474, %v3181
        %v3477 = vmul.f32 %v3474, %v3182
        %v3478 = vmul.f32 %v3474, %v3183
        %v3479 = vmul.f32 %v3474, %v3184
        %v3480 = vmul.f32 %v3474, %v3185
        %v3481 = vmul.f32 %v3474, %v3186
        %v3482 = vmul.f32 %v3474, %v3187
        %v3483 = vmul.f32 %v3474, %v3188
        %v3484 = vmul.f32 %v3474, %v3189
        %v3485 = vmul.f32 %v3474, %v3190
        %v3486 = vmul.f32 %v3474, %v3191
        %v3487 = vmul.f32 %v3474, %v3192
        %v3488 = vmul.f32 %v3474, %v3193
        %v3489 = vmul.f32 %v3474, %v3194
        %v3490 = vmul.f32 %v3474, %v3195
        %v3491 = vmul.f32 %v3474, %v3196
        %v3492 = vmul.f32 %v3474, %v3197
        %v3493 = vmul.f32 %v3474, %v3198
        %v3494 = vmul.f32 %v3474, %v3199
        %v3495 = vmul.f32 %v3474, %v3200
        %v3496 = vmul.f32 %v3474, %v3201
        %v3497 = vmul.f32 %v3474, %v3202
        %v3498 = vmul.f32 %v3474, %v3203
        %v3499 = vmul.f32 %v3474, %v3204
        %v3500 = vmul.f32 %v3474, %v3205
        %v3501 = vmul.f32 %v3474, %v3206
        %v3502 = vmul.f32 %v3474, %v3207
        %v3503 = vmul.f32 %v3474, %v3208
        %v3504 = vmul.f32 %v3474, %v3209
        %v3505 = vmul.f32 %v3474, %v3210
        %v3506 = vmul.f32 %v3474, %v3211
        %3539 = vrot.lane.b32.xlu0 %v3475, 126
        %v3540 = vpop.permute.xlu0 %3539
        %3541 = vrot.lane.b32.xlu0 %v3476, 126
        %v3542 = vpop.permute.xlu0 %3541
        %3543 = vrot.lane.b32.xlu0 %v3477, 126
        %v3544 = vpop.permute.xlu0 %3543
        %3545 = vrot.lane.b32.xlu0 %v3478, 126
        %v3546 = vpop.permute.xlu0 %3545
        %3547 = vrot.lane.b32.xlu0 %v3479, 126
        %v3548 = vpop.permute.xlu0 %3547
        %3549 = vrot.lane.b32.xlu0 %v3480, 126
        %v3550 = vpop.permute.xlu0 %3549
        %3551 = vrot.lane.b32.xlu0 %v3481, 126
        %v3552 = vpop.permute.xlu0 %3551
        %3553 = vrot.lane.b32.xlu0 %v3482, 126
        %v3554 = vpop.permute.xlu0 %3553
        %3555 = vrot.lane.b32.xlu0 %v3483, 126
        %v3556 = vpop.permute.xlu0 %3555
        %3557 = vrot.lane.b32.xlu0 %v3484, 126
        %v3558 = vpop.permute.xlu0 %3557
        %3559 = vrot.lane.b32.xlu0 %v3485, 126
        %v3560 = vpop.permute.xlu0 %3559
        %3561 = vrot.lane.b32.xlu0 %v3486, 126
        %v3562 = vpop.permute.xlu0 %3561
        %3563 = vrot.lane.b32.xlu0 %v3487, 126
        %v3564 = vpop.permute.xlu0 %3563
        %3565 = vrot.lane.b32.xlu0 %v3488, 126
        %v3566 = vpop.permute.xlu0 %3565
        %3567 = vrot.lane.b32.xlu0 %v3489, 126
        %v3568 = vpop.permute.xlu0 %3567
        %3569 = vrot.lane.b32.xlu0 %v3490, 126
        %v3570 = vpop.permute.xlu0 %3569
        %3571 = vrot.lane.b32.xlu0 %v3491, 126
        %v3572 = vpop.permute.xlu0 %3571
        %3573 = vrot.lane.b32.xlu0 %v3492, 126
        %v3574 = vpop.permute.xlu0 %3573
        %3575 = vrot.lane.b32.xlu0 %v3493, 126
        %v3576 = vpop.permute.xlu0 %3575
        %3577 = vrot.lane.b32.xlu0 %v3494, 126
        %v3578 = vpop.permute.xlu0 %3577
        %3579 = vrot.lane.b32.xlu0 %v3495, 126
        %v3580 = vpop.permute.xlu0 %3579
        %3581 = vrot.lane.b32.xlu0 %v3496, 126
        %v3582 = vpop.permute.xlu0 %3581
        %3583 = vrot.lane.b32.xlu0 %v3497, 126
        %v3584 = vpop.permute.xlu0 %3583
        %3585 = vrot.lane.b32.xlu0 %v3498, 126
        %v3586 = vpop.permute.xlu0 %3585
        %3587 = vrot.lane.b32.xlu0 %v3499, 126
        %v3588 = vpop.permute.xlu0 %3587
        %3589 = vrot.lane.b32.xlu0 %v3500, 126
        %v3590 = vpop.permute.xlu0 %3589
        %3591 = vrot.lane.b32.xlu0 %v3501, 126
        %v3592 = vpop.permute.xlu0 %3591
        %3593 = vrot.lane.b32.xlu0 %v3502, 126
        %v3594 = vpop.permute.xlu0 %3593
        %3595 = vrot.lane.b32.xlu0 %v3503, 126
        %v3596 = vpop.permute.xlu0 %3595
        %3597 = vrot.lane.b32.xlu0 %v3504, 126
        %v3598 = vpop.permute.xlu0 %3597
        %3599 = vrot.lane.b32.xlu0 %v3505, 126
        %v3600 = vpop.permute.xlu0 %3599
        %3601 = vrot.lane.b32.xlu0 %v3506, 126
        %v3602 = vpop.permute.xlu0 %3601
        %v3635 = vadd.f32 %v3440, %v3540
        %v3636 = vadd.f32 %v3441, %v3542
        %v3637 = vadd.f32 %v3442, %v3544
        %v3638 = vadd.f32 %v3443, %v3546
        %v3639 = vadd.f32 %v3444, %v3548
        %v3640 = vadd.f32 %v3445, %v3550
        %v3641 = vadd.f32 %v3446, %v3552
        %v3642 = vadd.f32 %v3447, %v3554
        %v3643 = vadd.f32 %v3448, %v3556
        %v3644 = vadd.f32 %v3449, %v3558
        %v3645 = vadd.f32 %v3450, %v3560
        %v3646 = vadd.f32 %v3451, %v3562
        %v3647 = vadd.f32 %v3452, %v3564
        %v3648 = vadd.f32 %v3453, %v3566
        %v3649 = vadd.f32 %v3454, %v3568
        %v3650 = vadd.f32 %v3455, %v3570
        %v3651 = vadd.f32 %v3456, %v3572
        %v3652 = vadd.f32 %v3457, %v3574
        %v3653 = vadd.f32 %v3458, %v3576
        %v3654 = vadd.f32 %v3459, %v3578
        %v3655 = vadd.f32 %v3460, %v3580
        %v3656 = vadd.f32 %v3461, %v3582
        %v3657 = vadd.f32 %v3462, %v3584
        %v3658 = vadd.f32 %v3463, %v3586
        %v3659 = vadd.f32 %v3464, %v3588
        %v3660 = vadd.f32 %v3465, %v3590
        %v3661 = vadd.f32 %v3466, %v3592
        %v3662 = vadd.f32 %v3467, %v3594
        %v3663 = vadd.f32 %v3468, %v3596
        %v3664 = vadd.f32 %v3469, %v3598
        %v3665 = vadd.f32 %v3470, %v3600
        %v3666 = vadd.f32 %v3471, %v3602
        %s3667 = sadd.s32 %s242, 21
        %s3668 = sld [smem:[#allocation2 + %s3667]]
        %v3669 = vld [vmem:[%s3179 + $0x1] sm:$0xff]
        %v3670 = vld [vmem:[%s3179 + $0x9] sm:$0xff]
        %v3671 = vld [vmem:[%s3179 + $0x19] sm:$0xff]
        %v3672 = vld [vmem:[%s3179 + $0x21] sm:$0xff]
        %v3673 = vld [vmem:[%s3179 + $0x31] sm:$0xff]
        %v3674 = vld [vmem:[%s3179 + $0x39] sm:$0xff]
        %v3675 = vld [vmem:[%s3179 + $0x49] sm:$0xff]
        %v3676 = vld [vmem:[%s3179 + $0x51] sm:$0xff]
        %v3677 = vld [vmem:[%s3179 + $0x61] sm:$0xff]
        %v3678 = vld [vmem:[%s3179 + $0x69] sm:$0xff]
        %v3679 = vld [vmem:[%s3179 + $0x79] sm:$0xff]
        %v3680 = vld [vmem:[%s3179 + $0x81] sm:$0xff]
        %v3681 = vld [vmem:[%s3179 + $0x91] sm:$0xff]
        %v3682 = vld [vmem:[%s3179 + $0x99] sm:$0xff]
        %v3683 = vld [vmem:[%s3179 + $0xa9] sm:$0xff]
        %v3684 = vld [vmem:[%s3179 + $0xb1] sm:$0xff]
        %v3685 = vld [vmem:[%s3179 + $0xc1] sm:$0xff]
        %v3686 = vld [vmem:[%s3179 + $0xc9] sm:$0xff]
        %v3687 = vld [vmem:[%s3179 + $0xd9] sm:$0xff]
        %v3688 = vld [vmem:[%s3179 + $0xe1] sm:$0xff]
        %v3689 = vld [vmem:[%s3179 + $0xf1] sm:$0xff]
        %v3690 = vld [vmem:[%s3179 + $0xf9] sm:$0xff]
        %v3691 = vld [vmem:[%s3179 + $0x109] sm:$0xff]
        %v3692 = vld [vmem:[%s3179 + $0x111] sm:$0xff]
        %v3693 = vld [vmem:[%s3179 + $0x121] sm:$0xff]
        %v3694 = vld [vmem:[%s3179 + $0x129] sm:$0xff]
        %v3695 = vld [vmem:[%s3179 + $0x139] sm:$0xff]
        %v3696 = vld [vmem:[%s3179 + $0x141] sm:$0xff]
        %v3697 = vld [vmem:[%s3179 + $0x151] sm:$0xff]
        %v3698 = vld [vmem:[%s3179 + $0x159] sm:$0xff]
        %v3699 = vld [vmem:[%s3179 + $0x169] sm:$0xff]
        %v3700 = vld [vmem:[%s3179 + $0x171] sm:$0xff]
        %v3701 = vstv %s3668
        %v3702 = vmul.f32 %v3701, %v3669
        %v3703 = vmul.f32 %v3701, %v3670
        %v3704 = vmul.f32 %v3701, %v3671
        %v3705 = vmul.f32 %v3701, %v3672
        %v3706 = vmul.f32 %v3701, %v3673
        %v3707 = vmul.f32 %v3701, %v3674
        %v3708 = vmul.f32 %v3701, %v3675
        %v3709 = vmul.f32 %v3701, %v3676
        %v3710 = vmul.f32 %v3701, %v3677
        %v3711 = vmul.f32 %v3701, %v3678
        %v3712 = vmul.f32 %v3701, %v3679
        %v3713 = vmul.f32 %v3701, %v3680
        %v3714 = vmul.f32 %v3701, %v3681
        %v3715 = vmul.f32 %v3701, %v3682
        %v3716 = vmul.f32 %v3701, %v3683
        %v3717 = vmul.f32 %v3701, %v3684
        %v3718 = vmul.f32 %v3701, %v3685
        %v3719 = vmul.f32 %v3701, %v3686
        %v3720 = vmul.f32 %v3701, %v3687
        %v3721 = vmul.f32 %v3701, %v3688
        %v3722 = vmul.f32 %v3701, %v3689
        %v3723 = vmul.f32 %v3701, %v3690
        %v3724 = vmul.f32 %v3701, %v3691
        %v3725 = vmul.f32 %v3701, %v3692
        %v3726 = vmul.f32 %v3701, %v3693
        %v3727 = vmul.f32 %v3701, %v3694
        %v3728 = vmul.f32 %v3701, %v3695
        %v3729 = vmul.f32 %v3701, %v3696
        %v3730 = vmul.f32 %v3701, %v3697
        %v3731 = vmul.f32 %v3701, %v3698
        %v3732 = vmul.f32 %v3701, %v3699
        %v3733 = vmul.f32 %v3701, %v3700
        %v3734 = vadd.f32 %v3635, %v3702
        %v3735 = vadd.f32 %v3636, %v3703
        %v3736 = vadd.f32 %v3637, %v3704
        %v3737 = vadd.f32 %v3638, %v3705
        %v3738 = vadd.f32 %v3639, %v3706
        %v3739 = vadd.f32 %v3640, %v3707
        %v3740 = vadd.f32 %v3641, %v3708
        %v3741 = vadd.f32 %v3642, %v3709
        %v3742 = vadd.f32 %v3643, %v3710
        %v3743 = vadd.f32 %v3644, %v3711
        %v3744 = vadd.f32 %v3645, %v3712
        %v3745 = vadd.f32 %v3646, %v3713
        %v3746 = vadd.f32 %v3647, %v3714
        %v3747 = vadd.f32 %v3648, %v3715
        %v3748 = vadd.f32 %v3649, %v3716
        %v3749 = vadd.f32 %v3650, %v3717
        %v3750 = vadd.f32 %v3651, %v3718
        %v3751 = vadd.f32 %v3652, %v3719
        %v3752 = vadd.f32 %v3653, %v3720
        %v3753 = vadd.f32 %v3654, %v3721
        %v3754 = vadd.f32 %v3655, %v3722
        %v3755 = vadd.f32 %v3656, %v3723
        %v3756 = vadd.f32 %v3657, %v3724
        %v3757 = vadd.f32 %v3658, %v3725
        %v3758 = vadd.f32 %v3659, %v3726
        %v3759 = vadd.f32 %v3660, %v3727
        %v3760 = vadd.f32 %v3661, %v3728
        %v3761 = vadd.f32 %v3662, %v3729
        %v3762 = vadd.f32 %v3663, %v3730
        %v3763 = vadd.f32 %v3664, %v3731
        %v3764 = vadd.f32 %v3665, %v3732
        %v3765 = vadd.f32 %v3666, %v3733
        %s3766 = sadd.s32 %s242, 22
        %s3767 = sld [smem:[#allocation2 + %s3766]]
        %v3768 = vstv %s3767
        %v3769 = vmul.f32 %v3768, %v3669
        %v3770 = vmul.f32 %v3768, %v3670
        %v3771 = vmul.f32 %v3768, %v3671
        %v3772 = vmul.f32 %v3768, %v3672
        %v3773 = vmul.f32 %v3768, %v3673
        %v3774 = vmul.f32 %v3768, %v3674
        %v3775 = vmul.f32 %v3768, %v3675
        %v3776 = vmul.f32 %v3768, %v3676
        %v3777 = vmul.f32 %v3768, %v3677
        %v3778 = vmul.f32 %v3768, %v3678
        %v3779 = vmul.f32 %v3768, %v3679
        %v3780 = vmul.f32 %v3768, %v3680
        %v3781 = vmul.f32 %v3768, %v3681
        %v3782 = vmul.f32 %v3768, %v3682
        %v3783 = vmul.f32 %v3768, %v3683
        %v3784 = vmul.f32 %v3768, %v3684
        %v3785 = vmul.f32 %v3768, %v3685
        %v3786 = vmul.f32 %v3768, %v3686
        %v3787 = vmul.f32 %v3768, %v3687
        %v3788 = vmul.f32 %v3768, %v3688
        %v3789 = vmul.f32 %v3768, %v3689
        %v3790 = vmul.f32 %v3768, %v3690
        %v3791 = vmul.f32 %v3768, %v3691
        %v3792 = vmul.f32 %v3768, %v3692
        %v3793 = vmul.f32 %v3768, %v3693
        %v3794 = vmul.f32 %v3768, %v3694
        %v3795 = vmul.f32 %v3768, %v3695
        %v3796 = vmul.f32 %v3768, %v3696
        %v3797 = vmul.f32 %v3768, %v3697
        %v3798 = vmul.f32 %v3768, %v3698
        %v3799 = vmul.f32 %v3768, %v3699
        %v3800 = vmul.f32 %v3768, %v3700
        %3833 = vrot.lane.b32.xlu0 %v3769, 127
        %v3834 = vpop.permute.xlu0 %3833
        %3835 = vrot.lane.b32.xlu0 %v3770, 127
        %v3836 = vpop.permute.xlu0 %3835
        %3837 = vrot.lane.b32.xlu0 %v3771, 127
        %v3838 = vpop.permute.xlu0 %3837
        %3839 = vrot.lane.b32.xlu0 %v3772, 127
        %v3840 = vpop.permute.xlu0 %3839
        %3841 = vrot.lane.b32.xlu0 %v3773, 127
        %v3842 = vpop.permute.xlu0 %3841
        %3843 = vrot.lane.b32.xlu0 %v3774, 127
        %v3844 = vpop.permute.xlu0 %3843
        %3845 = vrot.lane.b32.xlu0 %v3775, 127
        %v3846 = vpop.permute.xlu0 %3845
        %3847 = vrot.lane.b32.xlu0 %v3776, 127
        %v3848 = vpop.permute.xlu0 %3847
        %3849 = vrot.lane.b32.xlu0 %v3777, 127
        %v3850 = vpop.permute.xlu0 %3849
        %3851 = vrot.lane.b32.xlu0 %v3778, 127
        %v3852 = vpop.permute.xlu0 %3851
        %3853 = vrot.lane.b32.xlu0 %v3779, 127
        %v3854 = vpop.permute.xlu0 %3853
        %3855 = vrot.lane.b32.xlu0 %v3780, 127
        %v3856 = vpop.permute.xlu0 %3855
        %3857 = vrot.lane.b32.xlu0 %v3781, 127
        %v3858 = vpop.permute.xlu0 %3857
        %3859 = vrot.lane.b32.xlu0 %v3782, 127
        %v3860 = vpop.permute.xlu0 %3859
        %3861 = vrot.lane.b32.xlu0 %v3783, 127
        %v3862 = vpop.permute.xlu0 %3861
        %3863 = vrot.lane.b32.xlu0 %v3784, 127
        %v3864 = vpop.permute.xlu0 %3863
        %3865 = vrot.lane.b32.xlu0 %v3785, 127
        %v3866 = vpop.permute.xlu0 %3865
        %3867 = vrot.lane.b32.xlu0 %v3786, 127
        %v3868 = vpop.permute.xlu0 %3867
        %3869 = vrot.lane.b32.xlu0 %v3787, 127
        %v3870 = vpop.permute.xlu0 %3869
        %3871 = vrot.lane.b32.xlu0 %v3788, 127
        %v3872 = vpop.permute.xlu0 %3871
        %3873 = vrot.lane.b32.xlu0 %v3789, 127
        %v3874 = vpop.permute.xlu0 %3873
        %3875 = vrot.lane.b32.xlu0 %v3790, 127
        %v3876 = vpop.permute.xlu0 %3875
        %3877 = vrot.lane.b32.xlu0 %v3791, 127
        %v3878 = vpop.permute.xlu0 %3877
        %3879 = vrot.lane.b32.xlu0 %v3792, 127
        %v3880 = vpop.permute.xlu0 %3879
        %3881 = vrot.lane.b32.xlu0 %v3793, 127
        %v3882 = vpop.permute.xlu0 %3881
        %3883 = vrot.lane.b32.xlu0 %v3794, 127
        %v3884 = vpop.permute.xlu0 %3883
        %3885 = vrot.lane.b32.xlu0 %v3795, 127
        %v3886 = vpop.permute.xlu0 %3885
        %3887 = vrot.lane.b32.xlu0 %v3796, 127
        %v3888 = vpop.permute.xlu0 %3887
        %3889 = vrot.lane.b32.xlu0 %v3797, 127
        %v3890 = vpop.permute.xlu0 %3889
        %3891 = vrot.lane.b32.xlu0 %v3798, 127
        %v3892 = vpop.permute.xlu0 %3891
        %3893 = vrot.lane.b32.xlu0 %v3799, 127
        %v3894 = vpop.permute.xlu0 %3893
        %3895 = vrot.lane.b32.xlu0 %v3800, 127
        %v3896 = vpop.permute.xlu0 %3895
        %v3929 = vadd.f32 %v3734, %v3834
        %v3930 = vadd.f32 %v3735, %v3836
        %v3931 = vadd.f32 %v3736, %v3838
        %v3932 = vadd.f32 %v3737, %v3840
        %v3933 = vadd.f32 %v3738, %v3842
        %v3934 = vadd.f32 %v3739, %v3844
        %v3935 = vadd.f32 %v3740, %v3846
        %v3936 = vadd.f32 %v3741, %v3848
        %v3937 = vadd.f32 %v3742, %v3850
        %v3938 = vadd.f32 %v3743, %v3852
        %v3939 = vadd.f32 %v3744, %v3854
        %v3940 = vadd.f32 %v3745, %v3856
        %v3941 = vadd.f32 %v3746, %v3858
        %v3942 = vadd.f32 %v3747, %v3860
        %v3943 = vadd.f32 %v3748, %v3862
        %v3944 = vadd.f32 %v3749, %v3864
        %v3945 = vadd.f32 %v3750, %v3866
        %v3946 = vadd.f32 %v3751, %v3868
        %v3947 = vadd.f32 %v3752, %v3870
        %v3948 = vadd.f32 %v3753, %v3872
        %v3949 = vadd.f32 %v3754, %v3874
        %v3950 = vadd.f32 %v3755, %v3876
        %v3951 = vadd.f32 %v3756, %v3878
        %v3952 = vadd.f32 %v3757, %v3880
        %v3953 = vadd.f32 %v3758, %v3882
        %v3954 = vadd.f32 %v3759, %v3884
        %v3955 = vadd.f32 %v3760, %v3886
        %v3956 = vadd.f32 %v3761, %v3888
        %v3957 = vadd.f32 %v3762, %v3890
        %v3958 = vadd.f32 %v3763, %v3892
        %v3959 = vadd.f32 %v3764, %v3894
        %v3960 = vadd.f32 %v3765, %v3896
        %s3961 = sadd.s32 %s242, 23
        %s3962 = sld [smem:[#allocation2 + %s3961]]
        %v3963 = vstv %s3962
        %v3964 = vmul.f32 %v3963, %v3669
        %v3965 = vmul.f32 %v3963, %v3670
        %v3966 = vmul.f32 %v3963, %v3671
        %v3967 = vmul.f32 %v3963, %v3672
        %v3968 = vmul.f32 %v3963, %v3673
        %v3969 = vmul.f32 %v3963, %v3674
        %v3970 = vmul.f32 %v3963, %v3675
        %v3971 = vmul.f32 %v3963, %v3676
        %v3972 = vmul.f32 %v3963, %v3677
        %v3973 = vmul.f32 %v3963, %v3678
        %v3974 = vmul.f32 %v3963, %v3679
        %v3975 = vmul.f32 %v3963, %v3680
        %v3976 = vmul.f32 %v3963, %v3681
        %v3977 = vmul.f32 %v3963, %v3682
        %v3978 = vmul.f32 %v3963, %v3683
        %v3979 = vmul.f32 %v3963, %v3684
        %v3980 = vmul.f32 %v3963, %v3685
        %v3981 = vmul.f32 %v3963, %v3686
        %v3982 = vmul.f32 %v3963, %v3687
        %v3983 = vmul.f32 %v3963, %v3688
        %v3984 = vmul.f32 %v3963, %v3689
        %v3985 = vmul.f32 %v3963, %v3690
        %v3986 = vmul.f32 %v3963, %v3691
        %v3987 = vmul.f32 %v3963, %v3692
        %v3988 = vmul.f32 %v3963, %v3693
        %v3989 = vmul.f32 %v3963, %v3694
        %v3990 = vmul.f32 %v3963, %v3695
        %v3991 = vmul.f32 %v3963, %v3696
        %v3992 = vmul.f32 %v3963, %v3697
        %v3993 = vmul.f32 %v3963, %v3698
        %v3994 = vmul.f32 %v3963, %v3699
        %v3995 = vmul.f32 %v3963, %v3700
        %4028 = vrot.lane.b32.xlu0 %v3964, 126
        %v4029 = vpop.permute.xlu0 %4028
        %4030 = vrot.lane.b32.xlu0 %v3965, 126
        %v4031 = vpop.permute.xlu0 %4030
        %4032 = vrot.lane.b32.xlu0 %v3966, 126
        %v4033 = vpop.permute.xlu0 %4032
        %4034 = vrot.lane.b32.xlu0 %v3967, 126
        %v4035 = vpop.permute.xlu0 %4034
        %4036 = vrot.lane.b32.xlu0 %v3968, 126
        %v4037 = vpop.permute.xlu0 %4036
        %4038 = vrot.lane.b32.xlu0 %v3969, 126
        %v4039 = vpop.permute.xlu0 %4038
        %4040 = vrot.lane.b32.xlu0 %v3970, 126
        %v4041 = vpop.permute.xlu0 %4040
        %4042 = vrot.lane.b32.xlu0 %v3971, 126
        %v4043 = vpop.permute.xlu0 %4042
        %4044 = vrot.lane.b32.xlu0 %v3972, 126
        %v4045 = vpop.permute.xlu0 %4044
        %4046 = vrot.lane.b32.xlu0 %v3973, 126
        %v4047 = vpop.permute.xlu0 %4046
        %4048 = vrot.lane.b32.xlu0 %v3974, 126
        %v4049 = vpop.permute.xlu0 %4048
        %4050 = vrot.lane.b32.xlu0 %v3975, 126
        %v4051 = vpop.permute.xlu0 %4050
        %4052 = vrot.lane.b32.xlu0 %v3976, 126
        %v4053 = vpop.permute.xlu0 %4052
        %4054 = vrot.lane.b32.xlu0 %v3977, 126
        %v4055 = vpop.permute.xlu0 %4054
        %4056 = vrot.lane.b32.xlu0 %v3978, 126
        %v4057 = vpop.permute.xlu0 %4056
        %4058 = vrot.lane.b32.xlu0 %v3979, 126
        %v4059 = vpop.permute.xlu0 %4058
        %4060 = vrot.lane.b32.xlu0 %v3980, 126
        %v4061 = vpop.permute.xlu0 %4060
        %4062 = vrot.lane.b32.xlu0 %v3981, 126
        %v4063 = vpop.permute.xlu0 %4062
        %4064 = vrot.lane.b32.xlu0 %v3982, 126
        %v4065 = vpop.permute.xlu0 %4064
        %4066 = vrot.lane.b32.xlu0 %v3983, 126
        %v4067 = vpop.permute.xlu0 %4066
        %4068 = vrot.lane.b32.xlu0 %v3984, 126
        %v4069 = vpop.permute.xlu0 %4068
        %4070 = vrot.lane.b32.xlu0 %v3985, 126
        %v4071 = vpop.permute.xlu0 %4070
        %4072 = vrot.lane.b32.xlu0 %v3986, 126
        %v4073 = vpop.permute.xlu0 %4072
        %4074 = vrot.lane.b32.xlu0 %v3987, 126
        %v4075 = vpop.permute.xlu0 %4074
        %4076 = vrot.lane.b32.xlu0 %v3988, 126
        %v4077 = vpop.permute.xlu0 %4076
        %4078 = vrot.lane.b32.xlu0 %v3989, 126
        %v4079 = vpop.permute.xlu0 %4078
        %4080 = vrot.lane.b32.xlu0 %v3990, 126
        %v4081 = vpop.permute.xlu0 %4080
        %4082 = vrot.lane.b32.xlu0 %v3991, 126
        %v4083 = vpop.permute.xlu0 %4082
        %4084 = vrot.lane.b32.xlu0 %v3992, 126
        %v4085 = vpop.permute.xlu0 %4084
        %4086 = vrot.lane.b32.xlu0 %v3993, 126
        %v4087 = vpop.permute.xlu0 %4086
        %4088 = vrot.lane.b32.xlu0 %v3994, 126
        %v4089 = vpop.permute.xlu0 %4088
        %4090 = vrot.lane.b32.xlu0 %v3995, 126
        %v4091 = vpop.permute.xlu0 %4090
        %v4124 = vadd.f32 %v3929, %v4029
        %v4125 = vadd.f32 %v3930, %v4031
        %v4126 = vadd.f32 %v3931, %v4033
        %v4127 = vadd.f32 %v3932, %v4035
        %v4128 = vadd.f32 %v3933, %v4037
        %v4129 = vadd.f32 %v3934, %v4039
        %v4130 = vadd.f32 %v3935, %v4041
        %v4131 = vadd.f32 %v3936, %v4043
        %v4132 = vadd.f32 %v3937, %v4045
        %v4133 = vadd.f32 %v3938, %v4047
        %v4134 = vadd.f32 %v3939, %v4049
        %v4135 = vadd.f32 %v3940, %v4051
        %v4136 = vadd.f32 %v3941, %v4053
        %v4137 = vadd.f32 %v3942, %v4055
        %v4138 = vadd.f32 %v3943, %v4057
        %v4139 = vadd.f32 %v3944, %v4059
        %v4140 = vadd.f32 %v3945, %v4061
        %v4141 = vadd.f32 %v3946, %v4063
        %v4142 = vadd.f32 %v3947, %v4065
        %v4143 = vadd.f32 %v3948, %v4067
        %v4144 = vadd.f32 %v3949, %v4069
        %v4145 = vadd.f32 %v3950, %v4071
        %v4146 = vadd.f32 %v3951, %v4073
        %v4147 = vadd.f32 %v3952, %v4075
        %v4148 = vadd.f32 %v3953, %v4077
        %v4149 = vadd.f32 %v3954, %v4079
        %v4150 = vadd.f32 %v3955, %v4081
        %v4151 = vadd.f32 %v3956, %v4083
        %v4152 = vadd.f32 %v3957, %v4085
        %v4153 = vadd.f32 %v3958, %v4087
        %v4154 = vadd.f32 %v3959, %v4089
        %v4155 = vadd.f32 %v3960, %v4091
        %s4156 = sadd.s32 %s242, 24
        %s4157 = sld [smem:[#allocation2 + %s4156]]
        %v4158 = vld [vmem:[%s3179 + $0x2] sm:$0xff]
        %v4159 = vld [vmem:[%s3179 + $0xa] sm:$0xff]
        %v4160 = vld [vmem:[%s3179 + $0x1a] sm:$0xff]
        %v4161 = vld [vmem:[%s3179 + $0x22] sm:$0xff]
        %v4162 = vld [vmem:[%s3179 + $0x32] sm:$0xff]
        %v4163 = vld [vmem:[%s3179 + $0x3a] sm:$0xff]
        %v4164 = vld [vmem:[%s3179 + $0x4a] sm:$0xff]
        %v4165 = vld [vmem:[%s3179 + $0x52] sm:$0xff]
        %v4166 = vld [vmem:[%s3179 + $0x62] sm:$0xff]
        %v4167 = vld [vmem:[%s3179 + $0x6a] sm:$0xff]
        %v4168 = vld [vmem:[%s3179 + $0x7a] sm:$0xff]
        %v4169 = vld [vmem:[%s3179 + $0x82] sm:$0xff]
        %v4170 = vld [vmem:[%s3179 + $0x92] sm:$0xff]
        %v4171 = vld [vmem:[%s3179 + $0x9a] sm:$0xff]
        %v4172 = vld [vmem:[%s3179 + $0xaa] sm:$0xff]
        %v4173 = vld [vmem:[%s3179 + $0xb2] sm:$0xff]
        %v4174 = vld [vmem:[%s3179 + $0xc2] sm:$0xff]
        %v4175 = vld [vmem:[%s3179 + $0xca] sm:$0xff]
        %v4176 = vld [vmem:[%s3179 + $0xda] sm:$0xff]
        %v4177 = vld [vmem:[%s3179 + $0xe2] sm:$0xff]
        %v4178 = vld [vmem:[%s3179 + $0xf2] sm:$0xff]
        %v4179 = vld [vmem:[%s3179 + $0xfa] sm:$0xff]
        %v4180 = vld [vmem:[%s3179 + $0x10a] sm:$0xff]
        %v4181 = vld [vmem:[%s3179 + $0x112] sm:$0xff]
        %v4182 = vld [vmem:[%s3179 + $0x122] sm:$0xff]
        %v4183 = vld [vmem:[%s3179 + $0x12a] sm:$0xff]
        %v4184 = vld [vmem:[%s3179 + $0x13a] sm:$0xff]
        %v4185 = vld [vmem:[%s3179 + $0x142] sm:$0xff]
        %v4186 = vld [vmem:[%s3179 + $0x152] sm:$0xff]
        %v4187 = vld [vmem:[%s3179 + $0x15a] sm:$0xff]
        %v4188 = vld [vmem:[%s3179 + $0x16a] sm:$0xff]
        %v4189 = vld [vmem:[%s3179 + $0x172] sm:$0xff]
        %v4190 = vstv %s4157
        %v4191 = vmul.f32 %v4190, %v4158
        %v4192 = vmul.f32 %v4190, %v4159
        %v4193 = vmul.f32 %v4190, %v4160
        %v4194 = vmul.f32 %v4190, %v4161
        %v4195 = vmul.f32 %v4190, %v4162
        %v4196 = vmul.f32 %v4190, %v4163
        %v4197 = vmul.f32 %v4190, %v4164
        %v4198 = vmul.f32 %v4190, %v4165
        %v4199 = vmul.f32 %v4190, %v4166
        %v4200 = vmul.f32 %v4190, %v4167
        %v4201 = vmul.f32 %v4190, %v4168
        %v4202 = vmul.f32 %v4190, %v4169
        %v4203 = vmul.f32 %v4190, %v4170
        %v4204 = vmul.f32 %v4190, %v4171
        %v4205 = vmul.f32 %v4190, %v4172
        %v4206 = vmul.f32 %v4190, %v4173
        %v4207 = vmul.f32 %v4190, %v4174
        %v4208 = vmul.f32 %v4190, %v4175
        %v4209 = vmul.f32 %v4190, %v4176
        %v4210 = vmul.f32 %v4190, %v4177
        %v4211 = vmul.f32 %v4190, %v4178
        %v4212 = vmul.f32 %v4190, %v4179
        %v4213 = vmul.f32 %v4190, %v4180
        %v4214 = vmul.f32 %v4190, %v4181
        %v4215 = vmul.f32 %v4190, %v4182
        %v4216 = vmul.f32 %v4190, %v4183
        %v4217 = vmul.f32 %v4190, %v4184
        %v4218 = vmul.f32 %v4190, %v4185
        %v4219 = vmul.f32 %v4190, %v4186
        %v4220 = vmul.f32 %v4190, %v4187
        %v4221 = vmul.f32 %v4190, %v4188
        %v4222 = vmul.f32 %v4190, %v4189
        %v4223 = vadd.f32 %v4124, %v4191
        %v4224 = vadd.f32 %v4125, %v4192
        %v4225 = vadd.f32 %v4126, %v4193
        %v4226 = vadd.f32 %v4127, %v4194
        %v4227 = vadd.f32 %v4128, %v4195
        %v4228 = vadd.f32 %v4129, %v4196
        %v4229 = vadd.f32 %v4130, %v4197
        %v4230 = vadd.f32 %v4131, %v4198
        %v4231 = vadd.f32 %v4132, %v4199
        %v4232 = vadd.f32 %v4133, %v4200
        %v4233 = vadd.f32 %v4134, %v4201
        %v4234 = vadd.f32 %v4135, %v4202
        %v4235 = vadd.f32 %v4136, %v4203
        %v4236 = vadd.f32 %v4137, %v4204
        %v4237 = vadd.f32 %v4138, %v4205
        %v4238 = vadd.f32 %v4139, %v4206
        %v4239 = vadd.f32 %v4140, %v4207
        %v4240 = vadd.f32 %v4141, %v4208
        %v4241 = vadd.f32 %v4142, %v4209
        %v4242 = vadd.f32 %v4143, %v4210
        %v4243 = vadd.f32 %v4144, %v4211
        %v4244 = vadd.f32 %v4145, %v4212
        %v4245 = vadd.f32 %v4146, %v4213
        %v4246 = vadd.f32 %v4147, %v4214
        %v4247 = vadd.f32 %v4148, %v4215
        %v4248 = vadd.f32 %v4149, %v4216
        %v4249 = vadd.f32 %v4150, %v4217
        %v4250 = vadd.f32 %v4151, %v4218
        %v4251 = vadd.f32 %v4152, %v4219
        %v4252 = vadd.f32 %v4153, %v4220
        %v4253 = vadd.f32 %v4154, %v4221
        %v4254 = vadd.f32 %v4155, %v4222
        %s4255 = sadd.s32 %s242, 25
        %s4256 = sld [smem:[#allocation2 + %s4255]]
        %v4257 = vstv %s4256
        %v4258 = vmul.f32 %v4257, %v4158
        %v4259 = vmul.f32 %v4257, %v4159
        %v4260 = vmul.f32 %v4257, %v4160
        %v4261 = vmul.f32 %v4257, %v4161
        %v4262 = vmul.f32 %v4257, %v4162
        %v4263 = vmul.f32 %v4257, %v4163
        %v4264 = vmul.f32 %v4257, %v4164
        %v4265 = vmul.f32 %v4257, %v4165
        %v4266 = vmul.f32 %v4257, %v4166
        %v4267 = vmul.f32 %v4257, %v4167
        %v4268 = vmul.f32 %v4257, %v4168
        %v4269 = vmul.f32 %v4257, %v4169
        %v4270 = vmul.f32 %v4257, %v4170
        %v4271 = vmul.f32 %v4257, %v4171
        %v4272 = vmul.f32 %v4257, %v4172
        %v4273 = vmul.f32 %v4257, %v4173
        %v4274 = vmul.f32 %v4257, %v4174
        %v4275 = vmul.f32 %v4257, %v4175
        %v4276 = vmul.f32 %v4257, %v4176
        %v4277 = vmul.f32 %v4257, %v4177
        %v4278 = vmul.f32 %v4257, %v4178
        %v4279 = vmul.f32 %v4257, %v4179
        %v4280 = vmul.f32 %v4257, %v4180
        %v4281 = vmul.f32 %v4257, %v4181
        %v4282 = vmul.f32 %v4257, %v4182
        %v4283 = vmul.f32 %v4257, %v4183
        %v4284 = vmul.f32 %v4257, %v4184
        %v4285 = vmul.f32 %v4257, %v4185
        %v4286 = vmul.f32 %v4257, %v4186
        %v4287 = vmul.f32 %v4257, %v4187
        %v4288 = vmul.f32 %v4257, %v4188
        %v4289 = vmul.f32 %v4257, %v4189
        %4322 = vrot.lane.b32.xlu0 %v4258, 127
        %v4323 = vpop.permute.xlu0 %4322
        %4324 = vrot.lane.b32.xlu0 %v4259, 127
        %v4325 = vpop.permute.xlu0 %4324
        %4326 = vrot.lane.b32.xlu0 %v4260, 127
        %v4327 = vpop.permute.xlu0 %4326
        %4328 = vrot.lane.b32.xlu0 %v4261, 127
        %v4329 = vpop.permute.xlu0 %4328
        %4330 = vrot.lane.b32.xlu0 %v4262, 127
        %v4331 = vpop.permute.xlu0 %4330
        %4332 = vrot.lane.b32.xlu0 %v4263, 127
        %v4333 = vpop.permute.xlu0 %4332
        %4334 = vrot.lane.b32.xlu0 %v4264, 127
        %v4335 = vpop.permute.xlu0 %4334
        %4336 = vrot.lane.b32.xlu0 %v4265, 127
        %v4337 = vpop.permute.xlu0 %4336
        %4338 = vrot.lane.b32.xlu0 %v4266, 127
        %v4339 = vpop.permute.xlu0 %4338
        %4340 = vrot.lane.b32.xlu0 %v4267, 127
        %v4341 = vpop.permute.xlu0 %4340
        %4342 = vrot.lane.b32.xlu0 %v4268, 127
        %v4343 = vpop.permute.xlu0 %4342
        %4344 = vrot.lane.b32.xlu0 %v4269, 127
        %v4345 = vpop.permute.xlu0 %4344
        %4346 = vrot.lane.b32.xlu0 %v4270, 127
        %v4347 = vpop.permute.xlu0 %4346
        %4348 = vrot.lane.b32.xlu0 %v4271, 127
        %v4349 = vpop.permute.xlu0 %4348
        %4350 = vrot.lane.b32.xlu0 %v4272, 127
        %v4351 = vpop.permute.xlu0 %4350
        %4352 = vrot.lane.b32.xlu0 %v4273, 127
        %v4353 = vpop.permute.xlu0 %4352
        %4354 = vrot.lane.b32.xlu0 %v4274, 127
        %v4355 = vpop.permute.xlu0 %4354
        %4356 = vrot.lane.b32.xlu0 %v4275, 127
        %v4357 = vpop.permute.xlu0 %4356
        %4358 = vrot.lane.b32.xlu0 %v4276, 127
        %v4359 = vpop.permute.xlu0 %4358
        %4360 = vrot.lane.b32.xlu0 %v4277, 127
        %v4361 = vpop.permute.xlu0 %4360
        %4362 = vrot.lane.b32.xlu0 %v4278, 127
        %v4363 = vpop.permute.xlu0 %4362
        %4364 = vrot.lane.b32.xlu0 %v4279, 127
        %v4365 = vpop.permute.xlu0 %4364
        %4366 = vrot.lane.b32.xlu0 %v4280, 127
        %v4367 = vpop.permute.xlu0 %4366
        %4368 = vrot.lane.b32.xlu0 %v4281, 127
        %v4369 = vpop.permute.xlu0 %4368
        %4370 = vrot.lane.b32.xlu0 %v4282, 127
        %v4371 = vpop.permute.xlu0 %4370
        %4372 = vrot.lane.b32.xlu0 %v4283, 127
        %v4373 = vpop.permute.xlu0 %4372
        %4374 = vrot.lane.b32.xlu0 %v4284, 127
        %v4375 = vpop.permute.xlu0 %4374
        %4376 = vrot.lane.b32.xlu0 %v4285, 127
        %v4377 = vpop.permute.xlu0 %4376
        %4378 = vrot.lane.b32.xlu0 %v4286, 127
        %v4379 = vpop.permute.xlu0 %4378
        %4380 = vrot.lane.b32.xlu0 %v4287, 127
        %v4381 = vpop.permute.xlu0 %4380
        %4382 = vrot.lane.b32.xlu0 %v4288, 127
        %v4383 = vpop.permute.xlu0 %4382
        %4384 = vrot.lane.b32.xlu0 %v4289, 127
        %v4385 = vpop.permute.xlu0 %4384
        %v4418 = vadd.f32 %v4223, %v4323
        %v4419 = vadd.f32 %v4224, %v4325
        %v4420 = vadd.f32 %v4225, %v4327
        %v4421 = vadd.f32 %v4226, %v4329
        %v4422 = vadd.f32 %v4227, %v4331
        %v4423 = vadd.f32 %v4228, %v4333
        %v4424 = vadd.f32 %v4229, %v4335
        %v4425 = vadd.f32 %v4230, %v4337
        %v4426 = vadd.f32 %v4231, %v4339
        %v4427 = vadd.f32 %v4232, %v4341
        %v4428 = vadd.f32 %v4233, %v4343
        %v4429 = vadd.f32 %v4234, %v4345
        %v4430 = vadd.f32 %v4235, %v4347
        %v4431 = vadd.f32 %v4236, %v4349
        %v4432 = vadd.f32 %v4237, %v4351
        %v4433 = vadd.f32 %v4238, %v4353
        %v4434 = vadd.f32 %v4239, %v4355
        %v4435 = vadd.f32 %v4240, %v4357
        %v4436 = vadd.f32 %v4241, %v4359
        %v4437 = vadd.f32 %v4242, %v4361
        %v4438 = vadd.f32 %v4243, %v4363
        %v4439 = vadd.f32 %v4244, %v4365
        %v4440 = vadd.f32 %v4245, %v4367
        %v4441 = vadd.f32 %v4246, %v4369
        %v4442 = vadd.f32 %v4247, %v4371
        %v4443 = vadd.f32 %v4248, %v4373
        %v4444 = vadd.f32 %v4249, %v4375
        %v4445 = vadd.f32 %v4250, %v4377
        %v4446 = vadd.f32 %v4251, %v4379
        %v4447 = vadd.f32 %v4252, %v4381
        %v4448 = vadd.f32 %v4253, %v4383
        %v4449 = vadd.f32 %v4254, %v4385
        %s4450 = sadd.s32 %s242, 26
        %s4451 = sld [smem:[#allocation2 + %s4450]]
        %v4452 = vstv %s4451
        %v4453 = vmul.f32 %v4452, %v4158
        %v4454 = vmul.f32 %v4452, %v4159
        %v4455 = vmul.f32 %v4452, %v4160
        %v4456 = vmul.f32 %v4452, %v4161
        %v4457 = vmul.f32 %v4452, %v4162
        %v4458 = vmul.f32 %v4452, %v4163
        %v4459 = vmul.f32 %v4452, %v4164
        %v4460 = vmul.f32 %v4452, %v4165
        %v4461 = vmul.f32 %v4452, %v4166
        %v4462 = vmul.f32 %v4452, %v4167
        %v4463 = vmul.f32 %v4452, %v4168
        %v4464 = vmul.f32 %v4452, %v4169
        %v4465 = vmul.f32 %v4452, %v4170
        %v4466 = vmul.f32 %v4452, %v4171
        %v4467 = vmul.f32 %v4452, %v4172
        %v4468 = vmul.f32 %v4452, %v4173
        %v4469 = vmul.f32 %v4452, %v4174
        %v4470 = vmul.f32 %v4452, %v4175
        %v4471 = vmul.f32 %v4452, %v4176
        %v4472 = vmul.f32 %v4452, %v4177
        %v4473 = vmul.f32 %v4452, %v4178
        %v4474 = vmul.f32 %v4452, %v4179
        %v4475 = vmul.f32 %v4452, %v4180
        %v4476 = vmul.f32 %v4452, %v4181
        %v4477 = vmul.f32 %v4452, %v4182
        %v4478 = vmul.f32 %v4452, %v4183
        %v4479 = vmul.f32 %v4452, %v4184
        %v4480 = vmul.f32 %v4452, %v4185
        %v4481 = vmul.f32 %v4452, %v4186
        %v4482 = vmul.f32 %v4452, %v4187
        %v4483 = vmul.f32 %v4452, %v4188
        %v4484 = vmul.f32 %v4452, %v4189
        %4517 = vrot.lane.b32.xlu0 %v4453, 126
        %v4518 = vpop.permute.xlu0 %4517
        %4519 = vrot.lane.b32.xlu0 %v4454, 126
        %v4520 = vpop.permute.xlu0 %4519
        %4521 = vrot.lane.b32.xlu0 %v4455, 126
        %v4522 = vpop.permute.xlu0 %4521
        %4523 = vrot.lane.b32.xlu0 %v4456, 126
        %v4524 = vpop.permute.xlu0 %4523
        %4525 = vrot.lane.b32.xlu0 %v4457, 126
        %v4526 = vpop.permute.xlu0 %4525
        %4527 = vrot.lane.b32.xlu0 %v4458, 126
        %v4528 = vpop.permute.xlu0 %4527
        %4529 = vrot.lane.b32.xlu0 %v4459, 126
        %v4530 = vpop.permute.xlu0 %4529
        %4531 = vrot.lane.b32.xlu0 %v4460, 126
        %v4532 = vpop.permute.xlu0 %4531
        %4533 = vrot.lane.b32.xlu0 %v4461, 126
        %v4534 = vpop.permute.xlu0 %4533
        %4535 = vrot.lane.b32.xlu0 %v4462, 126
        %v4536 = vpop.permute.xlu0 %4535
        %4537 = vrot.lane.b32.xlu0 %v4463, 126
        %v4538 = vpop.permute.xlu0 %4537
        %4539 = vrot.lane.b32.xlu0 %v4464, 126
        %v4540 = vpop.permute.xlu0 %4539
        %4541 = vrot.lane.b32.xlu0 %v4465, 126
        %v4542 = vpop.permute.xlu0 %4541
        %4543 = vrot.lane.b32.xlu0 %v4466, 126
        %v4544 = vpop.permute.xlu0 %4543
        %4545 = vrot.lane.b32.xlu0 %v4467, 126
        %v4546 = vpop.permute.xlu0 %4545
        %4547 = vrot.lane.b32.xlu0 %v4468, 126
        %v4548 = vpop.permute.xlu0 %4547
        %4549 = vrot.lane.b32.xlu0 %v4469, 126
        %v4550 = vpop.permute.xlu0 %4549
        %4551 = vrot.lane.b32.xlu0 %v4470, 126
        %v4552 = vpop.permute.xlu0 %4551
        %4553 = vrot.lane.b32.xlu0 %v4471, 126
        %v4554 = vpop.permute.xlu0 %4553
        %4555 = vrot.lane.b32.xlu0 %v4472, 126
        %v4556 = vpop.permute.xlu0 %4555
        %4557 = vrot.lane.b32.xlu0 %v4473, 126
        %v4558 = vpop.permute.xlu0 %4557
        %4559 = vrot.lane.b32.xlu0 %v4474, 126
        %v4560 = vpop.permute.xlu0 %4559
        %4561 = vrot.lane.b32.xlu0 %v4475, 126
        %v4562 = vpop.permute.xlu0 %4561
        %4563 = vrot.lane.b32.xlu0 %v4476, 126
        %v4564 = vpop.permute.xlu0 %4563
        %4565 = vrot.lane.b32.xlu0 %v4477, 126
        %v4566 = vpop.permute.xlu0 %4565
        %4567 = vrot.lane.b32.xlu0 %v4478, 126
        %v4568 = vpop.permute.xlu0 %4567
        %4569 = vrot.lane.b32.xlu0 %v4479, 126
        %v4570 = vpop.permute.xlu0 %4569
        %4571 = vrot.lane.b32.xlu0 %v4480, 126
        %v4572 = vpop.permute.xlu0 %4571
        %4573 = vrot.lane.b32.xlu0 %v4481, 126
        %v4574 = vpop.permute.xlu0 %4573
        %4575 = vrot.lane.b32.xlu0 %v4482, 126
        %v4576 = vpop.permute.xlu0 %4575
        %4577 = vrot.lane.b32.xlu0 %v4483, 126
        %v4578 = vpop.permute.xlu0 %4577
        %4579 = vrot.lane.b32.xlu0 %v4484, 126
        %v4580 = vpop.permute.xlu0 %4579
        %v4613 = vadd.f32 %v4418, %v4518
        %v4614 = vadd.f32 %v4419, %v4520
        %v4615 = vadd.f32 %v4420, %v4522
        %v4616 = vadd.f32 %v4421, %v4524
        %v4617 = vadd.f32 %v4422, %v4526
        %v4618 = vadd.f32 %v4423, %v4528
        %v4619 = vadd.f32 %v4424, %v4530
        %v4620 = vadd.f32 %v4425, %v4532
        %v4621 = vadd.f32 %v4426, %v4534
        %v4622 = vadd.f32 %v4427, %v4536
        %v4623 = vadd.f32 %v4428, %v4538
        %v4624 = vadd.f32 %v4429, %v4540
        %v4625 = vadd.f32 %v4430, %v4542
        %v4626 = vadd.f32 %v4431, %v4544
        %v4627 = vadd.f32 %v4432, %v4546
        %v4628 = vadd.f32 %v4433, %v4548
        %v4629 = vadd.f32 %v4434, %v4550
        %v4630 = vadd.f32 %v4435, %v4552
        %v4631 = vadd.f32 %v4436, %v4554
        %v4632 = vadd.f32 %v4437, %v4556
        %v4633 = vadd.f32 %v4438, %v4558
        %v4634 = vadd.f32 %v4439, %v4560
        %v4635 = vadd.f32 %v4440, %v4562
        %v4636 = vadd.f32 %v4441, %v4564
        %v4637 = vadd.f32 %v4442, %v4566
        %v4638 = vadd.f32 %v4443, %v4568
        %v4639 = vadd.f32 %v4444, %v4570
        %v4640 = vadd.f32 %v4445, %v4572
        %v4641 = vadd.f32 %v4446, %v4574
        %v4642 = vadd.f32 %v4447, %v4576
        %v4643 = vadd.f32 %v4448, %v4578
        %v4644 = vadd.f32 %v4449, %v4580
        %vm4645 = vcmask 130048
        %4646 = vst.msk [vmem:[%s233] sm:$0xff] %vm4645, %v4613
        %4647 = vst.msk [vmem:[%s233 + $0x8] sm:$0xff] %vm4645, %v4614
        %4648 = vst.msk [vmem:[%s233 + $0x10] sm:$0xff] %vm4645, %v4615
        %4649 = vst.msk [vmem:[%s233 + $0x18] sm:$0xff] %vm4645, %v4616
        %4650 = vst.msk [vmem:[%s233 + $0x20] sm:$0xff] %vm4645, %v4617
        %4651 = vst.msk [vmem:[%s233 + $0x28] sm:$0xff] %vm4645, %v4618
        %4652 = vst.msk [vmem:[%s233 + $0x30] sm:$0xff] %vm4645, %v4619
        %4653 = vst.msk [vmem:[%s233 + $0x38] sm:$0xff] %vm4645, %v4620
        %4654 = vst.msk [vmem:[%s233 + $0x40] sm:$0xff] %vm4645, %v4621
        %4655 = vst.msk [vmem:[%s233 + $0x48] sm:$0xff] %vm4645, %v4622
        %4656 = vst.msk [vmem:[%s233 + $0x50] sm:$0xff] %vm4645, %v4623
        %4657 = vst.msk [vmem:[%s233 + $0x58] sm:$0xff] %vm4645, %v4624
        %4658 = vst.msk [vmem:[%s233 + $0x60] sm:$0xff] %vm4645, %v4625
        %4659 = vst.msk [vmem:[%s233 + $0x68] sm:$0xff] %vm4645, %v4626
        %4660 = vst.msk [vmem:[%s233 + $0x70] sm:$0xff] %vm4645, %v4627
        %4661 = vst.msk [vmem:[%s233 + $0x78] sm:$0xff] %vm4645, %v4628
        %4662 = vst.msk [vmem:[%s233 + $0x80] sm:$0xff] %vm4645, %v4629
        %4663 = vst.msk [vmem:[%s233 + $0x88] sm:$0xff] %vm4645, %v4630
        %4664 = vst.msk [vmem:[%s233 + $0x90] sm:$0xff] %vm4645, %v4631
        %4665 = vst.msk [vmem:[%s233 + $0x98] sm:$0xff] %vm4645, %v4632
        %4666 = vst.msk [vmem:[%s233 + $0xa0] sm:$0xff] %vm4645, %v4633
        %4667 = vst.msk [vmem:[%s233 + $0xa8] sm:$0xff] %vm4645, %v4634
        %4668 = vst.msk [vmem:[%s233 + $0xb0] sm:$0xff] %vm4645, %v4635
        %4669 = vst.msk [vmem:[%s233 + $0xb8] sm:$0xff] %vm4645, %v4636
        %4670 = vst.msk [vmem:[%s233 + $0xc0] sm:$0xff] %vm4645, %v4637
        %4671 = vst.msk [vmem:[%s233 + $0xc8] sm:$0xff] %vm4645, %v4638
        %4672 = vst.msk [vmem:[%s233 + $0xd0] sm:$0xff] %vm4645, %v4639
        %4673 = vst.msk [vmem:[%s233 + $0xd8] sm:$0xff] %vm4645, %v4640
        %4674 = vst.msk [vmem:[%s233 + $0xe0] sm:$0xff] %vm4645, %v4641
        %4675 = vst.msk [vmem:[%s233 + $0xe8] sm:$0xff] %vm4645, %v4642
        %4676 = vst.msk [vmem:[%s233 + $0xf0] sm:$0xff] %vm4645, %v4643
        %4677 = vst.msk [vmem:[%s233 + $0xf8] sm:$0xff] %vm4645, %v4644
        %v4678 = vsel %vm4645, %v4613, 0.0
        %v4679 = vsel %vm4645, %v4614, 0.0
        %v4680 = vadd.f32 %v4678, %v4679
        %v4681 = vsel %vm4645, %v4615, 0.0
        %v4682 = vadd.f32 %v4680, %v4681
        %v4683 = vsel %vm4645, %v4616, 0.0
        %v4684 = vadd.f32 %v4682, %v4683
        %v4685 = vsel %vm4645, %v4617, 0.0
        %v4686 = vadd.f32 %v4684, %v4685
        %v4687 = vsel %vm4645, %v4618, 0.0
        %v4688 = vadd.f32 %v4686, %v4687
        %v4689 = vsel %vm4645, %v4619, 0.0
        %v4690 = vadd.f32 %v4688, %v4689
        %v4691 = vsel %vm4645, %v4620, 0.0
        %v4692 = vadd.f32 %v4690, %v4691
        %v4693 = vsel %vm4645, %v4621, 0.0
        %v4694 = vadd.f32 %v4692, %v4693
        %v4695 = vsel %vm4645, %v4622, 0.0
        %v4696 = vadd.f32 %v4694, %v4695
        %v4697 = vsel %vm4645, %v4623, 0.0
        %v4698 = vadd.f32 %v4696, %v4697
        %v4699 = vsel %vm4645, %v4624, 0.0
        %v4700 = vadd.f32 %v4698, %v4699
        %v4701 = vsel %vm4645, %v4625, 0.0
        %v4702 = vadd.f32 %v4700, %v4701
        %v4703 = vsel %vm4645, %v4626, 0.0
        %v4704 = vadd.f32 %v4702, %v4703
        %v4705 = vsel %vm4645, %v4627, 0.0
        %v4706 = vadd.f32 %v4704, %v4705
        %v4707 = vsel %vm4645, %v4628, 0.0
        %v4708 = vadd.f32 %v4706, %v4707
        %v4709 = vsel %vm4645, %v4629, 0.0
        %v4710 = vadd.f32 %v4708, %v4709
        %v4711 = vsel %vm4645, %v4630, 0.0
        %v4712 = vadd.f32 %v4710, %v4711
        %v4713 = vsel %vm4645, %v4631, 0.0
        %v4714 = vadd.f32 %v4712, %v4713
        %v4715 = vsel %vm4645, %v4632, 0.0
        %v4716 = vadd.f32 %v4714, %v4715
        %v4717 = vsel %vm4645, %v4633, 0.0
        %v4718 = vadd.f32 %v4716, %v4717
        %v4719 = vsel %vm4645, %v4634, 0.0
        %v4720 = vadd.f32 %v4718, %v4719
        %v4721 = vsel %vm4645, %v4635, 0.0
        %v4722 = vadd.f32 %v4720, %v4721
        %v4723 = vsel %vm4645, %v4636, 0.0
        %v4724 = vadd.f32 %v4722, %v4723
        %v4725 = vsel %vm4645, %v4637, 0.0
        %v4726 = vadd.f32 %v4724, %v4725
        %v4727 = vsel %vm4645, %v4638, 0.0
        %v4728 = vadd.f32 %v4726, %v4727
        %v4729 = vsel %vm4645, %v4639, 0.0
        %v4730 = vadd.f32 %v4728, %v4729
        %v4731 = vsel %vm4645, %v4640, 0.0
        %v4732 = vadd.f32 %v4730, %v4731
        %v4733 = vsel %vm4645, %v4641, 0.0
        %v4734 = vadd.f32 %v4732, %v4733
        %v4735 = vsel %vm4645, %v4642, 0.0
        %v4736 = vadd.f32 %v4734, %v4735
        %v4737 = vsel %vm4645, %v4643, 0.0
        %v4738 = vadd.f32 %v4736, %v4737
        %v4739 = vsel %vm4645, %v4644, 0.0
        %v4740 = vadd.f32 %v4738, %v4739
        %4741 = vadd.xlane.f32.xlu0 %v4740
        %v4742 = vpop.xlane.xlu0 %4741
        %v4743 = vrot.slane %v4742, 4
        %v4744 = vadd.f32 %v4742, %v4743
        %v4745 = vrot.slane %v4744, 2
        %v4746 = vadd.f32 %v4744, %v4745
        %v4747 = vrot.slane %v4746, 1
        %v4748 = vadd.f32 %v4746, %v4747
        %s4749 = vtos %v4748
        %v4750 = vmul.f32 %v4613, %v4613
        %v4751 = vmul.f32 %v4614, %v4614
        %v4752 = vmul.f32 %v4615, %v4615
        %v4753 = vmul.f32 %v4616, %v4616
        %v4754 = vmul.f32 %v4617, %v4617
        %v4755 = vmul.f32 %v4618, %v4618
        %v4756 = vmul.f32 %v4619, %v4619
        %v4757 = vmul.f32 %v4620, %v4620
        %v4758 = vmul.f32 %v4621, %v4621
        %v4759 = vmul.f32 %v4622, %v4622
        %v4760 = vmul.f32 %v4623, %v4623
        %v4761 = vmul.f32 %v4624, %v4624
        %v4762 = vmul.f32 %v4625, %v4625
        %v4763 = vmul.f32 %v4626, %v4626
        %v4764 = vmul.f32 %v4627, %v4627
        %v4765 = vmul.f32 %v4628, %v4628
        %v4766 = vmul.f32 %v4629, %v4629
        %v4767 = vmul.f32 %v4630, %v4630
        %v4768 = vmul.f32 %v4631, %v4631
        %v4769 = vmul.f32 %v4632, %v4632
        %v4770 = vmul.f32 %v4633, %v4633
        %v4771 = vmul.f32 %v4634, %v4634
        %v4772 = vmul.f32 %v4635, %v4635
        %v4773 = vmul.f32 %v4636, %v4636
        %v4774 = vmul.f32 %v4637, %v4637
        %v4775 = vmul.f32 %v4638, %v4638
        %v4776 = vmul.f32 %v4639, %v4639
        %v4777 = vmul.f32 %v4640, %v4640
        %v4778 = vmul.f32 %v4641, %v4641
        %v4779 = vmul.f32 %v4642, %v4642
        %v4780 = vmul.f32 %v4643, %v4643
        %v4781 = vmul.f32 %v4644, %v4644
        %v4782 = vsel %vm4645, %v4750, 0.0
        %v4783 = vsel %vm4645, %v4751, 0.0
        %v4784 = vadd.f32 %v4782, %v4783
        %v4785 = vsel %vm4645, %v4752, 0.0
        %v4786 = vadd.f32 %v4784, %v4785
        %v4787 = vsel %vm4645, %v4753, 0.0
        %v4788 = vadd.f32 %v4786, %v4787
        %v4789 = vsel %vm4645, %v4754, 0.0
        %v4790 = vadd.f32 %v4788, %v4789
        %v4791 = vsel %vm4645, %v4755, 0.0
        %v4792 = vadd.f32 %v4790, %v4791
        %v4793 = vsel %vm4645, %v4756, 0.0
        %v4794 = vadd.f32 %v4792, %v4793
        %v4795 = vsel %vm4645, %v4757, 0.0
        %v4796 = vadd.f32 %v4794, %v4795
        %v4797 = vsel %vm4645, %v4758, 0.0
        %v4798 = vadd.f32 %v4796, %v4797
        %v4799 = vsel %vm4645, %v4759, 0.0
        %v4800 = vadd.f32 %v4798, %v4799
        %v4801 = vsel %vm4645, %v4760, 0.0
        %v4802 = vadd.f32 %v4800, %v4801
        %v4803 = vsel %vm4645, %v4761, 0.0
        %v4804 = vadd.f32 %v4802, %v4803
        %v4805 = vsel %vm4645, %v4762, 0.0
        %v4806 = vadd.f32 %v4804, %v4805
        %v4807 = vsel %vm4645, %v4763, 0.0
        %v4808 = vadd.f32 %v4806, %v4807
        %v4809 = vsel %vm4645, %v4764, 0.0
        %v4810 = vadd.f32 %v4808, %v4809
        %v4811 = vsel %vm4645, %v4765, 0.0
        %v4812 = vadd.f32 %v4810, %v4811
        %v4813 = vsel %vm4645, %v4766, 0.0
        %v4814 = vadd.f32 %v4812, %v4813
        %v4815 = vsel %vm4645, %v4767, 0.0
        %v4816 = vadd.f32 %v4814, %v4815
        %v4817 = vsel %vm4645, %v4768, 0.0
        %v4818 = vadd.f32 %v4816, %v4817
        %v4819 = vsel %vm4645, %v4769, 0.0
        %v4820 = vadd.f32 %v4818, %v4819
        %v4821 = vsel %vm4645, %v4770, 0.0
        %v4822 = vadd.f32 %v4820, %v4821
        %v4823 = vsel %vm4645, %v4771, 0.0
        %v4824 = vadd.f32 %v4822, %v4823
        %v4825 = vsel %vm4645, %v4772, 0.0
        %v4826 = vadd.f32 %v4824, %v4825
        %v4827 = vsel %vm4645, %v4773, 0.0
        %v4828 = vadd.f32 %v4826, %v4827
        %v4829 = vsel %vm4645, %v4774, 0.0
        %v4830 = vadd.f32 %v4828, %v4829
        %v4831 = vsel %vm4645, %v4775, 0.0
        %v4832 = vadd.f32 %v4830, %v4831
        %v4833 = vsel %vm4645, %v4776, 0.0
        %v4834 = vadd.f32 %v4832, %v4833
        %v4835 = vsel %vm4645, %v4777, 0.0
        %v4836 = vadd.f32 %v4834, %v4835
        %v4837 = vsel %vm4645, %v4778, 0.0
        %v4838 = vadd.f32 %v4836, %v4837
        %v4839 = vsel %vm4645, %v4779, 0.0
        %v4840 = vadd.f32 %v4838, %v4839
        %v4841 = vsel %vm4645, %v4780, 0.0
        %v4842 = vadd.f32 %v4840, %v4841
        %v4843 = vsel %vm4645, %v4781, 0.0
        %v4844 = vadd.f32 %v4842, %v4843
        %4845 = vadd.xlane.f32.xlu0 %v4844
        %v4846 = vpop.xlane.xlu0 %4845
        %v4847 = vrot.slane %v4846, 4
        %v4848 = vadd.f32 %v4846, %v4847
        %v4849 = vrot.slane %v4848, 2
        %v4850 = vadd.f32 %v4848, %v4849
        %v4851 = vrot.slane %v4850, 1
        %v4852 = vadd.f32 %v4850, %v4851
        %s4853 = vtos %v4852
        %v4854 = vstv %s4749
        %v4855 = vstv %s4853
        %vm4856 = vcmask 1040384
        %v4857 = vsel %vm4856, %v4854, %v4855
        %4858 = vst [vmem:[%s241] sm:$0x3] %v4857
        %p4859 = scmp.lt.s32.totalorder %s20, 1
        %s4860 = scalar_select %p4859, %s20, 1
        %p4861 = scmp.lt.s32.totalorder %s21, 3
        %s4862 = scalar_select %p4861, %s21, 3
        %s4863 = smul.addr %s4862, 32
        %s4864 = smul.addr %s4860, 128
        %s4865 = sadd.s32 %s4863, %s4864
        %s4866 = smul.addr %s4865, 8
        %s4867 = scalar_lea.vmem %s2, %s4866
        %p4868 = scmp.lt.s32.totalorder %s20, 1
        %s4869 = scalar_select %p4868, %s20, 1
        %p4870 = scmp.lt.s32.totalorder %s21, 3
        %s4871 = scalar_select %p4870, %s21, 3
        %s4872 = smul.addr %s4869, 4
        %s4873 = sadd.s32 %s4871, %s4872
        %s4874 = smul.addr %s4873, 2
        %s4875 = scalar_lea.vmem %s3, %s4874
        // Predicated region
        $region33: #{unet_upsample.3} parent=27 // pred_check
          %p4876 = pneg %p97
        $region34: #{unet_upsample.3} parent=27 // pred_check_branch
          %4878 = sbr.rel (%p4876) target = $region36
        $region35: #{unet_upsample.3} parent=27 // pred_region
          _
        $region36: #{unet_upsample.3} parent=27 // pred_fallthru
          _
        // Predicated region
        $region37: #{unet_upsample.3} parent=27 // pred_check
          %p4879 = pneg %p125
        $region38: #{unet_upsample.3} parent=27 // pred_check_branch
          %4881 = sbr.rel (%p4879) target = $region40
        $region39: #{unet_upsample.3} parent=27 // pred_region
          _
        $region40: #{unet_upsample.3} parent=27 // pred_fallthru
          _
      $region28: #{unet_upsample.3} parent=5 // pred_fallthru
        _
      %p4882 = scmp.le.s32.totalorder 2, %s11
      // Predicated region
      $region41: #{unet_upsample.3} parent=5 // pred_check
        %p4883 = pneg %p4882
      $region42: #{unet_upsample.3} parent=5 // pred_check_branch
        %4885 = sbr.rel (%p4883) target = $region44
      $region43: #{unet_upsample.3} parent=5 // pred_region
        %s4886 = ssub.s32 %s11, 2
        // Predicated region
        $region45: #{unet_upsample.3} parent=43 // pred_check
          %p4887 = pneg %p103
        $region46: #{unet_upsample.3} parent=43 // pred_check_branch
          %4889 = sbr.rel (%p4887) target = $region48
        $region47: #{unet_upsample.3} parent=43 // pred_region
          %p4890 = scmp.lt.s32.totalorder %s22, 1
          %s4891 = scalar_select %p4890, %s22, 1
          %p4892 = scmp.lt.s32.totalorder %s23, 3
          %s4893 = scalar_select %p4892, %s23, 3
          %s4894 = smul.addr %s4893, 32
          %s4895 = smul.addr %s4891, 128
          %s4896 = sadd.s32 %s4894, %s4895
          %s4897 = smul.addr %s4896, 8
          %s4898 = scalar_lea.vmem %s2, %s4897
        $region48: #{unet_upsample.3} parent=43 // pred_fallthru
          _
        // Predicated region
        $region49: #{unet_upsample.3} parent=43 // pred_check
          %p4899 = pneg %p131
        $region50: #{unet_upsample.3} parent=43 // pred_check_branch
          %4901 = sbr.rel (%p4899) target = $region52
        $region51: #{unet_upsample.3} parent=43 // pred_region
          %p4902 = scmp.lt.s32.totalorder %s22, 1
          %s4903 = scalar_select %p4902, %s22, 1
          %p4904 = scmp.lt.s32.totalorder %s23, 3
          %s4905 = scalar_select %p4904, %s23, 3
          %s4906 = smul.addr %s4903, 4
          %s4907 = sadd.s32 %s4905, %s4906
          %s4908 = smul.addr %s4907, 2
          %s4909 = scalar_lea.vmem %s3, %s4908
        $region52: #{unet_upsample.3} parent=43 // pred_fallthru
          _
      $region44: #{unet_upsample.3} parent=5 // pred_fallthru
        _
    $region6: #{unet_upsample.3} parent=1 // loop_footer
      %s15 = sadd.s32 1, %s11
    $region7: #{unet_upsample.3} parent=1 // loop_footer_branch
      %10 = sbr.rel target = $region3
    $region8: #{unet_upsample.3} parent=1 // loop_exit
      _
    %4910 = vsyncpa [#allocation3], 1
    %s4911 = scalar_lea.sflag [#allocation3], 1
    %4912 = vsyncpa %s4911, 1

</llo_original>
